<compile_context>
chip_gen: v7x
topology: tpu7x:2x2x1
jax: 0.10.0
libtpu: 0.0.40
codegen_flags: <defaults>
</compile_context>

<pallas_src>
import functools
import math

import jax
import jax.numpy as jnp
from jax.experimental import pallas as pl
from jax.experimental.pallas import tpu as pltpu


# ----------------------------- fused Pallas kernel -------------------------- #

def _fused_forward_kernel(*refs, B, S, D, Dfc, H, nlayers, eps=1e-5):
    """Whole SampleClassifier forward in one kernel.

    refs layout (all 2-D, f32):
      [0]  mels          (B*S, 40)
      [1]  prenet_w      (40, D)
      [2]  prenet_b      (1, D)
      per encoder layer (12 refs each):
           in_w (D,3D), in_b (1,3D), out_w (D,D), out_b (1,D),
           ff1_w (D,Dfc), ff1_b (1,Dfc), ff2_w (Dfc,D), ff2_b (1,D),
           ln1_g (1,D), ln1_b (1,D), ln2_g (1,D), ln2_b (1,D)
      tail: pred1_w (D,D), pred1_b (1,D), pred2_w (D,Npad), pred2_b (1,Npad)
      last: out_ref      (B, Npad)
    """
    out_ref = refs[-1]
    idx = 0

    def take():
        nonlocal idx
        r = refs[idx][...]
        idx += 1
        return r

    Dh = D // H
    scale = 1.0 / math.sqrt(Dh)
    BS = B * S

    def layernorm(x, g, b):
        mu = jnp.mean(x, axis=-1, keepdims=True)
        var = jnp.mean((x - mu) ** 2, axis=-1, keepdims=True)
        return (x - mu) * jax.lax.rsqrt(var + eps) * g + b

    # ---- prenet ----
    mels = take()
    pre_w = take()
    pre_b = take()
    x = jnp.dot(mels, pre_w, preferred_element_type=jnp.float32) + pre_b  # (BS, D)

    # ---- encoder layers (statically unrolled) ----
    for _ in range(nlayers):
        in_w = take(); in_b = take()
        out_w = take(); out_b = take()
        ff1_w = take(); ff1_b = take()
        ff2_w = take(); ff2_b = take()
        ln1_g = take(); ln1_b = take()
        ln2_g = take(); ln2_b = take()

        # --- self-attention (all heads in-kernel) ---
        qkv = jnp.dot(x, in_w, preferred_element_type=jnp.float32) + in_b  # (BS, 3D)
        q3 = qkv[:, 0 * D:1 * D].reshape(B, S, D)
        k3 = qkv[:, 1 * D:2 * D].reshape(B, S, D)
        v3 = qkv[:, 2 * D:3 * D].reshape(B, S, D)

        # Accumulate each head directly into the output projection
        # (avoids an in-kernel concat of head outputs).
        attn_proj = jnp.zeros((BS, D), jnp.float32)
        for h in range(H):
            qh = q3[:, :, h * Dh:(h + 1) * Dh]          # (B, S, Dh)
            kh = k3[:, :, h * Dh:(h + 1) * Dh]
            vh = v3[:, :, h * Dh:(h + 1) * Dh]
            s = jnp.einsum('bqd,bkd->bqk', qh, kh,
                           preferred_element_type=jnp.float32) * scale
            m = jnp.max(s, axis=-1, keepdims=True)
            p = jnp.exp(s - m)
            p = p / jnp.sum(p, axis=-1, keepdims=True)
            oh = jnp.einsum('bqk,bkd->bqd', p, vh,
                            preferred_element_type=jnp.float32)            # (B, S, Dh)
            attn_proj = attn_proj + jnp.dot(
                oh.reshape(BS, Dh), out_w[h * Dh:(h + 1) * Dh, :],
                preferred_element_type=jnp.float32)
        attn_proj = attn_proj + out_b

        # residual add fused with LayerNorm (post-norm)
        x = layernorm(x + attn_proj, ln1_g, ln1_b)

        # --- feed-forward block ---
        ff = jnp.dot(x, ff1_w, preferred_element_type=jnp.float32) + ff1_b
        ff = jnp.maximum(ff, 0.0)
        ff = jnp.dot(ff, ff2_w, preferred_element_type=jnp.float32) + ff2_b
        x = layernorm(x + ff, ln2_g, ln2_b)

    # ---- mean pool over sequence ----
    stats = jnp.mean(x.reshape(B, S, D), axis=1)                           # (B, D)

    # ---- prediction head (pred1 -> ReLU -> pred2, fused) ----
    p1_w = take(); p1_b = take()
    p2_w = take(); p2_b = take()
    hidden = jnp.maximum(
        jnp.dot(stats, p1_w, preferred_element_type=jnp.float32) + p1_b, 0.0)
    logits = jnp.dot(hidden, p2_w, preferred_element_type=jnp.float32) + p2_b  # (B, Npad)

    out_ref[...] = logits.astype(out_ref.dtype)


# ------------------------------ wrapper / forward --------------------------- #

def sample_classifier_forward(mels, params, nhead):
    """mels: (B, S, 40) f32 -> logits (B, n_spks) f32. One fused pallas_call."""
    B, S, F = mels.shape
    D = params["prenet_w"].shape[1]
    Dfc = params["layers"][0]["ff1_w"].shape[1]
    nlayers = len(params["layers"])
    n_spks = params["pred2_w"].shape[1]
    n_pad = ((n_spks + 127) // 128) * 128          # lane-dense output width

    # Pad the final projection to a 128-multiple so the output store is unmasked.
    p2_w = jnp.pad(params["pred2_w"], ((0, 0), (0, n_pad - n_spks)))
    p2_b = jnp.pad(params["pred2_b"], ((0, n_pad - n_spks),)).reshape(1, n_pad)

    inputs = [
        mels.reshape(B * S, F).astype(jnp.float32),
        params["prenet_w"], params["prenet_b"].reshape(1, D),
    ]
    for lp in params["layers"]:
        inputs += [
            lp["in_w"], lp["in_b"].reshape(1, 3 * D),
            lp["out_w"], lp["out_b"].reshape(1, D),
            lp["ff1_w"], lp["ff1_b"].reshape(1, Dfc),
            lp["ff2_w"], lp["ff2_b"].reshape(1, D),
            lp["ln1_g"].reshape(1, D), lp["ln1_b"].reshape(1, D),
            lp["ln2_g"].reshape(1, D), lp["ln2_b"].reshape(1, D),
        ]
    inputs += [params["pred1_w"], params["pred1_b"].reshape(1, D), p2_w, p2_b]

    # Every operand/output block is the full (2-D) array -> no (8,128) issues,
    # everything resident in VMEM for the single grid step.
    in_specs = [pl.BlockSpec(a.shape, lambda i: (0, 0)) for a in inputs]

    kernel = functools.partial(
        _fused_forward_kernel, B=B, S=S, D=D, Dfc=Dfc, H=nhead, nlayers=nlayers)

    logits_pad = pl.pallas_call(
        kernel,
        out_shape=jax.ShapeDtypeStruct((B, n_pad), jnp.float32),
        grid=(1,),
        in_specs=in_specs,
        out_specs=pl.BlockSpec((B, n_pad), lambda i: (0, 0)),
        compiler_params=pltpu.CompilerParams(
            dimension_semantics=("arbitrary",)),
    )(*inputs)

    return logits_pad[:, :n_spks]


# ------------------------------- parameters --------------------------------- #

def init_params(key, din, dfc, nhead, nlayers, n_spks):
    keys = iter(jax.random.split(key, 6 + nlayers * 8))

    def w(shape, scale=0.05):
        return jax.random.normal(next(keys), shape, jnp.float32) * scale

    def b(shape, scale=0.01):
        return jax.random.normal(next(keys), shape, jnp.float32) * scale

    params = {
        "prenet_w": w((40, din)),
        "prenet_b": b((din,)),
        "pred1_w": w((din, din)),
        "pred1_b": b((din,)),
        "pred2_w": w((din, n_spks)),
        "pred2_b": b((n_spks,)),
        "layers": [],
    }
    for _ in range(nlayers):
        params["layers"].append({
            "in_w": w((din, 3 * din)),      # packed qkv projection (x @ in_w)
            "in_b": b((3 * din,)),
            "out_w": w((din, din)),
            "out_b": b((din,)),
            "ff1_w": w((din, dfc)),
            "ff1_b": b((dfc,)),
            "ff2_w": w((dfc, din)),
            "ff2_b": b((din,)),
            "ln1_g": jnp.ones((din,), jnp.float32),
            "ln1_b": jnp.zeros((din,), jnp.float32),
            "ln2_g": jnp.ones((din,), jnp.float32),
            "ln2_b": jnp.zeros((din,), jnp.float32),
        })
    return params


# ---------------------------------- main ------------------------------------ #

if __name__ == "__main__":
    B, S, F = 2, 8, 40          # (batch size, length, 40)
    din, dfc, nhead, nlayers = 32, 64, 2, 2
    n_spks = 600

    key = jax.random.PRNGKey(0)
    k_x, k_p = jax.random.split(key)
    mels = jax.random.normal(k_x, (B, S, F), jnp.float32)
    params = init_params(k_p, din, dfc, nhead, nlayers, n_spks)

    # TODO(synk): dropout is eval-mode identity (matches module.eval()).
    forward = jax.jit(functools.partial(sample_classifier_forward, nhead=nhead))

    logits = forward(mels, params)
    logits = jax.block_until_ready(logits)
    assert logits.shape == (B, n_spks) and logits.dtype == jnp.float32
    assert bool(jnp.all(jnp.isfinite(logits)))
    print("KERNEL_OK")
</pallas_src>

<mosaic_0001>
module attributes {stable_mosaic.version = 11 : i64} {
  func.func @_fused_forward_kernel(%arg0: i32, %arg1: memref<16x40xf32, #tpu.memory_space<vmem>>, %arg2: memref<40x32xf32, #tpu.memory_space<vmem>>, %arg3: memref<1x32xf32, #tpu.memory_space<vmem>>, %arg4: memref<32x96xf32, #tpu.memory_space<vmem>>, %arg5: memref<1x96xf32, #tpu.memory_space<vmem>>, %arg6: memref<32x32xf32, #tpu.memory_space<vmem>>, %arg7: memref<1x32xf32, #tpu.memory_space<vmem>>, %arg8: memref<32x64xf32, #tpu.memory_space<vmem>>, %arg9: memref<1x64xf32, #tpu.memory_space<vmem>>, %arg10: memref<64x32xf32, #tpu.memory_space<vmem>>, %arg11: memref<1x32xf32, #tpu.memory_space<vmem>>, %arg12: memref<1x32xf32, #tpu.memory_space<vmem>>, %arg13: memref<1x32xf32, #tpu.memory_space<vmem>>, %arg14: memref<1x32xf32, #tpu.memory_space<vmem>>, %arg15: memref<1x32xf32, #tpu.memory_space<vmem>>, %arg16: memref<32x96xf32, #tpu.memory_space<vmem>>, %arg17: memref<1x96xf32, #tpu.memory_space<vmem>>, %arg18: memref<32x32xf32, #tpu.memory_space<vmem>>, %arg19: memref<1x32xf32, #tpu.memory_space<vmem>>, %arg20: memref<32x64xf32, #tpu.memory_space<vmem>>, %arg21: memref<1x64xf32, #tpu.memory_space<vmem>>, %arg22: memref<64x32xf32, #tpu.memory_space<vmem>>, %arg23: memref<1x32xf32, #tpu.memory_space<vmem>>, %arg24: memref<1x32xf32, #tpu.memory_space<vmem>>, %arg25: memref<1x32xf32, #tpu.memory_space<vmem>>, %arg26: memref<1x32xf32, #tpu.memory_space<vmem>>, %arg27: memref<1x32xf32, #tpu.memory_space<vmem>>, %arg28: memref<32x32xf32, #tpu.memory_space<vmem>>, %arg29: memref<1x32xf32, #tpu.memory_space<vmem>>, %arg30: memref<32x640xf32, #tpu.memory_space<vmem>>, %arg31: memref<1x640xf32, #tpu.memory_space<vmem>>, %arg32: memref<2x640xf32, #tpu.memory_space<vmem>>) attributes {dimension_semantics = [#tpu.dimension_semantics<arbitrary>], iteration_bounds = array<i64: 1>, scalar_prefetch = 0 : i64, scratch_operands = 0 : i64, tpu.core_type = #tpu.core_type<tc>, window_params = [{pipeline_mode = #tpu.pipeline_mode<synchronous>, transform_indices = @transform_0, window_bounds = array<i64: 16, 40>}, {pipeline_mode = #tpu.pipeline_mode<synchronous>, transform_indices = @transform_1, window_bounds = array<i64: 40, 32>}, {pipeline_mode = #tpu.pipeline_mode<synchronous>, transform_indices = @transform_2, window_bounds = array<i64: 1, 32>}, {pipeline_mode = #tpu.pipeline_mode<synchronous>, transform_indices = @transform_3, window_bounds = array<i64: 32, 96>}, {pipeline_mode = #tpu.pipeline_mode<synchronous>, transform_indices = @transform_4, window_bounds = array<i64: 1, 96>}, {pipeline_mode = #tpu.pipeline_mode<synchronous>, transform_indices = @transform_5, window_bounds = array<i64: 32, 32>}, {pipeline_mode = #tpu.pipeline_mode<synchronous>, transform_indices = @transform_6, window_bounds = array<i64: 1, 32>}, {pipeline_mode = #tpu.pipeline_mode<synchronous>, transform_indices = @transform_7, window_bounds = array<i64: 32, 64>}, {pipeline_mode = #tpu.pipeline_mode<synchronous>, transform_indices = @transform_8, window_bounds = array<i64: 1, 64>}, {pipeline_mode = #tpu.pipeline_mode<synchronous>, transform_indices = @transform_9, window_bounds = array<i64: 64, 32>}, {pipeline_mode = #tpu.pipeline_mode<synchronous>, transform_indices = @transform_10, window_bounds = array<i64: 1, 32>}, {pipeline_mode = #tpu.pipeline_mode<synchronous>, transform_indices = @transform_11, window_bounds = array<i64: 1, 32>}, {pipeline_mode = #tpu.pipeline_mode<synchronous>, transform_indices = @transform_12, window_bounds = array<i64: 1, 32>}, {pipeline_mode = #tpu.pipeline_mode<synchronous>, transform_indices = @transform_13, window_bounds = array<i64: 1, 32>}, {pipeline_mode = #tpu.pipeline_mode<synchronous>, transform_indices = @transform_14, window_bounds = array<i64: 1, 32>}, {pipeline_mode = #tpu.pipeline_mode<synchronous>, transform_indices = @transform_15, window_bounds = array<i64: 32, 96>}, {pipeline_mode = #tpu.pipeline_mode<synchronous>, transform_indices = @transform_16, window_bounds = array<i64: 1, 96>}, {pipeline_mode = #tpu.pipeline_mode<synchronous>, transform_indices = @transform_17, window_bounds = array<i64: 32, 32>}, {pipeline_mode = #tpu.pipeline_mode<synchronous>, transform_indices = @transform_18, window_bounds = array<i64: 1, 32>}, {pipeline_mode = #tpu.pipeline_mode<synchronous>, transform_indices = @transform_19, window_bounds = array<i64: 32, 64>}, {pipeline_mode = #tpu.pipeline_mode<synchronous>, transform_indices = @transform_20, window_bounds = array<i64: 1, 64>}, {pipeline_mode = #tpu.pipeline_mode<synchronous>, transform_indices = @transform_21, window_bounds = array<i64: 64, 32>}, {pipeline_mode = #tpu.pipeline_mode<synchronous>, transform_indices = @transform_22, window_bounds = array<i64: 1, 32>}, {pipeline_mode = #tpu.pipeline_mode<synchronous>, transform_indices = @transform_23, window_bounds = array<i64: 1, 32>}, {pipeline_mode = #tpu.pipeline_mode<synchronous>, transform_indices = @transform_24, window_bounds = array<i64: 1, 32>}, {pipeline_mode = #tpu.pipeline_mode<synchronous>, transform_indices = @transform_25, window_bounds = array<i64: 1, 32>}, {pipeline_mode = #tpu.pipeline_mode<synchronous>, transform_indices = @transform_26, window_bounds = array<i64: 1, 32>}, {pipeline_mode = #tpu.pipeline_mode<synchronous>, transform_indices = @transform_27, window_bounds = array<i64: 32, 32>}, {pipeline_mode = #tpu.pipeline_mode<synchronous>, transform_indices = @transform_28, window_bounds = array<i64: 1, 32>}, {pipeline_mode = #tpu.pipeline_mode<synchronous>, transform_indices = @transform_29, window_bounds = array<i64: 32, 640>}, {pipeline_mode = #tpu.pipeline_mode<synchronous>, transform_indices = @transform_30, window_bounds = array<i64: 1, 640>}, {pipeline_mode = #tpu.pipeline_mode<synchronous>, transform_indices = @transform_31, window_bounds = array<i64: 2, 640>}]} {
    %c0 = arith.constant 0 : index
    %c0_0 = arith.constant 0 : index
    %0 = vector.load %arg1[%c0, %c0_0] : memref<16x40xf32, #tpu.memory_space<vmem>>, vector<16x40xf32>
    %c0_1 = arith.constant 0 : index
    %c0_2 = arith.constant 0 : index
    %1 = vector.load %arg2[%c0_1, %c0_2] : memref<40x32xf32, #tpu.memory_space<vmem>>, vector<40x32xf32>
    %c0_3 = arith.constant 0 : index
    %c0_4 = arith.constant 0 : index
    %2 = vector.load %arg3[%c0_3, %c0_4] : memref<1x32xf32, #tpu.memory_space<vmem>>, vector<1x32xf32>
    %cst = arith.constant dense<0.000000e+00> : vector<16x32xf32>
    %3 = tpu.matmul %0, %1, %cst {dimension_numbers = #tpu.dot_dimension_numbers<[1], [0], [0], [1], [0, 0, 1, 1], [], []>} : vector<16x40xf32>, vector<40x32xf32>, vector<16x32xf32> -> vector<16x32xf32>
    %4 = vector.broadcast %2 : vector<1x32xf32> to vector<16x32xf32>
    %5 = arith.addf %3, %4 : vector<16x32xf32>
    %c0_5 = arith.constant 0 : index
    %c0_6 = arith.constant 0 : index
    %6 = vector.load %arg4[%c0_5, %c0_6] : memref<32x96xf32, #tpu.memory_space<vmem>>, vector<32x96xf32>
    %c0_7 = arith.constant 0 : index
    %c0_8 = arith.constant 0 : index
    %7 = vector.load %arg5[%c0_7, %c0_8] : memref<1x96xf32, #tpu.memory_space<vmem>>, vector<1x96xf32>
    %c0_9 = arith.constant 0 : index
    %c0_10 = arith.constant 0 : index
    %8 = vector.load %arg6[%c0_9, %c0_10] : memref<32x32xf32, #tpu.memory_space<vmem>>, vector<32x32xf32>
    %c0_11 = arith.constant 0 : index
    %c0_12 = arith.constant 0 : index
    %9 = vector.load %arg7[%c0_11, %c0_12] : memref<1x32xf32, #tpu.memory_space<vmem>>, vector<1x32xf32>
    %c0_13 = arith.constant 0 : index
    %c0_14 = arith.constant 0 : index
    %10 = vector.load %arg8[%c0_13, %c0_14] : memref<32x64xf32, #tpu.memory_space<vmem>>, vector<32x64xf32>
    %c0_15 = arith.constant 0 : index
    %c0_16 = arith.constant 0 : index
    %11 = vector.load %arg9[%c0_15, %c0_16] : memref<1x64xf32, #tpu.memory_space<vmem>>, vector<1x64xf32>
    %c0_17 = arith.constant 0 : index
    %c0_18 = arith.constant 0 : index
    %12 = vector.load %arg10[%c0_17, %c0_18] : memref<64x32xf32, #tpu.memory_space<vmem>>, vector<64x32xf32>
    %c0_19 = arith.constant 0 : index
    %c0_20 = arith.constant 0 : index
    %13 = vector.load %arg11[%c0_19, %c0_20] : memref<1x32xf32, #tpu.memory_space<vmem>>, vector<1x32xf32>
    %c0_21 = arith.constant 0 : index
    %c0_22 = arith.constant 0 : index
    %14 = vector.load %arg12[%c0_21, %c0_22] : memref<1x32xf32, #tpu.memory_space<vmem>>, vector<1x32xf32>
    %c0_23 = arith.constant 0 : index
    %c0_24 = arith.constant 0 : index
    %15 = vector.load %arg13[%c0_23, %c0_24] : memref<1x32xf32, #tpu.memory_space<vmem>>, vector<1x32xf32>
    %c0_25 = arith.constant 0 : index
    %c0_26 = arith.constant 0 : index
    %16 = vector.load %arg14[%c0_25, %c0_26] : memref<1x32xf32, #tpu.memory_space<vmem>>, vector<1x32xf32>
    %c0_27 = arith.constant 0 : index
    %c0_28 = arith.constant 0 : index
    %17 = vector.load %arg15[%c0_27, %c0_28] : memref<1x32xf32, #tpu.memory_space<vmem>>, vector<1x32xf32>
    %cst_29 = arith.constant dense<0.000000e+00> : vector<16x96xf32>
    %18 = tpu.matmul %5, %6, %cst_29 {dimension_numbers = #tpu.dot_dimension_numbers<[1], [0], [0], [1], [0, 0, 1, 1], [], []>} : vector<16x32xf32>, vector<32x96xf32>, vector<16x96xf32> -> vector<16x96xf32>
    %19 = vector.broadcast %7 : vector<1x96xf32> to vector<16x96xf32>
    %20 = arith.addf %18, %19 : vector<16x96xf32>
    %21 = vector.extract_strided_slice %20 {offsets = [0, 0], sizes = [16, 32], strides = [1, 1]} : vector<16x96xf32> to vector<16x32xf32>
    %22 = vector.shape_cast %21 : vector<16x32xf32> to vector<2x8x32xf32>
    %23 = vector.extract_strided_slice %20 {offsets = [0, 32], sizes = [16, 32], strides = [1, 1]} : vector<16x96xf32> to vector<16x32xf32>
    %24 = vector.shape_cast %23 : vector<16x32xf32> to vector<2x8x32xf32>
    %25 = vector.extract_strided_slice %20 {offsets = [0, 64], sizes = [16, 32], strides = [1, 1]} : vector<16x96xf32> to vector<16x32xf32>
    %26 = vector.shape_cast %25 : vector<16x32xf32> to vector<2x8x32xf32>
    %cst_30 = arith.constant 0.000000e+00 : f32
    %27 = vector.broadcast %cst_30 : f32 to vector<16x32xf32>
    %28 = vector.extract_strided_slice %22 {offsets = [0, 0, 0], sizes = [2, 8, 16], strides = [1, 1, 1]} : vector<2x8x32xf32> to vector<2x8x16xf32>
    %29 = vector.extract_strided_slice %24 {offsets = [0, 0, 0], sizes = [2, 8, 16], strides = [1, 1, 1]} : vector<2x8x32xf32> to vector<2x8x16xf32>
    %30 = vector.extract_strided_slice %26 {offsets = [0, 0, 0], sizes = [2, 8, 16], strides = [1, 1, 1]} : vector<2x8x32xf32> to vector<2x8x16xf32>
    "tpu.trace_start"() <{level = 10 : i32, message = "bqd,bkd->bqk"}> : () -> ()
    %cst_31 = arith.constant dense<0.000000e+00> : vector<2x8x8xf32>
    %31 = tpu.matmul %28, %29, %cst_31 {dimension_numbers = #tpu.dot_dimension_numbers<[2], [2], [1], [1], [0, 0, 0, 1, 1, 1], [0], [0]>} : vector<2x8x16xf32>, vector<2x8x16xf32>, vector<2x8x8xf32> -> vector<2x8x8xf32>
    "tpu.trace_stop"() : () -> ()
    %cst_32 = arith.constant 2.500000e-01 : f32
    %32 = vector.broadcast %cst_32 : f32 to vector<2x8x8xf32>
    %33 = arith.mulf %31, %32 : vector<2x8x8xf32>
    %cst_33 = arith.constant dense<0xFF800000> : vector<2x8xf32>
    %34 = vector.multi_reduction <maximumf>, %33, %cst_33 [2] : vector<2x8x8xf32> to vector<2x8xf32>
    %35 = vector.shape_cast %34 : vector<2x8xf32> to vector<2x8x1xf32>
    %36 = vector.broadcast %35 : vector<2x8x1xf32> to vector<2x8x8xf32>
    %37 = arith.subf %33, %36 : vector<2x8x8xf32>
    %38 = math.exp %37 : vector<2x8x8xf32>
    %cst_34 = arith.constant dense<0.000000e+00> : vector<2x8xf32>
    %39 = vector.multi_reduction <add>, %38, %cst_34 [2] : vector<2x8x8xf32> to vector<2x8xf32>
    %40 = vector.shape_cast %39 : vector<2x8xf32> to vector<2x8x1xf32>
    %41 = vector.broadcast %40 : vector<2x8x1xf32> to vector<2x8x8xf32>
    %42 = arith.divf %38, %41 : vector<2x8x8xf32>
    "tpu.trace_start"() <{level = 10 : i32, message = "bqk,bkd->bqd"}> : () -> ()
    %cst_35 = arith.constant dense<0.000000e+00> : vector<2x8x16xf32>
    %43 = tpu.matmul %42, %30, %cst_35 {dimension_numbers = #tpu.dot_dimension_numbers<[2], [1], [1], [2], [0, 0, 0, 1, 1, 2], [0], [0]>} : vector<2x8x8xf32>, vector<2x8x16xf32>, vector<2x8x16xf32> -> vector<2x8x16xf32>
    "tpu.trace_stop"() : () -> ()
    %44 = vector.shape_cast %43 : vector<2x8x16xf32> to vector<16x16xf32>
    %45 = vector.extract_strided_slice %8 {offsets = [0, 0], sizes = [16, 32], strides = [1, 1]} : vector<32x32xf32> to vector<16x32xf32>
    %cst_36 = arith.constant dense<0.000000e+00> : vector<16x32xf32>
    %46 = tpu.matmul %44, %45, %cst_36 {dimension_numbers = #tpu.dot_dimension_numbers<[1], [0], [0], [1], [0, 0, 1, 1], [], []>} : vector<16x16xf32>, vector<16x32xf32>, vector<16x32xf32> -> vector<16x32xf32>
    %47 = arith.addf %27, %46 : vector<16x32xf32>
    %48 = vector.extract_strided_slice %22 {offsets = [0, 0, 16], sizes = [2, 8, 16], strides = [1, 1, 1]} : vector<2x8x32xf32> to vector<2x8x16xf32>
    %49 = vector.extract_strided_slice %24 {offsets = [0, 0, 16], sizes = [2, 8, 16], strides = [1, 1, 1]} : vector<2x8x32xf32> to vector<2x8x16xf32>
    %50 = vector.extract_strided_slice %26 {offsets = [0, 0, 16], sizes = [2, 8, 16], strides = [1, 1, 1]} : vector<2x8x32xf32> to vector<2x8x16xf32>
    "tpu.trace_start"() <{level = 10 : i32, message = "bqd,bkd->bqk"}> : () -> ()
    %cst_37 = arith.constant dense<0.000000e+00> : vector<2x8x8xf32>
    %51 = tpu.matmul %48, %49, %cst_37 {dimension_numbers = #tpu.dot_dimension_numbers<[2], [2], [1], [1], [0, 0, 0, 1, 1, 1], [0], [0]>} : vector<2x8x16xf32>, vector<2x8x16xf32>, vector<2x8x8xf32> -> vector<2x8x8xf32>
    "tpu.trace_stop"() : () -> ()
    %cst_38 = arith.constant 2.500000e-01 : f32
    %52 = vector.broadcast %cst_38 : f32 to vector<2x8x8xf32>
    %53 = arith.mulf %51, %52 : vector<2x8x8xf32>
    %cst_39 = arith.constant dense<0xFF800000> : vector<2x8xf32>
    %54 = vector.multi_reduction <maximumf>, %53, %cst_39 [2] : vector<2x8x8xf32> to vector<2x8xf32>
    %55 = vector.shape_cast %54 : vector<2x8xf32> to vector<2x8x1xf32>
    %56 = vector.broadcast %55 : vector<2x8x1xf32> to vector<2x8x8xf32>
    %57 = arith.subf %53, %56 : vector<2x8x8xf32>
    %58 = math.exp %57 : vector<2x8x8xf32>
    %cst_40 = arith.constant dense<0.000000e+00> : vector<2x8xf32>
    %59 = vector.multi_reduction <add>, %58, %cst_40 [2] : vector<2x8x8xf32> to vector<2x8xf32>
    %60 = vector.shape_cast %59 : vector<2x8xf32> to vector<2x8x1xf32>
    %61 = vector.broadcast %60 : vector<2x8x1xf32> to vector<2x8x8xf32>
    %62 = arith.divf %58, %61 : vector<2x8x8xf32>
    "tpu.trace_start"() <{level = 10 : i32, message = "bqk,bkd->bqd"}> : () -> ()
    %cst_41 = arith.constant dense<0.000000e+00> : vector<2x8x16xf32>
    %63 = tpu.matmul %62, %50, %cst_41 {dimension_numbers = #tpu.dot_dimension_numbers<[2], [1], [1], [2], [0, 0, 0, 1, 1, 2], [0], [0]>} : vector<2x8x8xf32>, vector<2x8x16xf32>, vector<2x8x16xf32> -> vector<2x8x16xf32>
    "tpu.trace_stop"() : () -> ()
    %64 = vector.shape_cast %63 : vector<2x8x16xf32> to vector<16x16xf32>
    %65 = vector.extract_strided_slice %8 {offsets = [16, 0], sizes = [16, 32], strides = [1, 1]} : vector<32x32xf32> to vector<16x32xf32>
    %cst_42 = arith.constant dense<0.000000e+00> : vector<16x32xf32>
    %66 = tpu.matmul %64, %65, %cst_42 {dimension_numbers = #tpu.dot_dimension_numbers<[1], [0], [0], [1], [0, 0, 1, 1], [], []>} : vector<16x16xf32>, vector<16x32xf32>, vector<16x32xf32> -> vector<16x32xf32>
    %67 = arith.addf %47, %66 : vector<16x32xf32>
    %68 = vector.broadcast %9 : vector<1x32xf32> to vector<16x32xf32>
    %69 = arith.addf %67, %68 : vector<16x32xf32>
    %70 = arith.addf %5, %69 : vector<16x32xf32>
    %cst_43 = arith.constant dense<0.000000e+00> : vector<16xf32>
    %71 = vector.multi_reduction <add>, %70, %cst_43 [1] : vector<16x32xf32> to vector<16xf32>
    %72 = vector.shape_cast %71 : vector<16xf32> to vector<16x1xf32>
    %cst_44 = arith.constant 3.200000e+01 : f32
    %73 = vector.broadcast %cst_44 : f32 to vector<16x1xf32>
    %74 = arith.divf %72, %73 : vector<16x1xf32>
    %75 = vector.broadcast %74 : vector<16x1xf32> to vector<16x32xf32>
    %76 = arith.subf %70, %75 : vector<16x32xf32>
    %77 = arith.mulf %76, %76 : vector<16x32xf32>
    %cst_45 = arith.constant dense<0.000000e+00> : vector<16xf32>
    %78 = vector.multi_reduction <add>, %77, %cst_45 [1] : vector<16x32xf32> to vector<16xf32>
    %79 = vector.shape_cast %78 : vector<16xf32> to vector<16x1xf32>
    %cst_46 = arith.constant 3.200000e+01 : f32
    %80 = vector.broadcast %cst_46 : f32 to vector<16x1xf32>
    %81 = arith.divf %79, %80 : vector<16x1xf32>
    %82 = vector.broadcast %74 : vector<16x1xf32> to vector<16x32xf32>
    %83 = arith.subf %70, %82 : vector<16x32xf32>
    %cst_47 = arith.constant 9.99999974E-6 : f32
    %84 = vector.broadcast %cst_47 : f32 to vector<16x1xf32>
    %85 = arith.addf %81, %84 : vector<16x1xf32>
    %86 = math.rsqrt %85 : vector<16x1xf32>
    %87 = vector.broadcast %86 : vector<16x1xf32> to vector<16x32xf32>
    %88 = arith.mulf %83, %87 : vector<16x32xf32>
    %89 = vector.broadcast %14 : vector<1x32xf32> to vector<16x32xf32>
    %90 = arith.mulf %88, %89 : vector<16x32xf32>
    %91 = vector.broadcast %15 : vector<1x32xf32> to vector<16x32xf32>
    %92 = arith.addf %90, %91 : vector<16x32xf32>
    %cst_48 = arith.constant dense<0.000000e+00> : vector<16x64xf32>
    %93 = tpu.matmul %92, %10, %cst_48 {dimension_numbers = #tpu.dot_dimension_numbers<[1], [0], [0], [1], [0, 0, 1, 1], [], []>} : vector<16x32xf32>, vector<32x64xf32>, vector<16x64xf32> -> vector<16x64xf32>
    %94 = vector.broadcast %11 : vector<1x64xf32> to vector<16x64xf32>
    %95 = arith.addf %93, %94 : vector<16x64xf32>
    %cst_49 = arith.constant 0.000000e+00 : f32
    %96 = vector.broadcast %cst_49 : f32 to vector<16x64xf32>
    %97 = arith.maximumf %95, %96 : vector<16x64xf32>
    %cst_50 = arith.constant dense<0.000000e+00> : vector<16x32xf32>
    %98 = tpu.matmul %97, %12, %cst_50 {dimension_numbers = #tpu.dot_dimension_numbers<[1], [0], [0], [1], [0, 0, 1, 1], [], []>} : vector<16x64xf32>, vector<64x32xf32>, vector<16x32xf32> -> vector<16x32xf32>
    %99 = vector.broadcast %13 : vector<1x32xf32> to vector<16x32xf32>
    %100 = arith.addf %98, %99 : vector<16x32xf32>
    %101 = arith.addf %92, %100 : vector<16x32xf32>
    %cst_51 = arith.constant dense<0.000000e+00> : vector<16xf32>
    %102 = vector.multi_reduction <add>, %101, %cst_51 [1] : vector<16x32xf32> to vector<16xf32>
    %103 = vector.shape_cast %102 : vector<16xf32> to vector<16x1xf32>
    %cst_52 = arith.constant 3.200000e+01 : f32
    %104 = vector.broadcast %cst_52 : f32 to vector<16x1xf32>
    %105 = arith.divf %103, %104 : vector<16x1xf32>
    %106 = vector.broadcast %105 : vector<16x1xf32> to vector<16x32xf32>
    %107 = arith.subf %101, %106 : vector<16x32xf32>
    %108 = arith.mulf %107, %107 : vector<16x32xf32>
    %cst_53 = arith.constant dense<0.000000e+00> : vector<16xf32>
    %109 = vector.multi_reduction <add>, %108, %cst_53 [1] : vector<16x32xf32> to vector<16xf32>
    %110 = vector.shape_cast %109 : vector<16xf32> to vector<16x1xf32>
    %cst_54 = arith.constant 3.200000e+01 : f32
    %111 = vector.broadcast %cst_54 : f32 to vector<16x1xf32>
    %112 = arith.divf %110, %111 : vector<16x1xf32>
    %113 = vector.broadcast %105 : vector<16x1xf32> to vector<16x32xf32>
    %114 = arith.subf %101, %113 : vector<16x32xf32>
    %cst_55 = arith.constant 9.99999974E-6 : f32
    %115 = vector.broadcast %cst_55 : f32 to vector<16x1xf32>
    %116 = arith.addf %112, %115 : vector<16x1xf32>
    %117 = math.rsqrt %116 : vector<16x1xf32>
    %118 = vector.broadcast %117 : vector<16x1xf32> to vector<16x32xf32>
    %119 = arith.mulf %114, %118 : vector<16x32xf32>
    %120 = vector.broadcast %16 : vector<1x32xf32> to vector<16x32xf32>
    %121 = arith.mulf %119, %120 : vector<16x32xf32>
    %122 = vector.broadcast %17 : vector<1x32xf32> to vector<16x32xf32>
    %123 = arith.addf %121, %122 : vector<16x32xf32>
    %c0_56 = arith.constant 0 : index
    %c0_57 = arith.constant 0 : index
    %124 = vector.load %arg16[%c0_56, %c0_57] : memref<32x96xf32, #tpu.memory_space<vmem>>, vector<32x96xf32>
    %c0_58 = arith.constant 0 : index
    %c0_59 = arith.constant 0 : index
    %125 = vector.load %arg17[%c0_58, %c0_59] : memref<1x96xf32, #tpu.memory_space<vmem>>, vector<1x96xf32>
    %c0_60 = arith.constant 0 : index
    %c0_61 = arith.constant 0 : index
    %126 = vector.load %arg18[%c0_60, %c0_61] : memref<32x32xf32, #tpu.memory_space<vmem>>, vector<32x32xf32>
    %c0_62 = arith.constant 0 : index
    %c0_63 = arith.constant 0 : index
    %127 = vector.load %arg19[%c0_62, %c0_63] : memref<1x32xf32, #tpu.memory_space<vmem>>, vector<1x32xf32>
    %c0_64 = arith.constant 0 : index
    %c0_65 = arith.constant 0 : index
    %128 = vector.load %arg20[%c0_64, %c0_65] : memref<32x64xf32, #tpu.memory_space<vmem>>, vector<32x64xf32>
    %c0_66 = arith.constant 0 : index
    %c0_67 = arith.constant 0 : index
    %129 = vector.load %arg21[%c0_66, %c0_67] : memref<1x64xf32, #tpu.memory_space<vmem>>, vector<1x64xf32>
    %c0_68 = arith.constant 0 : index
    %c0_69 = arith.constant 0 : index
    %130 = vector.load %arg22[%c0_68, %c0_69] : memref<64x32xf32, #tpu.memory_space<vmem>>, vector<64x32xf32>
    %c0_70 = arith.constant 0 : index
    %c0_71 = arith.constant 0 : index
    %131 = vector.load %arg23[%c0_70, %c0_71] : memref<1x32xf32, #tpu.memory_space<vmem>>, vector<1x32xf32>
    %c0_72 = arith.constant 0 : index
    %c0_73 = arith.constant 0 : index
    %132 = vector.load %arg24[%c0_72, %c0_73] : memref<1x32xf32, #tpu.memory_space<vmem>>, vector<1x32xf32>
    %c0_74 = arith.constant 0 : index
    %c0_75 = arith.constant 0 : index
    %133 = vector.load %arg25[%c0_74, %c0_75] : memref<1x32xf32, #tpu.memory_space<vmem>>, vector<1x32xf32>
    %c0_76 = arith.constant 0 : index
    %c0_77 = arith.constant 0 : index
    %134 = vector.load %arg26[%c0_76, %c0_77] : memref<1x32xf32, #tpu.memory_space<vmem>>, vector<1x32xf32>
    %c0_78 = arith.constant 0 : index
    %c0_79 = arith.constant 0 : index
    %135 = vector.load %arg27[%c0_78, %c0_79] : memref<1x32xf32, #tpu.memory_space<vmem>>, vector<1x32xf32>
    %cst_80 = arith.constant dense<0.000000e+00> : vector<16x96xf32>
    %136 = tpu.matmul %123, %124, %cst_80 {dimension_numbers = #tpu.dot_dimension_numbers<[1], [0], [0], [1], [0, 0, 1, 1], [], []>} : vector<16x32xf32>, vector<32x96xf32>, vector<16x96xf32> -> vector<16x96xf32>
    %137 = vector.broadcast %125 : vector<1x96xf32> to vector<16x96xf32>
    %138 = arith.addf %136, %137 : vector<16x96xf32>
    %139 = vector.extract_strided_slice %138 {offsets = [0, 0], sizes = [16, 32], strides = [1, 1]} : vector<16x96xf32> to vector<16x32xf32>
    %140 = vector.shape_cast %139 : vector<16x32xf32> to vector<2x8x32xf32>
    %141 = vector.extract_strided_slice %138 {offsets = [0, 32], sizes = [16, 32], strides = [1, 1]} : vector<16x96xf32> to vector<16x32xf32>
    %142 = vector.shape_cast %141 : vector<16x32xf32> to vector<2x8x32xf32>
    %143 = vector.extract_strided_slice %138 {offsets = [0, 64], sizes = [16, 32], strides = [1, 1]} : vector<16x96xf32> to vector<16x32xf32>
    %144 = vector.shape_cast %143 : vector<16x32xf32> to vector<2x8x32xf32>
    %cst_81 = arith.constant 0.000000e+00 : f32
    %145 = vector.broadcast %cst_81 : f32 to vector<16x32xf32>
    %146 = vector.extract_strided_slice %140 {offsets = [0, 0, 0], sizes = [2, 8, 16], strides = [1, 1, 1]} : vector<2x8x32xf32> to vector<2x8x16xf32>
    %147 = vector.extract_strided_slice %142 {offsets = [0, 0, 0], sizes = [2, 8, 16], strides = [1, 1, 1]} : vector<2x8x32xf32> to vector<2x8x16xf32>
    %148 = vector.extract_strided_slice %144 {offsets = [0, 0, 0], sizes = [2, 8, 16], strides = [1, 1, 1]} : vector<2x8x32xf32> to vector<2x8x16xf32>
    "tpu.trace_start"() <{level = 10 : i32, message = "bqd,bkd->bqk"}> : () -> ()
    %cst_82 = arith.constant dense<0.000000e+00> : vector<2x8x8xf32>
    %149 = tpu.matmul %146, %147, %cst_82 {dimension_numbers = #tpu.dot_dimension_numbers<[2], [2], [1], [1], [0, 0, 0, 1, 1, 1], [0], [0]>} : vector<2x8x16xf32>, vector<2x8x16xf32>, vector<2x8x8xf32> -> vector<2x8x8xf32>
    "tpu.trace_stop"() : () -> ()
    %cst_83 = arith.constant 2.500000e-01 : f32
    %150 = vector.broadcast %cst_83 : f32 to vector<2x8x8xf32>
    %151 = arith.mulf %149, %150 : vector<2x8x8xf32>
    %cst_84 = arith.constant dense<0xFF800000> : vector<2x8xf32>
    %152 = vector.multi_reduction <maximumf>, %151, %cst_84 [2] : vector<2x8x8xf32> to vector<2x8xf32>
    %153 = vector.shape_cast %152 : vector<2x8xf32> to vector<2x8x1xf32>
    %154 = vector.broadcast %153 : vector<2x8x1xf32> to vector<2x8x8xf32>
    %155 = arith.subf %151, %154 : vector<2x8x8xf32>
    %156 = math.exp %155 : vector<2x8x8xf32>
    %cst_85 = arith.constant dense<0.000000e+00> : vector<2x8xf32>
    %157 = vector.multi_reduction <add>, %156, %cst_85 [2] : vector<2x8x8xf32> to vector<2x8xf32>
    %158 = vector.shape_cast %157 : vector<2x8xf32> to vector<2x8x1xf32>
    %159 = vector.broadcast %158 : vector<2x8x1xf32> to vector<2x8x8xf32>
    %160 = arith.divf %156, %159 : vector<2x8x8xf32>
    "tpu.trace_start"() <{level = 10 : i32, message = "bqk,bkd->bqd"}> : () -> ()
    %cst_86 = arith.constant dense<0.000000e+00> : vector<2x8x16xf32>
    %161 = tpu.matmul %160, %148, %cst_86 {dimension_numbers = #tpu.dot_dimension_numbers<[2], [1], [1], [2], [0, 0, 0, 1, 1, 2], [0], [0]>} : vector<2x8x8xf32>, vector<2x8x16xf32>, vector<2x8x16xf32> -> vector<2x8x16xf32>
    "tpu.trace_stop"() : () -> ()
    %162 = vector.shape_cast %161 : vector<2x8x16xf32> to vector<16x16xf32>
    %163 = vector.extract_strided_slice %126 {offsets = [0, 0], sizes = [16, 32], strides = [1, 1]} : vector<32x32xf32> to vector<16x32xf32>
    %cst_87 = arith.constant dense<0.000000e+00> : vector<16x32xf32>
    %164 = tpu.matmul %162, %163, %cst_87 {dimension_numbers = #tpu.dot_dimension_numbers<[1], [0], [0], [1], [0, 0, 1, 1], [], []>} : vector<16x16xf32>, vector<16x32xf32>, vector<16x32xf32> -> vector<16x32xf32>
    %165 = arith.addf %145, %164 : vector<16x32xf32>
    %166 = vector.extract_strided_slice %140 {offsets = [0, 0, 16], sizes = [2, 8, 16], strides = [1, 1, 1]} : vector<2x8x32xf32> to vector<2x8x16xf32>
    %167 = vector.extract_strided_slice %142 {offsets = [0, 0, 16], sizes = [2, 8, 16], strides = [1, 1, 1]} : vector<2x8x32xf32> to vector<2x8x16xf32>
    %168 = vector.extract_strided_slice %144 {offsets = [0, 0, 16], sizes = [2, 8, 16], strides = [1, 1, 1]} : vector<2x8x32xf32> to vector<2x8x16xf32>
    "tpu.trace_start"() <{level = 10 : i32, message = "bqd,bkd->bqk"}> : () -> ()
    %cst_88 = arith.constant dense<0.000000e+00> : vector<2x8x8xf32>
    %169 = tpu.matmul %166, %167, %cst_88 {dimension_numbers = #tpu.dot_dimension_numbers<[2], [2], [1], [1], [0, 0, 0, 1, 1, 1], [0], [0]>} : vector<2x8x16xf32>, vector<2x8x16xf32>, vector<2x8x8xf32> -> vector<2x8x8xf32>
    "tpu.trace_stop"() : () -> ()
    %cst_89 = arith.constant 2.500000e-01 : f32
    %170 = vector.broadcast %cst_89 : f32 to vector<2x8x8xf32>
    %171 = arith.mulf %169, %170 : vector<2x8x8xf32>
    %cst_90 = arith.constant dense<0xFF800000> : vector<2x8xf32>
    %172 = vector.multi_reduction <maximumf>, %171, %cst_90 [2] : vector<2x8x8xf32> to vector<2x8xf32>
    %173 = vector.shape_cast %172 : vector<2x8xf32> to vector<2x8x1xf32>
    %174 = vector.broadcast %173 : vector<2x8x1xf32> to vector<2x8x8xf32>
    %175 = arith.subf %171, %174 : vector<2x8x8xf32>
    %176 = math.exp %175 : vector<2x8x8xf32>
    %cst_91 = arith.constant dense<0.000000e+00> : vector<2x8xf32>
    %177 = vector.multi_reduction <add>, %176, %cst_91 [2] : vector<2x8x8xf32> to vector<2x8xf32>
    %178 = vector.shape_cast %177 : vector<2x8xf32> to vector<2x8x1xf32>
    %179 = vector.broadcast %178 : vector<2x8x1xf32> to vector<2x8x8xf32>
    %180 = arith.divf %176, %179 : vector<2x8x8xf32>
    "tpu.trace_start"() <{level = 10 : i32, message = "bqk,bkd->bqd"}> : () -> ()
    %cst_92 = arith.constant dense<0.000000e+00> : vector<2x8x16xf32>
    %181 = tpu.matmul %180, %168, %cst_92 {dimension_numbers = #tpu.dot_dimension_numbers<[2], [1], [1], [2], [0, 0, 0, 1, 1, 2], [0], [0]>} : vector<2x8x8xf32>, vector<2x8x16xf32>, vector<2x8x16xf32> -> vector<2x8x16xf32>
    "tpu.trace_stop"() : () -> ()
    %182 = vector.shape_cast %181 : vector<2x8x16xf32> to vector<16x16xf32>
    %183 = vector.extract_strided_slice %126 {offsets = [16, 0], sizes = [16, 32], strides = [1, 1]} : vector<32x32xf32> to vector<16x32xf32>
    %cst_93 = arith.constant dense<0.000000e+00> : vector<16x32xf32>
    %184 = tpu.matmul %182, %183, %cst_93 {dimension_numbers = #tpu.dot_dimension_numbers<[1], [0], [0], [1], [0, 0, 1, 1], [], []>} : vector<16x16xf32>, vector<16x32xf32>, vector<16x32xf32> -> vector<16x32xf32>
    %185 = arith.addf %165, %184 : vector<16x32xf32>
    %186 = vector.broadcast %127 : vector<1x32xf32> to vector<16x32xf32>
    %187 = arith.addf %185, %186 : vector<16x32xf32>
    %188 = arith.addf %123, %187 : vector<16x32xf32>
    %cst_94 = arith.constant dense<0.000000e+00> : vector<16xf32>
    %189 = vector.multi_reduction <add>, %188, %cst_94 [1] : vector<16x32xf32> to vector<16xf32>
    %190 = vector.shape_cast %189 : vector<16xf32> to vector<16x1xf32>
    %cst_95 = arith.constant 3.200000e+01 : f32
    %191 = vector.broadcast %cst_95 : f32 to vector<16x1xf32>
    %192 = arith.divf %190, %191 : vector<16x1xf32>
    %193 = vector.broadcast %192 : vector<16x1xf32> to vector<16x32xf32>
    %194 = arith.subf %188, %193 : vector<16x32xf32>
    %195 = arith.mulf %194, %194 : vector<16x32xf32>
    %cst_96 = arith.constant dense<0.000000e+00> : vector<16xf32>
    %196 = vector.multi_reduction <add>, %195, %cst_96 [1] : vector<16x32xf32> to vector<16xf32>
    %197 = vector.shape_cast %196 : vector<16xf32> to vector<16x1xf32>
    %cst_97 = arith.constant 3.200000e+01 : f32
    %198 = vector.broadcast %cst_97 : f32 to vector<16x1xf32>
    %199 = arith.divf %197, %198 : vector<16x1xf32>
    %200 = vector.broadcast %192 : vector<16x1xf32> to vector<16x32xf32>
    %201 = arith.subf %188, %200 : vector<16x32xf32>
    %cst_98 = arith.constant 9.99999974E-6 : f32
    %202 = vector.broadcast %cst_98 : f32 to vector<16x1xf32>
    %203 = arith.addf %199, %202 : vector<16x1xf32>
    %204 = math.rsqrt %203 : vector<16x1xf32>
    %205 = vector.broadcast %204 : vector<16x1xf32> to vector<16x32xf32>
    %206 = arith.mulf %201, %205 : vector<16x32xf32>
    %207 = vector.broadcast %132 : vector<1x32xf32> to vector<16x32xf32>
    %208 = arith.mulf %206, %207 : vector<16x32xf32>
    %209 = vector.broadcast %133 : vector<1x32xf32> to vector<16x32xf32>
    %210 = arith.addf %208, %209 : vector<16x32xf32>
    %cst_99 = arith.constant dense<0.000000e+00> : vector<16x64xf32>
    %211 = tpu.matmul %210, %128, %cst_99 {dimension_numbers = #tpu.dot_dimension_numbers<[1], [0], [0], [1], [0, 0, 1, 1], [], []>} : vector<16x32xf32>, vector<32x64xf32>, vector<16x64xf32> -> vector<16x64xf32>
    %212 = vector.broadcast %129 : vector<1x64xf32> to vector<16x64xf32>
    %213 = arith.addf %211, %212 : vector<16x64xf32>
    %cst_100 = arith.constant 0.000000e+00 : f32
    %214 = vector.broadcast %cst_100 : f32 to vector<16x64xf32>
    %215 = arith.maximumf %213, %214 : vector<16x64xf32>
    %cst_101 = arith.constant dense<0.000000e+00> : vector<16x32xf32>
    %216 = tpu.matmul %215, %130, %cst_101 {dimension_numbers = #tpu.dot_dimension_numbers<[1], [0], [0], [1], [0, 0, 1, 1], [], []>} : vector<16x64xf32>, vector<64x32xf32>, vector<16x32xf32> -> vector<16x32xf32>
    %217 = vector.broadcast %131 : vector<1x32xf32> to vector<16x32xf32>
    %218 = arith.addf %216, %217 : vector<16x32xf32>
    %219 = arith.addf %210, %218 : vector<16x32xf32>
    %cst_102 = arith.constant dense<0.000000e+00> : vector<16xf32>
    %220 = vector.multi_reduction <add>, %219, %cst_102 [1] : vector<16x32xf32> to vector<16xf32>
    %221 = vector.shape_cast %220 : vector<16xf32> to vector<16x1xf32>
    %cst_103 = arith.constant 3.200000e+01 : f32
    %222 = vector.broadcast %cst_103 : f32 to vector<16x1xf32>
    %223 = arith.divf %221, %222 : vector<16x1xf32>
    %224 = vector.broadcast %223 : vector<16x1xf32> to vector<16x32xf32>
    %225 = arith.subf %219, %224 : vector<16x32xf32>
    %226 = arith.mulf %225, %225 : vector<16x32xf32>
    %cst_104 = arith.constant dense<0.000000e+00> : vector<16xf32>
    %227 = vector.multi_reduction <add>, %226, %cst_104 [1] : vector<16x32xf32> to vector<16xf32>
    %228 = vector.shape_cast %227 : vector<16xf32> to vector<16x1xf32>
    %cst_105 = arith.constant 3.200000e+01 : f32
    %229 = vector.broadcast %cst_105 : f32 to vector<16x1xf32>
    %230 = arith.divf %228, %229 : vector<16x1xf32>
    %231 = vector.broadcast %223 : vector<16x1xf32> to vector<16x32xf32>
    %232 = arith.subf %219, %231 : vector<16x32xf32>
    %cst_106 = arith.constant 9.99999974E-6 : f32
    %233 = vector.broadcast %cst_106 : f32 to vector<16x1xf32>
    %234 = arith.addf %230, %233 : vector<16x1xf32>
    %235 = math.rsqrt %234 : vector<16x1xf32>
    %236 = vector.broadcast %235 : vector<16x1xf32> to vector<16x32xf32>
    %237 = arith.mulf %232, %236 : vector<16x32xf32>
    %238 = vector.broadcast %134 : vector<1x32xf32> to vector<16x32xf32>
    %239 = arith.mulf %237, %238 : vector<16x32xf32>
    %240 = vector.broadcast %135 : vector<1x32xf32> to vector<16x32xf32>
    %241 = arith.addf %239, %240 : vector<16x32xf32>
    %242 = vector.shape_cast %241 : vector<16x32xf32> to vector<2x8x32xf32>
    %cst_107 = arith.constant dense<0.000000e+00> : vector<2x32xf32>
    %243 = vector.multi_reduction <add>, %242, %cst_107 [1] : vector<2x8x32xf32> to vector<2x32xf32>
    %cst_108 = arith.constant 8.000000e+00 : f32
    %244 = vector.broadcast %cst_108 : f32 to vector<2x32xf32>
    %245 = arith.divf %243, %244 : vector<2x32xf32>
    %c0_109 = arith.constant 0 : index
    %c0_110 = arith.constant 0 : index
    %246 = vector.load %arg28[%c0_109, %c0_110] : memref<32x32xf32, #tpu.memory_space<vmem>>, vector<32x32xf32>
    %c0_111 = arith.constant 0 : index
    %c0_112 = arith.constant 0 : index
    %247 = vector.load %arg29[%c0_111, %c0_112] : memref<1x32xf32, #tpu.memory_space<vmem>>, vector<1x32xf32>
    %c0_113 = arith.constant 0 : index
    %c0_114 = arith.constant 0 : index
    %248 = vector.load %arg30[%c0_113, %c0_114] : memref<32x640xf32, #tpu.memory_space<vmem>>, vector<32x640xf32>
    %c0_115 = arith.constant 0 : index
    %c0_116 = arith.constant 0 : index
    %249 = vector.load %arg31[%c0_115, %c0_116] : memref<1x640xf32, #tpu.memory_space<vmem>>, vector<1x640xf32>
    %cst_117 = arith.constant dense<0.000000e+00> : vector<2x32xf32>
    %250 = tpu.matmul %245, %246, %cst_117 {dimension_numbers = #tpu.dot_dimension_numbers<[1], [0], [0], [1], [0, 0, 1, 1], [], []>} : vector<2x32xf32>, vector<32x32xf32>, vector<2x32xf32> -> vector<2x32xf32>
    %251 = vector.broadcast %247 : vector<1x32xf32> to vector<2x32xf32>
    %252 = arith.addf %250, %251 : vector<2x32xf32>
    %cst_118 = arith.constant 0.000000e+00 : f32
    %253 = vector.broadcast %cst_118 : f32 to vector<2x32xf32>
    %254 = arith.maximumf %252, %253 : vector<2x32xf32>
    %cst_119 = arith.constant dense<0.000000e+00> : vector<2x640xf32>
    %255 = tpu.matmul %254, %248, %cst_119 {dimension_numbers = #tpu.dot_dimension_numbers<[1], [0], [0], [1], [0, 0, 1, 1], [], []>} : vector<2x32xf32>, vector<32x640xf32>, vector<2x640xf32> -> vector<2x640xf32>
    %256 = vector.broadcast %249 : vector<1x640xf32> to vector<2x640xf32>
    %257 = arith.addf %255, %256 : vector<2x640xf32>
    %c0_120 = arith.constant 0 : index
    %c0_121 = arith.constant 0 : index
    %258 = vector.load %arg32[%c0_120, %c0_121] : memref<2x640xf32, #tpu.memory_space<vmem>>, vector<2x640xf32>
    tpu.vector_store %arg32[%c0_120, %c0_121], %257 {strides = array<i32>} : memref<2x640xf32, #tpu.memory_space<vmem>>, vector<2x640xf32>,
    return
  }
  func.func @transform_0(%arg0: i32) -> (i32, i32) {
    %c0_i32 = arith.constant 0 : i32
    %c0_i32_0 = arith.constant 0 : i32
    %c0_i32_1 = arith.constant 0 : i32
    return %c0_i32, %c0_i32_0 : i32, i32
  }
  func.func @transform_1(%arg0: i32) -> (i32, i32) {
    %c0_i32 = arith.constant 0 : i32
    %c0_i32_0 = arith.constant 0 : i32
    %c0_i32_1 = arith.constant 0 : i32
    return %c0_i32, %c0_i32_0 : i32, i32
  }
  func.func @transform_2(%arg0: i32) -> (i32, i32) {
    %c0_i32 = arith.constant 0 : i32
    %c0_i32_0 = arith.constant 0 : i32
    %c0_i32_1 = arith.constant 0 : i32
    return %c0_i32, %c0_i32_0 : i32, i32
  }
  func.func @transform_3(%arg0: i32) -> (i32, i32) {
    %c0_i32 = arith.constant 0 : i32
    %c0_i32_0 = arith.constant 0 : i32
    %c0_i32_1 = arith.constant 0 : i32
    return %c0_i32, %c0_i32_0 : i32, i32
  }
  func.func @transform_4(%arg0: i32) -> (i32, i32) {
    %c0_i32 = arith.constant 0 : i32
    %c0_i32_0 = arith.constant 0 : i32
    %c0_i32_1 = arith.constant 0 : i32
    return %c0_i32, %c0_i32_0 : i32, i32
  }
  func.func @transform_5(%arg0: i32) -> (i32, i32) {
    %c0_i32 = arith.constant 0 : i32
    %c0_i32_0 = arith.constant 0 : i32
    %c0_i32_1 = arith.constant 0 : i32
    return %c0_i32, %c0_i32_0 : i32, i32
  }
  func.func @transform_6(%arg0: i32) -> (i32, i32) {
    %c0_i32 = arith.constant 0 : i32
    %c0_i32_0 = arith.constant 0 : i32
    %c0_i32_1 = arith.constant 0 : i32
    return %c0_i32, %c0_i32_0 : i32, i32
  }
  func.func @transform_7(%arg0: i32) -> (i32, i32) {
    %c0_i32 = arith.constant 0 : i32
    %c0_i32_0 = arith.constant 0 : i32
    %c0_i32_1 = arith.constant 0 : i32
    return %c0_i32, %c0_i32_0 : i32, i32
  }
  func.func @transform_8(%arg0: i32) -> (i32, i32) {
    %c0_i32 = arith.constant 0 : i32
    %c0_i32_0 = arith.constant 0 : i32
    %c0_i32_1 = arith.constant 0 : i32
    return %c0_i32, %c0_i32_0 : i32, i32
  }
  func.func @transform_9(%arg0: i32) -> (i32, i32) {
    %c0_i32 = arith.constant 0 : i32
    %c0_i32_0 = arith.constant 0 : i32
    %c0_i32_1 = arith.constant 0 : i32
    return %c0_i32, %c0_i32_0 : i32, i32
  }
  func.func @transform_10(%arg0: i32) -> (i32, i32) {
    %c0_i32 = arith.constant 0 : i32
    %c0_i32_0 = arith.constant 0 : i32
    %c0_i32_1 = arith.constant 0 : i32
    return %c0_i32, %c0_i32_0 : i32, i32
  }
  func.func @transform_11(%arg0: i32) -> (i32, i32) {
    %c0_i32 = arith.constant 0 : i32
    %c0_i32_0 = arith.constant 0 : i32
    %c0_i32_1 = arith.constant 0 : i32
    return %c0_i32, %c0_i32_0 : i32, i32
  }
  func.func @transform_12(%arg0: i32) -> (i32, i32) {
    %c0_i32 = arith.constant 0 : i32
    %c0_i32_0 = arith.constant 0 : i32
    %c0_i32_1 = arith.constant 0 : i32
    return %c0_i32, %c0_i32_0 : i32, i32
  }
  func.func @transform_13(%arg0: i32) -> (i32, i32) {
    %c0_i32 = arith.constant 0 : i32
    %c0_i32_0 = arith.constant 0 : i32
    %c0_i32_1 = arith.constant 0 : i32
    return %c0_i32, %c0_i32_0 : i32, i32
  }
  func.func @transform_14(%arg0: i32) -> (i32, i32) {
    %c0_i32 = arith.constant 0 : i32
    %c0_i32_0 = arith.constant 0 : i32
    %c0_i32_1 = arith.constant 0 : i32
    return %c0_i32, %c0_i32_0 : i32, i32
  }
  func.func @transform_15(%arg0: i32) -> (i32, i32) {
    %c0_i32 = arith.constant 0 : i32
    %c0_i32_0 = arith.constant 0 : i32
    %c0_i32_1 = arith.constant 0 : i32
    return %c0_i32, %c0_i32_0 : i32, i32
  }
  func.func @transform_16(%arg0: i32) -> (i32, i32) {
    %c0_i32 = arith.constant 0 : i32
    %c0_i32_0 = arith.constant 0 : i32
    %c0_i32_1 = arith.constant 0 : i32
    return %c0_i32, %c0_i32_0 : i32, i32
  }
  func.func @transform_17(%arg0: i32) -> (i32, i32) {
    %c0_i32 = arith.constant 0 : i32
    %c0_i32_0 = arith.constant 0 : i32
    %c0_i32_1 = arith.constant 0 : i32
    return %c0_i32, %c0_i32_0 : i32, i32
  }
  func.func @transform_18(%arg0: i32) -> (i32, i32) {
    %c0_i32 = arith.constant 0 : i32
    %c0_i32_0 = arith.constant 0 : i32
    %c0_i32_1 = arith.constant 0 : i32
    return %c0_i32, %c0_i32_0 : i32, i32
  }
  func.func @transform_19(%arg0: i32) -> (i32, i32) {
    %c0_i32 = arith.constant 0 : i32
    %c0_i32_0 = arith.constant 0 : i32
    %c0_i32_1 = arith.constant 0 : i32
    return %c0_i32, %c0_i32_0 : i32, i32
  }
  func.func @transform_20(%arg0: i32) -> (i32, i32) {
    %c0_i32 = arith.constant 0 : i32
    %c0_i32_0 = arith.constant 0 : i32
    %c0_i32_1 = arith.constant 0 : i32
    return %c0_i32, %c0_i32_0 : i32, i32
  }
  func.func @transform_21(%arg0: i32) -> (i32, i32) {
    %c0_i32 = arith.constant 0 : i32
    %c0_i32_0 = arith.constant 0 : i32
    %c0_i32_1 = arith.constant 0 : i32
    return %c0_i32, %c0_i32_0 : i32, i32
  }
  func.func @transform_22(%arg0: i32) -> (i32, i32) {
    %c0_i32 = arith.constant 0 : i32
    %c0_i32_0 = arith.constant 0 : i32
    %c0_i32_1 = arith.constant 0 : i32
    return %c0_i32, %c0_i32_0 : i32, i32
  }
  func.func @transform_23(%arg0: i32) -> (i32, i32) {
    %c0_i32 = arith.constant 0 : i32
    %c0_i32_0 = arith.constant 0 : i32
    %c0_i32_1 = arith.constant 0 : i32
    return %c0_i32, %c0_i32_0 : i32, i32
  }
  func.func @transform_24(%arg0: i32) -> (i32, i32) {
    %c0_i32 = arith.constant 0 : i32
    %c0_i32_0 = arith.constant 0 : i32
    %c0_i32_1 = arith.constant 0 : i32
    return %c0_i32, %c0_i32_0 : i32, i32
  }
  func.func @transform_25(%arg0: i32) -> (i32, i32) {
    %c0_i32 = arith.constant 0 : i32
    %c0_i32_0 = arith.constant 0 : i32
    %c0_i32_1 = arith.constant 0 : i32
    return %c0_i32, %c0_i32_0 : i32, i32
  }
  func.func @transform_26(%arg0: i32) -> (i32, i32) {
    %c0_i32 = arith.constant 0 : i32
    %c0_i32_0 = arith.constant 0 : i32
    %c0_i32_1 = arith.constant 0 : i32
    return %c0_i32, %c0_i32_0 : i32, i32
  }
  func.func @transform_27(%arg0: i32) -> (i32, i32) {
    %c0_i32 = arith.constant 0 : i32
    %c0_i32_0 = arith.constant 0 : i32
    %c0_i32_1 = arith.constant 0 : i32
    return %c0_i32, %c0_i32_0 : i32, i32
  }
  func.func @transform_28(%arg0: i32) -> (i32, i32) {
    %c0_i32 = arith.constant 0 : i32
    %c0_i32_0 = arith.constant 0 : i32
    %c0_i32_1 = arith.constant 0 : i32
    return %c0_i32, %c0_i32_0 : i32, i32
  }
  func.func @transform_29(%arg0: i32) -> (i32, i32) {
    %c0_i32 = arith.constant 0 : i32
    %c0_i32_0 = arith.constant 0 : i32
    %c0_i32_1 = arith.constant 0 : i32
    return %c0_i32, %c0_i32_0 : i32, i32
  }
  func.func @transform_30(%arg0: i32) -> (i32, i32) {
    %c0_i32 = arith.constant 0 : i32
    %c0_i32_0 = arith.constant 0 : i32
    %c0_i32_1 = arith.constant 0 : i32
    return %c0_i32, %c0_i32_0 : i32, i32
  }
  func.func @transform_31(%arg0: i32) -> (i32, i32) {
    %c0_i32 = arith.constant 0 : i32
    %c0_i32_0 = arith.constant 0 : i32
    %c0_i32_1 = arith.constant 0 : i32
    return %c0_i32, %c0_i32_0 : i32, i32
  }
}

</mosaic_0001>

<llo_original>
// kernel: sample_classifier_forward.1
$region0: #{sample_classifier_forward.1}
  #allocation0 [shape = 'u32[]', space=smem, size = 0x4, offset = 0x4, fixed_abs, tag = 'smem constant byte address 0x4 - core index']
  #allocation1 [shape = 'u32[144,128]{1,0:T(1,128)}', space=vmem, size = 0x12000, scoped, tag = 'internal scratch']
  %s0 = inlined_call_operand.smem [shape: u32[32], index: -1, kind: input, shape index: {}]
  %s1 = sld [smem:[%s0]]
  %s2 = scalar_lea.smem %s0, 1
  %s3 = sld [smem:[%s2]]
  %s4 = scalar_lea.smem %s0, 2
  %s5 = sld [smem:[%s4]]
  %s6 = scalar_lea.smem %s0, 3
  %s7 = sld [smem:[%s6]]
  %s8 = scalar_lea.smem %s0, 4
  %s9 = sld [smem:[%s8]]
  %s10 = scalar_lea.smem %s0, 5
  %s11 = sld [smem:[%s10]]
  %s12 = scalar_lea.smem %s0, 6
  %s13 = sld [smem:[%s12]]
  %s14 = scalar_lea.smem %s0, 7
  %s15 = sld [smem:[%s14]]
  %s16 = scalar_lea.smem %s0, 8
  %s17 = sld [smem:[%s16]]
  %s18 = scalar_lea.smem %s0, 9
  %s19 = sld [smem:[%s18]]
  %s20 = scalar_lea.smem %s0, 10
  %s21 = sld [smem:[%s20]]
  %s22 = scalar_lea.smem %s0, 11
  %s23 = sld [smem:[%s22]]
  %s24 = scalar_lea.smem %s0, 12
  %s25 = sld [smem:[%s24]]
  %s26 = scalar_lea.smem %s0, 13
  %s27 = sld [smem:[%s26]]
  %s28 = scalar_lea.smem %s0, 14
  %s29 = sld [smem:[%s28]]
  %s30 = scalar_lea.smem %s0, 15
  %s31 = sld [smem:[%s30]]
  %s32 = scalar_lea.smem %s0, 16
  %s33 = sld [smem:[%s32]]
  %s34 = scalar_lea.smem %s0, 17
  %s35 = sld [smem:[%s34]]
  %s36 = scalar_lea.smem %s0, 18
  %s37 = sld [smem:[%s36]]
  %s38 = scalar_lea.smem %s0, 19
  %s39 = sld [smem:[%s38]]
  %s40 = scalar_lea.smem %s0, 20
  %s41 = sld [smem:[%s40]]
  %s42 = scalar_lea.smem %s0, 21
  %s43 = sld [smem:[%s42]]
  %s44 = scalar_lea.smem %s0, 22
  %s45 = sld [smem:[%s44]]
  %s46 = scalar_lea.smem %s0, 23
  %s47 = sld [smem:[%s46]]
  %s48 = scalar_lea.smem %s0, 24
  %s49 = sld [smem:[%s48]]
  %s50 = scalar_lea.smem %s0, 25
  %s51 = sld [smem:[%s50]]
  %s52 = scalar_lea.smem %s0, 26
  %s53 = sld [smem:[%s52]]
  %s54 = scalar_lea.smem %s0, 27
  %s55 = sld [smem:[%s54]]
  %s56 = scalar_lea.smem %s0, 28
  %s57 = sld [smem:[%s56]]
  %s58 = scalar_lea.smem %s0, 29
  %s59 = sld [smem:[%s58]]
  %s60 = scalar_lea.smem %s0, 30
  %s61 = sld [smem:[%s60]]
  %s62 = scalar_lea.smem %s0, 31
  %s63 = sld [smem:[%s62]]
  %s64 = sld [smem:[#allocation0]]
  $region134: #{sample_classifier_forward.1} parent=0
    _
  %s66 = ssub.s32 1, %s64
  %s67 = scalar_select 0, %s66, %s64
  $region1: #{sample_classifier_forward.1} parent=0
    #allocation2 [shape = 'u8[5120]{0}', space=vmem, size = 0x1400, scoped, tag = 'output window, operand 0, single buffered']
    #allocation3 [shape = 's32[1]{0}', space=sflag, size = 0x4, scoped, tag = 'scoped memory for sample_classifier_forward.1']
    %68 = vsyncpa [#allocation3], 0
    // Predicated region
    $region2: #{sample_classifier_forward.1} parent=1 // pred_check
      _
    $region3: #{sample_classifier_forward.1} parent=1 // pred_check_branch
      %70 = sbr.rel (0) target = $region5
    $region4: #{sample_classifier_forward.1} parent=1 // pred_region
      _
    $region5: #{sample_classifier_forward.1} parent=1 // pred_fallthru
      _
    // Predicated region
    $region6: #{sample_classifier_forward.1} parent=1 // pred_check
      _
    $region7: #{sample_classifier_forward.1} parent=1 // pred_check_branch
      %72 = sbr.rel (0) target = $region9
    $region8: #{sample_classifier_forward.1} parent=1 // pred_region
      _
    $region9: #{sample_classifier_forward.1} parent=1 // pred_fallthru
      _
    // Predicated region
    $region10: #{sample_classifier_forward.1} parent=1 // pred_check
      _
    $region11: #{sample_classifier_forward.1} parent=1 // pred_check_branch
      %74 = sbr.rel (0) target = $region13
    $region12: #{sample_classifier_forward.1} parent=1 // pred_region
      _
    $region13: #{sample_classifier_forward.1} parent=1 // pred_fallthru
      _
    // Predicated region
    $region14: #{sample_classifier_forward.1} parent=1 // pred_check
      _
    $region15: #{sample_classifier_forward.1} parent=1 // pred_check_branch
      %76 = sbr.rel (0) target = $region17
    $region16: #{sample_classifier_forward.1} parent=1 // pred_region
      _
    $region17: #{sample_classifier_forward.1} parent=1 // pred_fallthru
      _
    // Predicated region
    $region18: #{sample_classifier_forward.1} parent=1 // pred_check
      _
    $region19: #{sample_classifier_forward.1} parent=1 // pred_check_branch
      %78 = sbr.rel (0) target = $region21
    $region20: #{sample_classifier_forward.1} parent=1 // pred_region
      _
    $region21: #{sample_classifier_forward.1} parent=1 // pred_fallthru
      _
    // Predicated region
    $region22: #{sample_classifier_forward.1} parent=1 // pred_check
      _
    $region23: #{sample_classifier_forward.1} parent=1 // pred_check_branch
      %80 = sbr.rel (0) target = $region25
    $region24: #{sample_classifier_forward.1} parent=1 // pred_region
      _
    $region25: #{sample_classifier_forward.1} parent=1 // pred_fallthru
      _
    // Predicated region
    $region26: #{sample_classifier_forward.1} parent=1 // pred_check
      _
    $region27: #{sample_classifier_forward.1} parent=1 // pred_check_branch
      %82 = sbr.rel (0) target = $region29
    $region28: #{sample_classifier_forward.1} parent=1 // pred_region
      _
    $region29: #{sample_classifier_forward.1} parent=1 // pred_fallthru
      _
    // Predicated region
    $region30: #{sample_classifier_forward.1} parent=1 // pred_check
      _
    $region31: #{sample_classifier_forward.1} parent=1 // pred_check_branch
      %84 = sbr.rel (0) target = $region33
    $region32: #{sample_classifier_forward.1} parent=1 // pred_region
      _
    $region33: #{sample_classifier_forward.1} parent=1 // pred_fallthru
      _
    // Predicated region
    $region34: #{sample_classifier_forward.1} parent=1 // pred_check
      _
    $region35: #{sample_classifier_forward.1} parent=1 // pred_check_branch
      %86 = sbr.rel (0) target = $region37
    $region36: #{sample_classifier_forward.1} parent=1 // pred_region
      _
    $region37: #{sample_classifier_forward.1} parent=1 // pred_fallthru
      _
    // Predicated region
    $region38: #{sample_classifier_forward.1} parent=1 // pred_check
      _
    $region39: #{sample_classifier_forward.1} parent=1 // pred_check_branch
      %88 = sbr.rel (0) target = $region41
    $region40: #{sample_classifier_forward.1} parent=1 // pred_region
      _
    $region41: #{sample_classifier_forward.1} parent=1 // pred_fallthru
      _
    // Predicated region
    $region42: #{sample_classifier_forward.1} parent=1 // pred_check
      _
    $region43: #{sample_classifier_forward.1} parent=1 // pred_check_branch
      %90 = sbr.rel (0) target = $region45
    $region44: #{sample_classifier_forward.1} parent=1 // pred_region
      _
    $region45: #{sample_classifier_forward.1} parent=1 // pred_fallthru
      _
    // Predicated region
    $region46: #{sample_classifier_forward.1} parent=1 // pred_check
      _
    $region47: #{sample_classifier_forward.1} parent=1 // pred_check_branch
      %92 = sbr.rel (0) target = $region49
    $region48: #{sample_classifier_forward.1} parent=1 // pred_region
      _
    $region49: #{sample_classifier_forward.1} parent=1 // pred_fallthru
      _
    // Predicated region
    $region50: #{sample_classifier_forward.1} parent=1 // pred_check
      _
    $region51: #{sample_classifier_forward.1} parent=1 // pred_check_branch
      %94 = sbr.rel (0) target = $region53
    $region52: #{sample_classifier_forward.1} parent=1 // pred_region
      _
    $region53: #{sample_classifier_forward.1} parent=1 // pred_fallthru
      _
    // Predicated region
    $region54: #{sample_classifier_forward.1} parent=1 // pred_check
      _
    $region55: #{sample_classifier_forward.1} parent=1 // pred_check_branch
      %96 = sbr.rel (0) target = $region57
    $region56: #{sample_classifier_forward.1} parent=1 // pred_region
      _
    $region57: #{sample_classifier_forward.1} parent=1 // pred_fallthru
      _
    // Predicated region
    $region58: #{sample_classifier_forward.1} parent=1 // pred_check
      _
    $region59: #{sample_classifier_forward.1} parent=1 // pred_check_branch
      %98 = sbr.rel (0) target = $region61
    $region60: #{sample_classifier_forward.1} parent=1 // pred_region
      _
    $region61: #{sample_classifier_forward.1} parent=1 // pred_fallthru
      _
    // Predicated region
    $region62: #{sample_classifier_forward.1} parent=1 // pred_check
      _
    $region63: #{sample_classifier_forward.1} parent=1 // pred_check_branch
      %100 = sbr.rel (0) target = $region65
    $region64: #{sample_classifier_forward.1} parent=1 // pred_region
      _
    $region65: #{sample_classifier_forward.1} parent=1 // pred_fallthru
      _
    // Predicated region
    $region66: #{sample_classifier_forward.1} parent=1 // pred_check
      _
    $region67: #{sample_classifier_forward.1} parent=1 // pred_check_branch
      %102 = sbr.rel (0) target = $region69
    $region68: #{sample_classifier_forward.1} parent=1 // pred_region
      _
    $region69: #{sample_classifier_forward.1} parent=1 // pred_fallthru
      _
    // Predicated region
    $region70: #{sample_classifier_forward.1} parent=1 // pred_check
      _
    $region71: #{sample_classifier_forward.1} parent=1 // pred_check_branch
      %104 = sbr.rel (0) target = $region73
    $region72: #{sample_classifier_forward.1} parent=1 // pred_region
      _
    $region73: #{sample_classifier_forward.1} parent=1 // pred_fallthru
      _
    // Predicated region
    $region74: #{sample_classifier_forward.1} parent=1 // pred_check
      _
    $region75: #{sample_classifier_forward.1} parent=1 // pred_check_branch
      %106 = sbr.rel (0) target = $region77
    $region76: #{sample_classifier_forward.1} parent=1 // pred_region
      _
    $region77: #{sample_classifier_forward.1} parent=1 // pred_fallthru
      _
    // Predicated region
    $region78: #{sample_classifier_forward.1} parent=1 // pred_check
      _
    $region79: #{sample_classifier_forward.1} parent=1 // pred_check_branch
      %108 = sbr.rel (0) target = $region81
    $region80: #{sample_classifier_forward.1} parent=1 // pred_region
      _
    $region81: #{sample_classifier_forward.1} parent=1 // pred_fallthru
      _
    // Predicated region
    $region82: #{sample_classifier_forward.1} parent=1 // pred_check
      _
    $region83: #{sample_classifier_forward.1} parent=1 // pred_check_branch
      %110 = sbr.rel (0) target = $region85
    $region84: #{sample_classifier_forward.1} parent=1 // pred_region
      _
    $region85: #{sample_classifier_forward.1} parent=1 // pred_fallthru
      _
    // Predicated region
    $region86: #{sample_classifier_forward.1} parent=1 // pred_check
      _
    $region87: #{sample_classifier_forward.1} parent=1 // pred_check_branch
      %112 = sbr.rel (0) target = $region89
    $region88: #{sample_classifier_forward.1} parent=1 // pred_region
      _
    $region89: #{sample_classifier_forward.1} parent=1 // pred_fallthru
      _
    // Predicated region
    $region90: #{sample_classifier_forward.1} parent=1 // pred_check
      _
    $region91: #{sample_classifier_forward.1} parent=1 // pred_check_branch
      %114 = sbr.rel (0) target = $region93
    $region92: #{sample_classifier_forward.1} parent=1 // pred_region
      _
    $region93: #{sample_classifier_forward.1} parent=1 // pred_fallthru
      _
    // Predicated region
    $region94: #{sample_classifier_forward.1} parent=1 // pred_check
      _
    $region95: #{sample_classifier_forward.1} parent=1 // pred_check_branch
      %116 = sbr.rel (0) target = $region97
    $region96: #{sample_classifier_forward.1} parent=1 // pred_region
      _
    $region97: #{sample_classifier_forward.1} parent=1 // pred_fallthru
      _
    // Predicated region
    $region98: #{sample_classifier_forward.1} parent=1 // pred_check
      _
    $region99: #{sample_classifier_forward.1} parent=1 // pred_check_branch
      %118 = sbr.rel (0) target = $region101
    $region100: #{sample_classifier_forward.1} parent=1 // pred_region
      _
    $region101: #{sample_classifier_forward.1} parent=1 // pred_fallthru
      _
    // Predicated region
    $region102: #{sample_classifier_forward.1} parent=1 // pred_check
      _
    $region103: #{sample_classifier_forward.1} parent=1 // pred_check_branch
      %120 = sbr.rel (0) target = $region105
    $region104: #{sample_classifier_forward.1} parent=1 // pred_region
      _
    $region105: #{sample_classifier_forward.1} parent=1 // pred_fallthru
      _
    // Predicated region
    $region106: #{sample_classifier_forward.1} parent=1 // pred_check
      _
    $region107: #{sample_classifier_forward.1} parent=1 // pred_check_branch
      %122 = sbr.rel (0) target = $region109
    $region108: #{sample_classifier_forward.1} parent=1 // pred_region
      _
    $region109: #{sample_classifier_forward.1} parent=1 // pred_fallthru
      _
    // Predicated region
    $region110: #{sample_classifier_forward.1} parent=1 // pred_check
      _
    $region111: #{sample_classifier_forward.1} parent=1 // pred_check_branch
      %124 = sbr.rel (0) target = $region113
    $region112: #{sample_classifier_forward.1} parent=1 // pred_region
      _
    $region113: #{sample_classifier_forward.1} parent=1 // pred_fallthru
      _
    // Predicated region
    $region114: #{sample_classifier_forward.1} parent=1 // pred_check
      _
    $region115: #{sample_classifier_forward.1} parent=1 // pred_check_branch
      %126 = sbr.rel (0) target = $region117
    $region116: #{sample_classifier_forward.1} parent=1 // pred_region
      _
    $region117: #{sample_classifier_forward.1} parent=1 // pred_fallthru
      _
    // Predicated region
    $region118: #{sample_classifier_forward.1} parent=1 // pred_check
      _
    $region119: #{sample_classifier_forward.1} parent=1 // pred_check_branch
      %128 = sbr.rel (0) target = $region121
    $region120: #{sample_classifier_forward.1} parent=1 // pred_region
      _
    $region121: #{sample_classifier_forward.1} parent=1 // pred_fallthru
      _
    // Predicated region
    $region122: #{sample_classifier_forward.1} parent=1 // pred_check
      _
    $region123: #{sample_classifier_forward.1} parent=1 // pred_check_branch
      %130 = sbr.rel (0) target = $region125
    $region124: #{sample_classifier_forward.1} parent=1 // pred_region
      _
    $region125: #{sample_classifier_forward.1} parent=1 // pred_fallthru
      _
    %v131 = vld [vmem:[%s1] sm:$0xff]
    %v132 = vld [vmem:[%s1 + $0x8] sm:$0xff]
    %v133 = vld [vmem:[%s3] sm:$0xff]
    %v134 = vld [vmem:[%s3 + $0x8] sm:$0xff]
    %v135 = vld [vmem:[%s3 + $0x10] sm:$0xff]
    %v136 = vld [vmem:[%s3 + $0x18] sm:$0xff]
    %v137 = vld [vmem:[%s3 + $0x20] sm:$0xff]
    %v138 = vld [vmem:[%s5] sm:$0x1]
    %v140 = vlaneseq
    %v141 = vshrl.u32 %v140, 7
    %v142 = vsub.s32 0, %v141
    %v143 = vrot.slane %v138, %v142
    %vm145 = vcmask 326656
    %v147 = vsel %vm145, %v131, 0
    %v150 = vsel %vm145, %v132, 0
    %152 = vmatprep.subr.mxu0 0.0
    %153 = vmatpush1.msra.mxu0 %v133
    %154 = vmatprep.subr.mxu0 0.0
    %155 = vmatpush1.msra.mxu0 %v134
    %156 = vmatprep.subr.mxu0 0.0
    %157 = vmatpush1.msra.mxu0 %v135
    %158 = vmatprep.subr.mxu0 0.0
    %159 = vmatpush1.msra.mxu0 %v136
    %160 = vmatprep.subr.mxu0 0.0
    %161 = vmatpush1.msra.mxu0 %v137
    %162 = vmatprep.subr.mxu0 0.0
    %163 = vmatpush1.msra.mxu0 0.0
    %164 = vmatprep.subr.mxu0 0.0
    %165 = vmatpush1.msra.mxu0 0.0
    %166 = vmatprep.subr.mxu0 0.0
    %167 = vmatpush1.msra.mxu0 0.0
    %168 = vmatprep.subr.mxu0 0.0
    %169 = vmatpush1.msra.mxu0 0.0
    %170 = vmatprep.subr.mxu0 0.0
    %171 = vmatpush1.msra.mxu0 0.0
    %172 = vmatprep.subr.mxu0 0.0
    %173 = vmatpush1.msra.mxu0 0.0
    %174 = vmatprep.subr.mxu0 0.0
    %175 = vmatpush1.msra.mxu0 0.0
    %176 = vmatprep.subr.mxu0 0.0
    %177 = vmatpush1.msra.mxu0 0.0
    %178 = vmatprep.subr.mxu0 0.0
    %179 = vmatpush1.msra.mxu0 0.0
    %180 = vmatprep.subr.mxu0 0.0
    %181 = vmatpush1.msra.mxu0 0.0
    %182 = vmatprep.subr.mxu0 0.0
    %183 = vmatpush1.msra.mxu0 0.0
    %184 = vmatprep.subr.mxu0 0.0
    %185 = vmatpush1.msra.mxu0 0.0
    %186 = vmatprep.subr.mxu0 0.0
    %187 = vmatpush1.msra.mxu0 0.0
    %188 = vmatprep.subr.mxu0 0.0
    %189 = vmatpush1.msra.mxu0 0.0
    %190 = vmatprep.subr.mxu0 0.0
    %191 = vmatpush1.msra.mxu0 0.0
    %192 = vmatprep.subr.mxu0 0.0
    %193 = vmatpush1.msra.mxu0 0.0
    %194 = vmatprep.subr.mxu0 0.0
    %195 = vmatpush1.msra.mxu0 0.0
    %196 = vmatprep.subr.mxu0 0.0
    %197 = vmatpush1.msra.mxu0 0.0
    %198 = vmatprep.subr.mxu0 0.0
    %199 = vmatpush1.msra.mxu0 0.0
    %200 = vmatprep.subr.mxu0 0.0
    %201 = vmatpush1.msra.mxu0 0.0
    %202 = vmatprep.subr.mxu0 0.0
    %203 = vmatpush1.msra.mxu0 0.0
    %204 = vmatprep.subr.mxu0 0.0
    %205 = vmatpush1.msra.mxu0 0.0
    %206 = vmatprep.subr.mxu0 0.0
    %207 = vmatpush1.msra.mxu0 0.0
    %208 = vmatprep.subr.mxu0 0.0
    %209 = vmatpush1.msra.mxu0 0.0
    %210 = vmatprep.subr.mxu0 0.0
    %211 = vmatpush1.msra.mxu0 0.0
    %212 = vmatprep.subr.mxu0 0.0
    %213 = vmatpush1.msra.mxu0 0.0
    %214 = vmatprep.subr.mxu0 0.0
    %215 = vmatpush1.msra.mxu0 0.0
    %216 = vmatprep.mubr.f32.mxu0 0.0
    %217 = vmatmul.mubr.f32.gmra.mrb[0].mxu0 %v147
    %v218 = vpop.f32.mrb[0].mxu0
    %v219 = vadd.f32 %v143, %v218
    %v220 = vpop.f32.mrb[0].mxu0
    %221 = vmatprep.mubr.f32.mxu0 0.0
    %222 = vmatmul.mubr.f32.gmra.mrb[0].mxu0 %v150
    %v223 = vpop.f32.mrb[0].mxu0
    %v224 = vadd.f32 %v143, %v223
    %v225 = vpop.f32.mrb[0].mxu0
    %226 = vdwg.mxu0
    %v227 = vld [vmem:[%s7] sm:$0xff]
    %v228 = vld [vmem:[%s7 + $0x8] sm:$0xff]
    %v229 = vld [vmem:[%s7 + $0x10] sm:$0xff]
    %v230 = vld [vmem:[%s7 + $0x18] sm:$0xff]
    %v231 = vld [vmem:[%s9] sm:$0x1]
    %v232 = vld [vmem:[%s11] sm:$0xff]
    %v233 = vld [vmem:[%s11 + $0x8] sm:$0xff]
    %v234 = vld [vmem:[%s11 + $0x10] sm:$0xff]
    %v235 = vld [vmem:[%s11 + $0x18] sm:$0xff]
    %v236 = vld [vmem:[%s13] sm:$0x1]
    %v237 = vld [vmem:[%s15] sm:$0xff]
    %v238 = vld [vmem:[%s15 + $0x8] sm:$0xff]
    %v239 = vld [vmem:[%s15 + $0x10] sm:$0xff]
    %v240 = vld [vmem:[%s15 + $0x18] sm:$0xff]
    %v241 = vld [vmem:[%s17] sm:$0x1]
    %v242 = vld [vmem:[%s19] sm:$0xff]
    %v243 = vld [vmem:[%s19 + $0x8] sm:$0xff]
    %v244 = vld [vmem:[%s19 + $0x10] sm:$0xff]
    %v245 = vld [vmem:[%s19 + $0x18] sm:$0xff]
    %v246 = vld [vmem:[%s19 + $0x20] sm:$0xff]
    %v247 = vld [vmem:[%s19 + $0x28] sm:$0xff]
    %v248 = vld [vmem:[%s19 + $0x30] sm:$0xff]
    %v249 = vld [vmem:[%s19 + $0x38] sm:$0xff]
    %v250 = vld [vmem:[%s21] sm:$0x1]
    %v251 = vld [vmem:[%s23] sm:$0x1]
    %v252 = vld [vmem:[%s25] sm:$0x1]
    %v253 = vld [vmem:[%s27] sm:$0x1]
    %v254 = vld [vmem:[%s29] sm:$0x1]
    %v256 = vlaneseq
    %v257 = vshrl.u32 %v256, 7
    %v258 = vsub.s32 0, %v257
    %v259 = vrot.slane %v231, %v258
    %vm261 = vcmask 261120
    %v263 = vsel %vm261, %v219, 0
    %v266 = vsel %vm261, %v224, 0
    %268 = vmatprep.subr.mxu0 0.0
    %269 = vmatpush1.msra.mxu0 %v227
    %270 = vmatprep.subr.mxu0 0.0
    %271 = vmatpush1.msra.mxu0 %v228
    %272 = vmatprep.subr.mxu0 0.0
    %273 = vmatpush1.msra.mxu0 %v229
    %274 = vmatprep.subr.mxu0 0.0
    %275 = vmatpush1.msra.mxu0 %v230
    %276 = vmatprep.subr.mxu0 0.0
    %277 = vmatpush1.msra.mxu0 0.0
    %278 = vmatprep.subr.mxu0 0.0
    %279 = vmatpush1.msra.mxu0 0.0
    %280 = vmatprep.subr.mxu0 0.0
    %281 = vmatpush1.msra.mxu0 0.0
    %282 = vmatprep.subr.mxu0 0.0
    %283 = vmatpush1.msra.mxu0 0.0
    %284 = vmatprep.subr.mxu0 0.0
    %285 = vmatpush1.msra.mxu0 0.0
    %286 = vmatprep.subr.mxu0 0.0
    %287 = vmatpush1.msra.mxu0 0.0
    %288 = vmatprep.subr.mxu0 0.0
    %289 = vmatpush1.msra.mxu0 0.0
    %290 = vmatprep.subr.mxu0 0.0
    %291 = vmatpush1.msra.mxu0 0.0
    %292 = vmatprep.subr.mxu0 0.0
    %293 = vmatpush1.msra.mxu0 0.0
    %294 = vmatprep.subr.mxu0 0.0
    %295 = vmatpush1.msra.mxu0 0.0
    %296 = vmatprep.subr.mxu0 0.0
    %297 = vmatpush1.msra.mxu0 0.0
    %298 = vmatprep.subr.mxu0 0.0
    %299 = vmatpush1.msra.mxu0 0.0
    %300 = vmatprep.subr.mxu0 0.0
    %301 = vmatpush1.msra.mxu0 0.0
    %302 = vmatprep.subr.mxu0 0.0
    %303 = vmatpush1.msra.mxu0 0.0
    %304 = vmatprep.subr.mxu0 0.0
    %305 = vmatpush1.msra.mxu0 0.0
    %306 = vmatprep.subr.mxu0 0.0
    %307 = vmatpush1.msra.mxu0 0.0
    %308 = vmatprep.subr.mxu0 0.0
    %309 = vmatpush1.msra.mxu0 0.0
    %310 = vmatprep.subr.mxu0 0.0
    %311 = vmatpush1.msra.mxu0 0.0
    %312 = vmatprep.subr.mxu0 0.0
    %313 = vmatpush1.msra.mxu0 0.0
    %314 = vmatprep.subr.mxu0 0.0
    %315 = vmatpush1.msra.mxu0 0.0
    %316 = vmatprep.subr.mxu0 0.0
    %317 = vmatpush1.msra.mxu0 0.0
    %318 = vmatprep.subr.mxu0 0.0
    %319 = vmatpush1.msra.mxu0 0.0
    %320 = vmatprep.subr.mxu0 0.0
    %321 = vmatpush1.msra.mxu0 0.0
    %322 = vmatprep.subr.mxu0 0.0
    %323 = vmatpush1.msra.mxu0 0.0
    %324 = vmatprep.subr.mxu0 0.0
    %325 = vmatpush1.msra.mxu0 0.0
    %326 = vmatprep.subr.mxu0 0.0
    %327 = vmatpush1.msra.mxu0 0.0
    %328 = vmatprep.subr.mxu0 0.0
    %329 = vmatpush1.msra.mxu0 0.0
    %330 = vmatprep.subr.mxu0 0.0
    %331 = vmatpush1.msra.mxu0 0.0
    %332 = vmatprep.mubr.f32.mxu0 0.0
    %333 = vmatmul.mubr.f32.gmra.mrb[0].mxu0 %v263
    %v334 = vpop.f32.mrb[0].mxu0
    %v335 = vadd.f32 %v259, %v334
    %v336 = vpop.f32.mrb[0].mxu0
    %337 = vmatprep.mubr.f32.mxu0 0.0
    %338 = vmatmul.mubr.f32.gmra.mrb[0].mxu0 %v266
    %v339 = vpop.f32.mrb[0].mxu0
    %v340 = vadd.f32 %v259, %v339
    %v341 = vpop.f32.mrb[0].mxu0
    %342 = vdwg.mxu0
    %344 = vrot.lane.b32.xlu0 %v335, 96
    %v345 = vpop.permute.xlu0 %344
    %vm346 = vcmask 130048
    %v347 = vsel %vm346, %v335, 0
    %v349 = vsel %vm346, %v345, 0
    %351 = vmatprep.subr.mxu0 0.0
    %352 = vmatpush1.xpose.msra.mxu0 %v349
    %353 = vmatprep.subr.mxu0 0.0
    %354 = vmatpush1.xpose.msra.mxu0 0.0
    %355 = vmatprep.subr.mxu0 0.0
    %356 = vmatpush1.xpose.msra.mxu0 0.0
    %357 = vmatprep.subr.mxu0 0.0
    %358 = vmatpush1.xpose.msra.mxu0 0.0
    %359 = vmatprep.subr.mxu0 0.0
    %360 = vmatpush1.xpose.msra.mxu0 0.0
    %361 = vmatprep.subr.mxu0 0.0
    %362 = vmatpush1.xpose.msra.mxu0 0.0
    %363 = vmatprep.subr.mxu0 0.0
    %364 = vmatpush1.xpose.msra.mxu0 0.0
    %365 = vmatprep.subr.mxu0 0.0
    %366 = vmatpush1.xpose.msra.mxu0 0.0
    %367 = vmatprep.subr.mxu0 0.0
    %368 = vmatpush1.xpose.msra.mxu0 0.0
    %369 = vmatprep.subr.mxu0 0.0
    %370 = vmatpush1.xpose.msra.mxu0 0.0
    %371 = vmatprep.subr.mxu0 0.0
    %372 = vmatpush1.xpose.msra.mxu0 0.0
    %373 = vmatprep.subr.mxu0 0.0
    %374 = vmatpush1.xpose.msra.mxu0 0.0
    %375 = vmatprep.subr.mxu0 0.0
    %376 = vmatpush1.xpose.msra.mxu0 0.0
    %377 = vmatprep.subr.mxu0 0.0
    %378 = vmatpush1.xpose.msra.mxu0 0.0
    %379 = vmatprep.subr.mxu0 0.0
    %380 = vmatpush1.xpose.msra.mxu0 0.0
    %381 = vmatprep.subr.mxu0 0.0
    %382 = vmatpush1.xpose.msra.mxu0 0.0
    %383 = vmatprep.subr.mxu0 0.0
    %384 = vmatpush1.xpose.msra.mxu0 0.0
    %385 = vmatprep.subr.mxu0 0.0
    %386 = vmatpush1.xpose.msra.mxu0 0.0
    %387 = vmatprep.subr.mxu0 0.0
    %388 = vmatpush1.xpose.msra.mxu0 0.0
    %389 = vmatprep.subr.mxu0 0.0
    %390 = vmatpush1.xpose.msra.mxu0 0.0
    %391 = vmatprep.subr.mxu0 0.0
    %392 = vmatpush1.xpose.msra.mxu0 0.0
    %393 = vmatprep.subr.mxu0 0.0
    %394 = vmatpush1.xpose.msra.mxu0 0.0
    %395 = vmatprep.subr.mxu0 0.0
    %396 = vmatpush1.xpose.msra.mxu0 0.0
    %397 = vmatprep.subr.mxu0 0.0
    %398 = vmatpush1.xpose.msra.mxu0 0.0
    %399 = vmatprep.subr.mxu0 0.0
    %400 = vmatpush1.xpose.msra.mxu0 0.0
    %401 = vmatprep.subr.mxu0 0.0
    %402 = vmatpush1.xpose.msra.mxu0 0.0
    %403 = vmatprep.subr.mxu0 0.0
    %404 = vmatpush1.xpose.msra.mxu0 0.0
    %405 = vmatprep.subr.mxu0 0.0
    %406 = vmatpush1.xpose.msra.mxu0 0.0
    %407 = vmatprep.subr.mxu0 0.0
    %408 = vmatpush1.xpose.msra.mxu0 0.0
    %409 = vmatprep.subr.mxu0 0.0
    %410 = vmatpush1.xpose.msra.mxu0 0.0
    %411 = vmatprep.subr.mxu0 0.0
    %412 = vmatpush1.xpose.msra.mxu0 0.0
    %413 = vmatprep.subr.mxu0 0.0
    %414 = vmatpush1.xpose.msra.mxu0 0.0
    %415 = vmatprep.mubr.f32.mxu0 0.0
    %416 = vmatmul.mubr.f32.gmra.mrb[0].mxu0 %v347
    %v417 = vpop.f32.mrb[0].mxu0
    %v418 = vadd.f32 0.0, %v417
    %v419 = vpop.f32.mrb[0].mxu0
    %420 = vdwg.mxu0
    %422 = vrot.lane.b32.xlu0 %v340, 96
    %v423 = vpop.permute.xlu0 %422
    %v424 = vsel %vm346, %v340, 0
    %v426 = vsel %vm346, %v423, 0
    %428 = vmatprep.subr.mxu0 0.0
    %429 = vmatpush1.xpose.msra.mxu0 %v426
    %430 = vmatprep.subr.mxu0 0.0
    %431 = vmatpush1.xpose.msra.mxu0 0.0
    %432 = vmatprep.subr.mxu0 0.0
    %433 = vmatpush1.xpose.msra.mxu0 0.0
    %434 = vmatprep.subr.mxu0 0.0
    %435 = vmatpush1.xpose.msra.mxu0 0.0
    %436 = vmatprep.subr.mxu0 0.0
    %437 = vmatpush1.xpose.msra.mxu0 0.0
    %438 = vmatprep.subr.mxu0 0.0
    %439 = vmatpush1.xpose.msra.mxu0 0.0
    %440 = vmatprep.subr.mxu0 0.0
    %441 = vmatpush1.xpose.msra.mxu0 0.0
    %442 = vmatprep.subr.mxu0 0.0
    %443 = vmatpush1.xpose.msra.mxu0 0.0
    %444 = vmatprep.subr.mxu0 0.0
    %445 = vmatpush1.xpose.msra.mxu0 0.0
    %446 = vmatprep.subr.mxu0 0.0
    %447 = vmatpush1.xpose.msra.mxu0 0.0
    %448 = vmatprep.subr.mxu0 0.0
    %449 = vmatpush1.xpose.msra.mxu0 0.0
    %450 = vmatprep.subr.mxu0 0.0
    %451 = vmatpush1.xpose.msra.mxu0 0.0
    %452 = vmatprep.subr.mxu0 0.0
    %453 = vmatpush1.xpose.msra.mxu0 0.0
    %454 = vmatprep.subr.mxu0 0.0
    %455 = vmatpush1.xpose.msra.mxu0 0.0
    %456 = vmatprep.subr.mxu0 0.0
    %457 = vmatpush1.xpose.msra.mxu0 0.0
    %458 = vmatprep.subr.mxu0 0.0
    %459 = vmatpush1.xpose.msra.mxu0 0.0
    %460 = vmatprep.subr.mxu0 0.0
    %461 = vmatpush1.xpose.msra.mxu0 0.0
    %462 = vmatprep.subr.mxu0 0.0
    %463 = vmatpush1.xpose.msra.mxu0 0.0
    %464 = vmatprep.subr.mxu0 0.0
    %465 = vmatpush1.xpose.msra.mxu0 0.0
    %466 = vmatprep.subr.mxu0 0.0
    %467 = vmatpush1.xpose.msra.mxu0 0.0
    %468 = vmatprep.subr.mxu0 0.0
    %469 = vmatpush1.xpose.msra.mxu0 0.0
    %470 = vmatprep.subr.mxu0 0.0
    %471 = vmatpush1.xpose.msra.mxu0 0.0
    %472 = vmatprep.subr.mxu0 0.0
    %473 = vmatpush1.xpose.msra.mxu0 0.0
    %474 = vmatprep.subr.mxu0 0.0
    %475 = vmatpush1.xpose.msra.mxu0 0.0
    %476 = vmatprep.subr.mxu0 0.0
    %477 = vmatpush1.xpose.msra.mxu0 0.0
    %478 = vmatprep.subr.mxu0 0.0
    %479 = vmatpush1.xpose.msra.mxu0 0.0
    %480 = vmatprep.subr.mxu0 0.0
    %481 = vmatpush1.xpose.msra.mxu0 0.0
    %482 = vmatprep.subr.mxu0 0.0
    %483 = vmatpush1.xpose.msra.mxu0 0.0
    %484 = vmatprep.subr.mxu0 0.0
    %485 = vmatpush1.xpose.msra.mxu0 0.0
    %486 = vmatprep.subr.mxu0 0.0
    %487 = vmatpush1.xpose.msra.mxu0 0.0
    %488 = vmatprep.subr.mxu0 0.0
    %489 = vmatpush1.xpose.msra.mxu0 0.0
    %490 = vmatprep.subr.mxu0 0.0
    %491 = vmatpush1.xpose.msra.mxu0 0.0
    %492 = vmatprep.mubr.f32.mxu0 0.0
    %493 = vmatmul.mubr.f32.gmra.mrb[0].mxu0 %v424
    %v494 = vpop.f32.mrb[0].mxu0
    %v495 = vadd.f32 0.0, %v494
    %v496 = vpop.f32.mrb[0].mxu0
    %497 = vdwg.mxu0
    %v498 = vmul.f32 %v418, 0.25
    %v499 = vmul.f32 %v495, 0.25
    %vm500 = vcmask 64512
    %v501 = vsel %vm500, %v498, -inf
    %502 = vmax.xlane.f32.xlu0 %v501
    %v503 = vpop.xlane.xlu0 %502
    %v504 = vsel %vm500, %v499, -inf
    %505 = vmax.xlane.f32.xlu0 %v504
    %v506 = vpop.xlane.xlu0 %505
    %v507 = vsub.f32 %v498, %v503
    %v508 = vsub.f32 %v499, %v506
    %v509 = vmul.f32 %v507, 1.442695
    %v510 = vpow.pop %v509
    %v511 = vmul.f32 %v508, 1.442695
    %v512 = vpow.pop %v511
    %v513 = vsel %vm500, %v510, 0.0
    %514 = vadd.xlane.f32.xlu0 %v513
    %v515 = vpop.xlane.xlu0 %514
    %v516 = vsel %vm500, %v512, 0.0
    %517 = vadd.xlane.f32.xlu0 %v516
    %v518 = vpop.xlane.xlu0 %517
    %v519 = vrcp.pop %v515
    %v520 = vmul.f32 %v510, %v519
    %v521 = vrcp.pop %v518
    %v522 = vmul.f32 %v512, %v521
    %523 = vrot.lane.b32.xlu0 %v335, 64
    %v524 = vpop.permute.xlu0 %523
    %v527 = vsel %vm500, %v520, 0
    %529 = vmatprep.subr.mxu0 0.0
    %530 = vmatpush1.msra.mxu0 %v524
    %531 = vmatprep.subr.mxu0 0.0
    %532 = vmatpush1.msra.mxu0 0.0
    %533 = vmatprep.subr.mxu0 0.0
    %534 = vmatpush1.msra.mxu0 0.0
    %535 = vmatprep.subr.mxu0 0.0
    %536 = vmatpush1.msra.mxu0 0.0
    %537 = vmatprep.subr.mxu0 0.0
    %538 = vmatpush1.msra.mxu0 0.0
    %539 = vmatprep.subr.mxu0 0.0
    %540 = vmatpush1.msra.mxu0 0.0
    %541 = vmatprep.subr.mxu0 0.0
    %542 = vmatpush1.msra.mxu0 0.0
    %543 = vmatprep.subr.mxu0 0.0
    %544 = vmatpush1.msra.mxu0 0.0
    %545 = vmatprep.subr.mxu0 0.0
    %546 = vmatpush1.msra.mxu0 0.0
    %547 = vmatprep.subr.mxu0 0.0
    %548 = vmatpush1.msra.mxu0 0.0
    %549 = vmatprep.subr.mxu0 0.0
    %550 = vmatpush1.msra.mxu0 0.0
    %551 = vmatprep.subr.mxu0 0.0
    %552 = vmatpush1.msra.mxu0 0.0
    %553 = vmatprep.subr.mxu0 0.0
    %554 = vmatpush1.msra.mxu0 0.0
    %555 = vmatprep.subr.mxu0 0.0
    %556 = vmatpush1.msra.mxu0 0.0
    %557 = vmatprep.subr.mxu0 0.0
    %558 = vmatpush1.msra.mxu0 0.0
    %559 = vmatprep.subr.mxu0 0.0
    %560 = vmatpush1.msra.mxu0 0.0
    %561 = vmatprep.subr.mxu0 0.0
    %562 = vmatpush1.msra.mxu0 0.0
    %563 = vmatprep.subr.mxu0 0.0
    %564 = vmatpush1.msra.mxu0 0.0
    %565 = vmatprep.subr.mxu0 0.0
    %566 = vmatpush1.msra.mxu0 0.0
    %567 = vmatprep.subr.mxu0 0.0
    %568 = vmatpush1.msra.mxu0 0.0
    %569 = vmatprep.subr.mxu0 0.0
    %570 = vmatpush1.msra.mxu0 0.0
    %571 = vmatprep.subr.mxu0 0.0
    %572 = vmatpush1.msra.mxu0 0.0
    %573 = vmatprep.subr.mxu0 0.0
    %574 = vmatpush1.msra.mxu0 0.0
    %575 = vmatprep.subr.mxu0 0.0
    %576 = vmatpush1.msra.mxu0 0.0
    %577 = vmatprep.subr.mxu0 0.0
    %578 = vmatpush1.msra.mxu0 0.0
    %579 = vmatprep.subr.mxu0 0.0
    %580 = vmatpush1.msra.mxu0 0.0
    %581 = vmatprep.subr.mxu0 0.0
    %582 = vmatpush1.msra.mxu0 0.0
    %583 = vmatprep.subr.mxu0 0.0
    %584 = vmatpush1.msra.mxu0 0.0
    %585 = vmatprep.subr.mxu0 0.0
    %586 = vmatpush1.msra.mxu0 0.0
    %587 = vmatprep.subr.mxu0 0.0
    %588 = vmatpush1.msra.mxu0 0.0
    %589 = vmatprep.subr.mxu0 0.0
    %590 = vmatpush1.msra.mxu0 0.0
    %591 = vmatprep.subr.mxu0 0.0
    %592 = vmatpush1.msra.mxu0 0.0
    %593 = vmatprep.mubr.f32.mxu0 0.0
    %594 = vmatmul.mubr.f32.gmra.mrb[0].mxu0 %v527
    %v595 = vpop.f32.mrb[0].mxu0
    %v596 = vadd.f32 0.0, %v595
    %v597 = vpop.f32.mrb[0].mxu0
    %598 = vdwg.mxu0
    %599 = vrot.lane.b32.xlu0 %v340, 64
    %v600 = vpop.permute.xlu0 %599
    %v603 = vsel %vm500, %v522, 0
    %605 = vmatprep.subr.mxu0 0.0
    %606 = vmatpush1.msra.mxu0 %v600
    %607 = vmatprep.subr.mxu0 0.0
    %608 = vmatpush1.msra.mxu0 0.0
    %609 = vmatprep.subr.mxu0 0.0
    %610 = vmatpush1.msra.mxu0 0.0
    %611 = vmatprep.subr.mxu0 0.0
    %612 = vmatpush1.msra.mxu0 0.0
    %613 = vmatprep.subr.mxu0 0.0
    %614 = vmatpush1.msra.mxu0 0.0
    %615 = vmatprep.subr.mxu0 0.0
    %616 = vmatpush1.msra.mxu0 0.0
    %617 = vmatprep.subr.mxu0 0.0
    %618 = vmatpush1.msra.mxu0 0.0
    %619 = vmatprep.subr.mxu0 0.0
    %620 = vmatpush1.msra.mxu0 0.0
    %621 = vmatprep.subr.mxu0 0.0
    %622 = vmatpush1.msra.mxu0 0.0
    %623 = vmatprep.subr.mxu0 0.0
    %624 = vmatpush1.msra.mxu0 0.0
    %625 = vmatprep.subr.mxu0 0.0
    %626 = vmatpush1.msra.mxu0 0.0
    %627 = vmatprep.subr.mxu0 0.0
    %628 = vmatpush1.msra.mxu0 0.0
    %629 = vmatprep.subr.mxu0 0.0
    %630 = vmatpush1.msra.mxu0 0.0
    %631 = vmatprep.subr.mxu0 0.0
    %632 = vmatpush1.msra.mxu0 0.0
    %633 = vmatprep.subr.mxu0 0.0
    %634 = vmatpush1.msra.mxu0 0.0
    %635 = vmatprep.subr.mxu0 0.0
    %636 = vmatpush1.msra.mxu0 0.0
    %637 = vmatprep.subr.mxu0 0.0
    %638 = vmatpush1.msra.mxu0 0.0
    %639 = vmatprep.subr.mxu0 0.0
    %640 = vmatpush1.msra.mxu0 0.0
    %641 = vmatprep.subr.mxu0 0.0
    %642 = vmatpush1.msra.mxu0 0.0
    %643 = vmatprep.subr.mxu0 0.0
    %644 = vmatpush1.msra.mxu0 0.0
    %645 = vmatprep.subr.mxu0 0.0
    %646 = vmatpush1.msra.mxu0 0.0
    %647 = vmatprep.subr.mxu0 0.0
    %648 = vmatpush1.msra.mxu0 0.0
    %649 = vmatprep.subr.mxu0 0.0
    %650 = vmatpush1.msra.mxu0 0.0
    %651 = vmatprep.subr.mxu0 0.0
    %652 = vmatpush1.msra.mxu0 0.0
    %653 = vmatprep.subr.mxu0 0.0
    %654 = vmatpush1.msra.mxu0 0.0
    %655 = vmatprep.subr.mxu0 0.0
    %656 = vmatpush1.msra.mxu0 0.0
    %657 = vmatprep.subr.mxu0 0.0
    %658 = vmatpush1.msra.mxu0 0.0
    %659 = vmatprep.subr.mxu0 0.0
    %660 = vmatpush1.msra.mxu0 0.0
    %661 = vmatprep.subr.mxu0 0.0
    %662 = vmatpush1.msra.mxu0 0.0
    %663 = vmatprep.subr.mxu0 0.0
    %664 = vmatpush1.msra.mxu0 0.0
    %665 = vmatprep.subr.mxu0 0.0
    %666 = vmatpush1.msra.mxu0 0.0
    %667 = vmatprep.subr.mxu0 0.0
    %668 = vmatpush1.msra.mxu0 0.0
    %669 = vmatprep.mubr.f32.mxu0 0.0
    %670 = vmatmul.mubr.f32.gmra.mrb[0].mxu0 %v603
    %v671 = vpop.f32.mrb[0].mxu0
    %v672 = vadd.f32 0.0, %v671
    %v673 = vpop.f32.mrb[0].mxu0
    %674 = vdwg.mxu0
    %675 = vrot.lane.b32.xlu0 %v335, 112
    %v676 = vpop.permute.xlu0 %675
    %677 = vrot.lane.b32.xlu0 %v335, 80
    %v678 = vpop.permute.xlu0 %677
    %v679 = vsel %vm346, %v676, 0
    %v681 = vsel %vm346, %v678, 0
    %683 = vmatprep.subr.mxu0 0.0
    %684 = vmatpush1.xpose.msra.mxu0 %v681
    %685 = vmatprep.subr.mxu0 0.0
    %686 = vmatpush1.xpose.msra.mxu0 0.0
    %687 = vmatprep.subr.mxu0 0.0
    %688 = vmatpush1.xpose.msra.mxu0 0.0
    %689 = vmatprep.subr.mxu0 0.0
    %690 = vmatpush1.xpose.msra.mxu0 0.0
    %691 = vmatprep.subr.mxu0 0.0
    %692 = vmatpush1.xpose.msra.mxu0 0.0
    %693 = vmatprep.subr.mxu0 0.0
    %694 = vmatpush1.xpose.msra.mxu0 0.0
    %695 = vmatprep.subr.mxu0 0.0
    %696 = vmatpush1.xpose.msra.mxu0 0.0
    %697 = vmatprep.subr.mxu0 0.0
    %698 = vmatpush1.xpose.msra.mxu0 0.0
    %699 = vmatprep.subr.mxu0 0.0
    %700 = vmatpush1.xpose.msra.mxu0 0.0
    %701 = vmatprep.subr.mxu0 0.0
    %702 = vmatpush1.xpose.msra.mxu0 0.0
    %703 = vmatprep.subr.mxu0 0.0
    %704 = vmatpush1.xpose.msra.mxu0 0.0
    %705 = vmatprep.subr.mxu0 0.0
    %706 = vmatpush1.xpose.msra.mxu0 0.0
    %707 = vmatprep.subr.mxu0 0.0
    %708 = vmatpush1.xpose.msra.mxu0 0.0
    %709 = vmatprep.subr.mxu0 0.0
    %710 = vmatpush1.xpose.msra.mxu0 0.0
    %711 = vmatprep.subr.mxu0 0.0
    %712 = vmatpush1.xpose.msra.mxu0 0.0
    %713 = vmatprep.subr.mxu0 0.0
    %714 = vmatpush1.xpose.msra.mxu0 0.0
    %715 = vmatprep.subr.mxu0 0.0
    %716 = vmatpush1.xpose.msra.mxu0 0.0
    %717 = vmatprep.subr.mxu0 0.0
    %718 = vmatpush1.xpose.msra.mxu0 0.0
    %719 = vmatprep.subr.mxu0 0.0
    %720 = vmatpush1.xpose.msra.mxu0 0.0
    %721 = vmatprep.subr.mxu0 0.0
    %722 = vmatpush1.xpose.msra.mxu0 0.0
    %723 = vmatprep.subr.mxu0 0.0
    %724 = vmatpush1.xpose.msra.mxu0 0.0
    %725 = vmatprep.subr.mxu0 0.0
    %726 = vmatpush1.xpose.msra.mxu0 0.0
    %727 = vmatprep.subr.mxu0 0.0
    %728 = vmatpush1.xpose.msra.mxu0 0.0
    %729 = vmatprep.subr.mxu0 0.0
    %730 = vmatpush1.xpose.msra.mxu0 0.0
    %731 = vmatprep.subr.mxu0 0.0
    %732 = vmatpush1.xpose.msra.mxu0 0.0
    %733 = vmatprep.subr.mxu0 0.0
    %734 = vmatpush1.xpose.msra.mxu0 0.0
    %735 = vmatprep.subr.mxu0 0.0
    %736 = vmatpush1.xpose.msra.mxu0 0.0
    %737 = vmatprep.subr.mxu0 0.0
    %738 = vmatpush1.xpose.msra.mxu0 0.0
    %739 = vmatprep.subr.mxu0 0.0
    %740 = vmatpush1.xpose.msra.mxu0 0.0
    %741 = vmatprep.subr.mxu0 0.0
    %742 = vmatpush1.xpose.msra.mxu0 0.0
    %743 = vmatprep.subr.mxu0 0.0
    %744 = vmatpush1.xpose.msra.mxu0 0.0
    %745 = vmatprep.subr.mxu0 0.0
    %746 = vmatpush1.xpose.msra.mxu0 0.0
    %747 = vmatprep.mubr.f32.mxu0 0.0
    %748 = vmatmul.mubr.f32.gmra.mrb[0].mxu0 %v679
    %v749 = vpop.f32.mrb[0].mxu0
    %v750 = vadd.f32 0.0, %v749
    %v751 = vpop.f32.mrb[0].mxu0
    %752 = vdwg.mxu0
    %753 = vrot.lane.b32.xlu0 %v340, 112
    %v754 = vpop.permute.xlu0 %753
    %755 = vrot.lane.b32.xlu0 %v340, 80
    %v756 = vpop.permute.xlu0 %755
    %v757 = vsel %vm346, %v754, 0
    %v759 = vsel %vm346, %v756, 0
    %761 = vmatprep.subr.mxu0 0.0
    %762 = vmatpush1.xpose.msra.mxu0 %v759
    %763 = vmatprep.subr.mxu0 0.0
    %764 = vmatpush1.xpose.msra.mxu0 0.0
    %765 = vmatprep.subr.mxu0 0.0
    %766 = vmatpush1.xpose.msra.mxu0 0.0
    %767 = vmatprep.subr.mxu0 0.0
    %768 = vmatpush1.xpose.msra.mxu0 0.0
    %769 = vmatprep.subr.mxu0 0.0
    %770 = vmatpush1.xpose.msra.mxu0 0.0
    %771 = vmatprep.subr.mxu0 0.0
    %772 = vmatpush1.xpose.msra.mxu0 0.0
    %773 = vmatprep.subr.mxu0 0.0
    %774 = vmatpush1.xpose.msra.mxu0 0.0
    %775 = vmatprep.subr.mxu0 0.0
    %776 = vmatpush1.xpose.msra.mxu0 0.0
    %777 = vmatprep.subr.mxu0 0.0
    %778 = vmatpush1.xpose.msra.mxu0 0.0
    %779 = vmatprep.subr.mxu0 0.0
    %780 = vmatpush1.xpose.msra.mxu0 0.0
    %781 = vmatprep.subr.mxu0 0.0
    %782 = vmatpush1.xpose.msra.mxu0 0.0
    %783 = vmatprep.subr.mxu0 0.0
    %784 = vmatpush1.xpose.msra.mxu0 0.0
    %785 = vmatprep.subr.mxu0 0.0
    %786 = vmatpush1.xpose.msra.mxu0 0.0
    %787 = vmatprep.subr.mxu0 0.0
    %788 = vmatpush1.xpose.msra.mxu0 0.0
    %789 = vmatprep.subr.mxu0 0.0
    %790 = vmatpush1.xpose.msra.mxu0 0.0
    %791 = vmatprep.subr.mxu0 0.0
    %792 = vmatpush1.xpose.msra.mxu0 0.0
    %793 = vmatprep.subr.mxu0 0.0
    %794 = vmatpush1.xpose.msra.mxu0 0.0
    %795 = vmatprep.subr.mxu0 0.0
    %796 = vmatpush1.xpose.msra.mxu0 0.0
    %797 = vmatprep.subr.mxu0 0.0
    %798 = vmatpush1.xpose.msra.mxu0 0.0
    %799 = vmatprep.subr.mxu0 0.0
    %800 = vmatpush1.xpose.msra.mxu0 0.0
    %801 = vmatprep.subr.mxu0 0.0
    %802 = vmatpush1.xpose.msra.mxu0 0.0
    %803 = vmatprep.subr.mxu0 0.0
    %804 = vmatpush1.xpose.msra.mxu0 0.0
    %805 = vmatprep.subr.mxu0 0.0
    %806 = vmatpush1.xpose.msra.mxu0 0.0
    %807 = vmatprep.subr.mxu0 0.0
    %808 = vmatpush1.xpose.msra.mxu0 0.0
    %809 = vmatprep.subr.mxu0 0.0
    %810 = vmatpush1.xpose.msra.mxu0 0.0
    %811 = vmatprep.subr.mxu0 0.0
    %812 = vmatpush1.xpose.msra.mxu0 0.0
    %813 = vmatprep.subr.mxu0 0.0
    %814 = vmatpush1.xpose.msra.mxu0 0.0
    %815 = vmatprep.subr.mxu0 0.0
    %816 = vmatpush1.xpose.msra.mxu0 0.0
    %817 = vmatprep.subr.mxu0 0.0
    %818 = vmatpush1.xpose.msra.mxu0 0.0
    %819 = vmatprep.subr.mxu0 0.0
    %820 = vmatpush1.xpose.msra.mxu0 0.0
    %821 = vmatprep.subr.mxu0 0.0
    %822 = vmatpush1.xpose.msra.mxu0 0.0
    %823 = vmatprep.subr.mxu0 0.0
    %824 = vmatpush1.xpose.msra.mxu0 0.0
    %825 = vmatprep.mubr.f32.mxu0 0.0
    %826 = vmatmul.mubr.f32.gmra.mrb[0].mxu0 %v757
    %v827 = vpop.f32.mrb[0].mxu0
    %v828 = vadd.f32 0.0, %v827
    %v829 = vpop.f32.mrb[0].mxu0
    %830 = vdwg.mxu0
    %v831 = vmul.f32 %v750, 0.25
    %v832 = vmul.f32 %v828, 0.25
    %v833 = vsel %vm500, %v831, -inf
    %834 = vmax.xlane.f32.xlu0 %v833
    %v835 = vpop.xlane.xlu0 %834
    %v836 = vsel %vm500, %v832, -inf
    %837 = vmax.xlane.f32.xlu0 %v836
    %v838 = vpop.xlane.xlu0 %837
    %v839 = vsub.f32 %v831, %v835
    %v840 = vsub.f32 %v832, %v838
    %v841 = vmul.f32 %v839, 1.442695
    %v842 = vpow.pop %v841
    %v843 = vmul.f32 %v840, 1.442695
    %v844 = vpow.pop %v843
    %v845 = vsel %vm500, %v842, 0.0
    %846 = vadd.xlane.f32.xlu0 %v845
    %v847 = vpop.xlane.xlu0 %846
    %v848 = vsel %vm500, %v844, 0.0
    %849 = vadd.xlane.f32.xlu0 %v848
    %v850 = vpop.xlane.xlu0 %849
    %v851 = vrcp.pop %v847
    %v852 = vmul.f32 %v842, %v851
    %v853 = vrcp.pop %v850
    %v854 = vmul.f32 %v844, %v853
    %855 = vrot.lane.b32.xlu0 %v335, 48
    %v856 = vpop.permute.xlu0 %855
    %v859 = vsel %vm500, %v852, 0
    %861 = vmatprep.subr.mxu0 0.0
    %862 = vmatpush1.msra.mxu0 %v856
    %863 = vmatprep.subr.mxu0 0.0
    %864 = vmatpush1.msra.mxu0 0.0
    %865 = vmatprep.subr.mxu0 0.0
    %866 = vmatpush1.msra.mxu0 0.0
    %867 = vmatprep.subr.mxu0 0.0
    %868 = vmatpush1.msra.mxu0 0.0
    %869 = vmatprep.subr.mxu0 0.0
    %870 = vmatpush1.msra.mxu0 0.0
    %871 = vmatprep.subr.mxu0 0.0
    %872 = vmatpush1.msra.mxu0 0.0
    %873 = vmatprep.subr.mxu0 0.0
    %874 = vmatpush1.msra.mxu0 0.0
    %875 = vmatprep.subr.mxu0 0.0
    %876 = vmatpush1.msra.mxu0 0.0
    %877 = vmatprep.subr.mxu0 0.0
    %878 = vmatpush1.msra.mxu0 0.0
    %879 = vmatprep.subr.mxu0 0.0
    %880 = vmatpush1.msra.mxu0 0.0
    %881 = vmatprep.subr.mxu0 0.0
    %882 = vmatpush1.msra.mxu0 0.0
    %883 = vmatprep.subr.mxu0 0.0
    %884 = vmatpush1.msra.mxu0 0.0
    %885 = vmatprep.subr.mxu0 0.0
    %886 = vmatpush1.msra.mxu0 0.0
    %887 = vmatprep.subr.mxu0 0.0
    %888 = vmatpush1.msra.mxu0 0.0
    %889 = vmatprep.subr.mxu0 0.0
    %890 = vmatpush1.msra.mxu0 0.0
    %891 = vmatprep.subr.mxu0 0.0
    %892 = vmatpush1.msra.mxu0 0.0
    %893 = vmatprep.subr.mxu0 0.0
    %894 = vmatpush1.msra.mxu0 0.0
    %895 = vmatprep.subr.mxu0 0.0
    %896 = vmatpush1.msra.mxu0 0.0
    %897 = vmatprep.subr.mxu0 0.0
    %898 = vmatpush1.msra.mxu0 0.0
    %899 = vmatprep.subr.mxu0 0.0
    %900 = vmatpush1.msra.mxu0 0.0
    %901 = vmatprep.subr.mxu0 0.0
    %902 = vmatpush1.msra.mxu0 0.0
    %903 = vmatprep.subr.mxu0 0.0
    %904 = vmatpush1.msra.mxu0 0.0
    %905 = vmatprep.subr.mxu0 0.0
    %906 = vmatpush1.msra.mxu0 0.0
    %907 = vmatprep.subr.mxu0 0.0
    %908 = vmatpush1.msra.mxu0 0.0
    %909 = vmatprep.subr.mxu0 0.0
    %910 = vmatpush1.msra.mxu0 0.0
    %911 = vmatprep.subr.mxu0 0.0
    %912 = vmatpush1.msra.mxu0 0.0
    %913 = vmatprep.subr.mxu0 0.0
    %914 = vmatpush1.msra.mxu0 0.0
    %915 = vmatprep.subr.mxu0 0.0
    %916 = vmatpush1.msra.mxu0 0.0
    %917 = vmatprep.subr.mxu0 0.0
    %918 = vmatpush1.msra.mxu0 0.0
    %919 = vmatprep.subr.mxu0 0.0
    %920 = vmatpush1.msra.mxu0 0.0
    %921 = vmatprep.subr.mxu0 0.0
    %922 = vmatpush1.msra.mxu0 0.0
    %923 = vmatprep.subr.mxu0 0.0
    %924 = vmatpush1.msra.mxu0 0.0
    %925 = vmatprep.mubr.f32.mxu0 0.0
    %926 = vmatmul.mubr.f32.gmra.mrb[0].mxu0 %v859
    %v927 = vpop.f32.mrb[0].mxu0
    %v928 = vadd.f32 0.0, %v927
    %v929 = vpop.f32.mrb[0].mxu0
    %930 = vdwg.mxu0
    %931 = vrot.lane.b32.xlu0 %v340, 48
    %v932 = vpop.permute.xlu0 %931
    %v935 = vsel %vm500, %v854, 0
    %937 = vmatprep.subr.mxu0 0.0
    %938 = vmatpush1.msra.mxu0 %v932
    %939 = vmatprep.subr.mxu0 0.0
    %940 = vmatpush1.msra.mxu0 0.0
    %941 = vmatprep.subr.mxu0 0.0
    %942 = vmatpush1.msra.mxu0 0.0
    %943 = vmatprep.subr.mxu0 0.0
    %944 = vmatpush1.msra.mxu0 0.0
    %945 = vmatprep.subr.mxu0 0.0
    %946 = vmatpush1.msra.mxu0 0.0
    %947 = vmatprep.subr.mxu0 0.0
    %948 = vmatpush1.msra.mxu0 0.0
    %949 = vmatprep.subr.mxu0 0.0
    %950 = vmatpush1.msra.mxu0 0.0
    %951 = vmatprep.subr.mxu0 0.0
    %952 = vmatpush1.msra.mxu0 0.0
    %953 = vmatprep.subr.mxu0 0.0
    %954 = vmatpush1.msra.mxu0 0.0
    %955 = vmatprep.subr.mxu0 0.0
    %956 = vmatpush1.msra.mxu0 0.0
    %957 = vmatprep.subr.mxu0 0.0
    %958 = vmatpush1.msra.mxu0 0.0
    %959 = vmatprep.subr.mxu0 0.0
    %960 = vmatpush1.msra.mxu0 0.0
    %961 = vmatprep.subr.mxu0 0.0
    %962 = vmatpush1.msra.mxu0 0.0
    %963 = vmatprep.subr.mxu0 0.0
    %964 = vmatpush1.msra.mxu0 0.0
    %965 = vmatprep.subr.mxu0 0.0
    %966 = vmatpush1.msra.mxu0 0.0
    %967 = vmatprep.subr.mxu0 0.0
    %968 = vmatpush1.msra.mxu0 0.0
    %969 = vmatprep.subr.mxu0 0.0
    %970 = vmatpush1.msra.mxu0 0.0
    %971 = vmatprep.subr.mxu0 0.0
    %972 = vmatpush1.msra.mxu0 0.0
    %973 = vmatprep.subr.mxu0 0.0
    %974 = vmatpush1.msra.mxu0 0.0
    %975 = vmatprep.subr.mxu0 0.0
    %976 = vmatpush1.msra.mxu0 0.0
    %977 = vmatprep.subr.mxu0 0.0
    %978 = vmatpush1.msra.mxu0 0.0
    %979 = vmatprep.subr.mxu0 0.0
    %980 = vmatpush1.msra.mxu0 0.0
    %981 = vmatprep.subr.mxu0 0.0
    %982 = vmatpush1.msra.mxu0 0.0
    %983 = vmatprep.subr.mxu0 0.0
    %984 = vmatpush1.msra.mxu0 0.0
    %985 = vmatprep.subr.mxu0 0.0
    %986 = vmatpush1.msra.mxu0 0.0
    %987 = vmatprep.subr.mxu0 0.0
    %988 = vmatpush1.msra.mxu0 0.0
    %989 = vmatprep.subr.mxu0 0.0
    %990 = vmatpush1.msra.mxu0 0.0
    %991 = vmatprep.subr.mxu0 0.0
    %992 = vmatpush1.msra.mxu0 0.0
    %993 = vmatprep.subr.mxu0 0.0
    %994 = vmatpush1.msra.mxu0 0.0
    %995 = vmatprep.subr.mxu0 0.0
    %996 = vmatpush1.msra.mxu0 0.0
    %997 = vmatprep.subr.mxu0 0.0
    %998 = vmatpush1.msra.mxu0 0.0
    %999 = vmatprep.subr.mxu0 0.0
    %1000 = vmatpush1.msra.mxu0 0.0
    %1001 = vmatprep.mubr.f32.mxu0 0.0
    %1002 = vmatmul.mubr.f32.gmra.mrb[0].mxu0 %v935
    %v1003 = vpop.f32.mrb[0].mxu0
    %v1004 = vadd.f32 0.0, %v1003
    %v1005 = vpop.f32.mrb[0].mxu0
    %1006 = vdwg.mxu0
    %v1008 = vsel %vm346, %v928, 0
    %v1011 = vsel %vm346, %v1004, 0
    %1013 = vmatprep.subr.mxu0 0.0
    %1014 = vmatpush1.msra.mxu0 %v234
    %1015 = vmatprep.subr.mxu0 0.0
    %1016 = vmatpush1.msra.mxu0 %v235
    %1017 = vmatprep.subr.mxu0 0.0
    %1018 = vmatpush1.msra.mxu0 0.0
    %1019 = vmatprep.subr.mxu0 0.0
    %1020 = vmatpush1.msra.mxu0 0.0
    %1021 = vmatprep.subr.mxu0 0.0
    %1022 = vmatpush1.msra.mxu0 0.0
    %1023 = vmatprep.subr.mxu0 0.0
    %1024 = vmatpush1.msra.mxu0 0.0
    %1025 = vmatprep.subr.mxu0 0.0
    %1026 = vmatpush1.msra.mxu0 0.0
    %1027 = vmatprep.subr.mxu0 0.0
    %1028 = vmatpush1.msra.mxu0 0.0
    %1029 = vmatprep.subr.mxu0 0.0
    %1030 = vmatpush1.msra.mxu0 0.0
    %1031 = vmatprep.subr.mxu0 0.0
    %1032 = vmatpush1.msra.mxu0 0.0
    %1033 = vmatprep.subr.mxu0 0.0
    %1034 = vmatpush1.msra.mxu0 0.0
    %1035 = vmatprep.subr.mxu0 0.0
    %1036 = vmatpush1.msra.mxu0 0.0
    %1037 = vmatprep.subr.mxu0 0.0
    %1038 = vmatpush1.msra.mxu0 0.0
    %1039 = vmatprep.subr.mxu0 0.0
    %1040 = vmatpush1.msra.mxu0 0.0
    %1041 = vmatprep.subr.mxu0 0.0
    %1042 = vmatpush1.msra.mxu0 0.0
    %1043 = vmatprep.subr.mxu0 0.0
    %1044 = vmatpush1.msra.mxu0 0.0
    %1045 = vmatprep.subr.mxu0 0.0
    %1046 = vmatpush1.msra.mxu0 0.0
    %1047 = vmatprep.subr.mxu0 0.0
    %1048 = vmatpush1.msra.mxu0 0.0
    %1049 = vmatprep.subr.mxu0 0.0
    %1050 = vmatpush1.msra.mxu0 0.0
    %1051 = vmatprep.subr.mxu0 0.0
    %1052 = vmatpush1.msra.mxu0 0.0
    %1053 = vmatprep.subr.mxu0 0.0
    %1054 = vmatpush1.msra.mxu0 0.0
    %1055 = vmatprep.subr.mxu0 0.0
    %1056 = vmatpush1.msra.mxu0 0.0
    %1057 = vmatprep.subr.mxu0 0.0
    %1058 = vmatpush1.msra.mxu0 0.0
    %1059 = vmatprep.subr.mxu0 0.0
    %1060 = vmatpush1.msra.mxu0 0.0
    %1061 = vmatprep.subr.mxu0 0.0
    %1062 = vmatpush1.msra.mxu0 0.0
    %1063 = vmatprep.subr.mxu0 0.0
    %1064 = vmatpush1.msra.mxu0 0.0
    %1065 = vmatprep.subr.mxu0 0.0
    %1066 = vmatpush1.msra.mxu0 0.0
    %1067 = vmatprep.subr.mxu0 0.0
    %1068 = vmatpush1.msra.mxu0 0.0
    %1069 = vmatprep.subr.mxu0 0.0
    %1070 = vmatpush1.msra.mxu0 0.0
    %1071 = vmatprep.subr.mxu0 0.0
    %1072 = vmatpush1.msra.mxu0 0.0
    %1073 = vmatprep.subr.mxu0 0.0
    %1074 = vmatpush1.msra.mxu0 0.0
    %1075 = vmatprep.subr.mxu0 0.0
    %1076 = vmatpush1.msra.mxu0 0.0
    %1077 = vmatprep.mubr.f32.mxu0 0.0
    %1078 = vmatmul.mubr.f32.gmra.mrb[0].mxu0 %v1008
    %v1079 = vpop.f32.mrb[0].mxu0
    %v1080 = vadd.f32 0.0, %v1079
    %v1081 = vpop.f32.mrb[0].mxu0
    %1082 = vmatprep.mubr.f32.mxu0 0.0
    %1083 = vmatmul.mubr.f32.gmra.mrb[0].mxu0 %v1011
    %v1084 = vpop.f32.mrb[0].mxu0
    %v1085 = vadd.f32 0.0, %v1084
    %v1086 = vpop.f32.mrb[0].mxu0
    %1087 = vdwg.mxu0
    %v1089 = vsel %vm346, %v596, 0
    %v1092 = vsel %vm346, %v672, 0
    %1094 = vmatprep.subr.mxu0 0.0
    %1095 = vmatpush1.msra.mxu0 %v232
    %1096 = vmatprep.subr.mxu0 0.0
    %1097 = vmatpush1.msra.mxu0 %v233
    %1098 = vmatprep.subr.mxu0 0.0
    %1099 = vmatpush1.msra.mxu0 0.0
    %1100 = vmatprep.subr.mxu0 0.0
    %1101 = vmatpush1.msra.mxu0 0.0
    %1102 = vmatprep.subr.mxu0 0.0
    %1103 = vmatpush1.msra.mxu0 0.0
    %1104 = vmatprep.subr.mxu0 0.0
    %1105 = vmatpush1.msra.mxu0 0.0
    %1106 = vmatprep.subr.mxu0 0.0
    %1107 = vmatpush1.msra.mxu0 0.0
    %1108 = vmatprep.subr.mxu0 0.0
    %1109 = vmatpush1.msra.mxu0 0.0
    %1110 = vmatprep.subr.mxu0 0.0
    %1111 = vmatpush1.msra.mxu0 0.0
    %1112 = vmatprep.subr.mxu0 0.0
    %1113 = vmatpush1.msra.mxu0 0.0
    %1114 = vmatprep.subr.mxu0 0.0
    %1115 = vmatpush1.msra.mxu0 0.0
    %1116 = vmatprep.subr.mxu0 0.0
    %1117 = vmatpush1.msra.mxu0 0.0
    %1118 = vmatprep.subr.mxu0 0.0
    %1119 = vmatpush1.msra.mxu0 0.0
    %1120 = vmatprep.subr.mxu0 0.0
    %1121 = vmatpush1.msra.mxu0 0.0
    %1122 = vmatprep.subr.mxu0 0.0
    %1123 = vmatpush1.msra.mxu0 0.0
    %1124 = vmatprep.subr.mxu0 0.0
    %1125 = vmatpush1.msra.mxu0 0.0
    %1126 = vmatprep.subr.mxu0 0.0
    %1127 = vmatpush1.msra.mxu0 0.0
    %1128 = vmatprep.subr.mxu0 0.0
    %1129 = vmatpush1.msra.mxu0 0.0
    %1130 = vmatprep.subr.mxu0 0.0
    %1131 = vmatpush1.msra.mxu0 0.0
    %1132 = vmatprep.subr.mxu0 0.0
    %1133 = vmatpush1.msra.mxu0 0.0
    %1134 = vmatprep.subr.mxu0 0.0
    %1135 = vmatpush1.msra.mxu0 0.0
    %1136 = vmatprep.subr.mxu0 0.0
    %1137 = vmatpush1.msra.mxu0 0.0
    %1138 = vmatprep.subr.mxu0 0.0
    %1139 = vmatpush1.msra.mxu0 0.0
    %1140 = vmatprep.subr.mxu0 0.0
    %1141 = vmatpush1.msra.mxu0 0.0
    %1142 = vmatprep.subr.mxu0 0.0
    %1143 = vmatpush1.msra.mxu0 0.0
    %1144 = vmatprep.subr.mxu0 0.0
    %1145 = vmatpush1.msra.mxu0 0.0
    %1146 = vmatprep.subr.mxu0 0.0
    %1147 = vmatpush1.msra.mxu0 0.0
    %1148 = vmatprep.subr.mxu0 0.0
    %1149 = vmatpush1.msra.mxu0 0.0
    %1150 = vmatprep.subr.mxu0 0.0
    %1151 = vmatpush1.msra.mxu0 0.0
    %1152 = vmatprep.subr.mxu0 0.0
    %1153 = vmatpush1.msra.mxu0 0.0
    %1154 = vmatprep.subr.mxu0 0.0
    %1155 = vmatpush1.msra.mxu0 0.0
    %1156 = vmatprep.subr.mxu0 0.0
    %1157 = vmatpush1.msra.mxu0 0.0
    %1158 = vmatprep.mubr.f32.mxu0 0.0
    %1159 = vmatmul.mubr.f32.gmra.mrb[0].mxu0 %v1089
    %v1160 = vpop.f32.mrb[0].mxu0
    %v1161 = vadd.f32 %v1080, %v1160
    %v1162 = vpop.f32.mrb[0].mxu0
    %1163 = vmatprep.mubr.f32.mxu0 0.0
    %1164 = vmatmul.mubr.f32.gmra.mrb[0].mxu0 %v1092
    %v1165 = vpop.f32.mrb[0].mxu0
    %v1166 = vadd.f32 %v1085, %v1165
    %v1167 = vpop.f32.mrb[0].mxu0
    %1168 = vdwg.mxu0
    %v1170 = vlaneseq
    %v1171 = vshrl.u32 %v1170, 7
    %v1172 = vsub.s32 0, %v1171
    %v1173 = vrot.slane %v236, %v1172
    %v1175 = vadd.f32 %v1161, %v1173
    %v1176 = vadd.f32 %v1166, %v1173
    %v1177 = vadd.f32 %v219, %v1175
    %v1178 = vadd.f32 %v224, %v1176
    %v1179 = vsel %vm261, %v1177, 0.0
    %1180 = vadd.xlane.f32.xlu0 %v1179
    %v1181 = vpop.xlane.xlu0 %1180
    %v1182 = vsel %vm261, %v1178, 0.0
    %1183 = vadd.xlane.f32.xlu0 %v1182
    %v1184 = vpop.xlane.xlu0 %1183
    %v1185 = vrcp.pop 32.0
    %v1186 = vmul.f32 %v1181, %v1185
    %v1187 = vmul.f32 %v1184, %v1185
    %v1188 = vsub.f32 %v1177, %v1186
    %v1189 = vsub.f32 %v1178, %v1187
    %v1190 = vmul.f32 %v1188, %v1188
    %v1191 = vmul.f32 %v1189, %v1189
    %v1192 = vsel %vm261, %v1190, 0.0
    %1193 = vadd.xlane.f32.xlu0 %v1192
    %v1194 = vpop.xlane.xlu0 %1193
    %v1195 = vsel %vm261, %v1191, 0.0
    %1196 = vadd.xlane.f32.xlu0 %v1195
    %v1197 = vpop.xlane.xlu0 %1196
    %v1198 = vmul.f32 %v1194, %v1185
    %v1199 = vmul.f32 %v1197, %v1185
    %v1200 = vadd.f32 %v1198, 1e-05
    %v1201 = vadd.f32 %v1199, 1e-05
    %v1202 = vrsqrt.pop %v1200
    %v1203 = vrsqrt.pop %v1201
    %v1204 = vmul.f32 %v1188, %v1202
    %v1205 = vmul.f32 %v1189, %v1203
    %v1207 = vlaneseq
    %v1208 = vshrl.u32 %v1207, 7
    %v1209 = vsub.s32 0, %v1208
    %v1210 = vrot.slane %v251, %v1209
    %v1212 = vmul.f32 %v1204, %v1210
    %v1213 = vmul.f32 %v1205, %v1210
    %v1215 = vlaneseq
    %v1216 = vshrl.u32 %v1215, 7
    %v1217 = vsub.s32 0, %v1216
    %v1218 = vrot.slane %v252, %v1217
    %v1220 = vadd.f32 %v1212, %v1218
    %v1221 = vadd.f32 %v1213, %v1218
    %v1223 = vlaneseq
    %v1224 = vshrl.u32 %v1223, 7
    %v1225 = vsub.s32 0, %v1224
    %v1226 = vrot.slane %v241, %v1225
    %v1229 = vsel %vm261, %v1220, 0
    %v1232 = vsel %vm261, %v1221, 0
    %1234 = vmatprep.subr.mxu0 0.0
    %1235 = vmatpush1.msra.mxu0 %v237
    %1236 = vmatprep.subr.mxu0 0.0
    %1237 = vmatpush1.msra.mxu0 %v238
    %1238 = vmatprep.subr.mxu0 0.0
    %1239 = vmatpush1.msra.mxu0 %v239
    %1240 = vmatprep.subr.mxu0 0.0
    %1241 = vmatpush1.msra.mxu0 %v240
    %1242 = vmatprep.subr.mxu0 0.0
    %1243 = vmatpush1.msra.mxu0 0.0
    %1244 = vmatprep.subr.mxu0 0.0
    %1245 = vmatpush1.msra.mxu0 0.0
    %1246 = vmatprep.subr.mxu0 0.0
    %1247 = vmatpush1.msra.mxu0 0.0
    %1248 = vmatprep.subr.mxu0 0.0
    %1249 = vmatpush1.msra.mxu0 0.0
    %1250 = vmatprep.subr.mxu0 0.0
    %1251 = vmatpush1.msra.mxu0 0.0
    %1252 = vmatprep.subr.mxu0 0.0
    %1253 = vmatpush1.msra.mxu0 0.0
    %1254 = vmatprep.subr.mxu0 0.0
    %1255 = vmatpush1.msra.mxu0 0.0
    %1256 = vmatprep.subr.mxu0 0.0
    %1257 = vmatpush1.msra.mxu0 0.0
    %1258 = vmatprep.subr.mxu0 0.0
    %1259 = vmatpush1.msra.mxu0 0.0
    %1260 = vmatprep.subr.mxu0 0.0
    %1261 = vmatpush1.msra.mxu0 0.0
    %1262 = vmatprep.subr.mxu0 0.0
    %1263 = vmatpush1.msra.mxu0 0.0
    %1264 = vmatprep.subr.mxu0 0.0
    %1265 = vmatpush1.msra.mxu0 0.0
    %1266 = vmatprep.subr.mxu0 0.0
    %1267 = vmatpush1.msra.mxu0 0.0
    %1268 = vmatprep.subr.mxu0 0.0
    %1269 = vmatpush1.msra.mxu0 0.0
    %1270 = vmatprep.subr.mxu0 0.0
    %1271 = vmatpush1.msra.mxu0 0.0
    %1272 = vmatprep.subr.mxu0 0.0
    %1273 = vmatpush1.msra.mxu0 0.0
    %1274 = vmatprep.subr.mxu0 0.0
    %1275 = vmatpush1.msra.mxu0 0.0
    %1276 = vmatprep.subr.mxu0 0.0
    %1277 = vmatpush1.msra.mxu0 0.0
    %1278 = vmatprep.subr.mxu0 0.0
    %1279 = vmatpush1.msra.mxu0 0.0
    %1280 = vmatprep.subr.mxu0 0.0
    %1281 = vmatpush1.msra.mxu0 0.0
    %1282 = vmatprep.subr.mxu0 0.0
    %1283 = vmatpush1.msra.mxu0 0.0
    %1284 = vmatprep.subr.mxu0 0.0
    %1285 = vmatpush1.msra.mxu0 0.0
    %1286 = vmatprep.subr.mxu0 0.0
    %1287 = vmatpush1.msra.mxu0 0.0
    %1288 = vmatprep.subr.mxu0 0.0
    %1289 = vmatpush1.msra.mxu0 0.0
    %1290 = vmatprep.subr.mxu0 0.0
    %1291 = vmatpush1.msra.mxu0 0.0
    %1292 = vmatprep.subr.mxu0 0.0
    %1293 = vmatpush1.msra.mxu0 0.0
    %1294 = vmatprep.subr.mxu0 0.0
    %1295 = vmatpush1.msra.mxu0 0.0
    %1296 = vmatprep.subr.mxu0 0.0
    %1297 = vmatpush1.msra.mxu0 0.0
    %1298 = vmatprep.mubr.f32.mxu0 0.0
    %1299 = vmatmul.mubr.f32.gmra.mrb[0].mxu0 %v1229
    %v1300 = vpop.f32.mrb[0].mxu0
    %v1301 = vadd.f32 %v1226, %v1300
    %v1302 = vpop.f32.mrb[0].mxu0
    %1303 = vmatprep.mubr.f32.mxu0 0.0
    %1304 = vmatmul.mubr.f32.gmra.mrb[0].mxu0 %v1232
    %v1305 = vpop.f32.mrb[0].mxu0
    %v1306 = vadd.f32 %v1226, %v1305
    %v1307 = vpop.f32.mrb[0].mxu0
    %1308 = vdwg.mxu0
    %v1309 = vmax.f32 %v1301, 0.0
    %v1310 = vmax.f32 %v1306, 0.0
    %v1312 = vlaneseq
    %v1313 = vshrl.u32 %v1312, 7
    %v1314 = vsub.s32 0, %v1313
    %v1315 = vrot.slane %v250, %v1314
    %vm1317 = vcmask 523264
    %v1319 = vsel %vm1317, %v1309, 0
    %v1322 = vsel %vm1317, %v1310, 0
    %1324 = vmatprep.subr.mxu0 0.0
    %1325 = vmatpush1.msra.mxu0 %v242
    %1326 = vmatprep.subr.mxu0 0.0
    %1327 = vmatpush1.msra.mxu0 %v243
    %1328 = vmatprep.subr.mxu0 0.0
    %1329 = vmatpush1.msra.mxu0 %v244
    %1330 = vmatprep.subr.mxu0 0.0
    %1331 = vmatpush1.msra.mxu0 %v245
    %1332 = vmatprep.subr.mxu0 0.0
    %1333 = vmatpush1.msra.mxu0 %v246
    %1334 = vmatprep.subr.mxu0 0.0
    %1335 = vmatpush1.msra.mxu0 %v247
    %1336 = vmatprep.subr.mxu0 0.0
    %1337 = vmatpush1.msra.mxu0 %v248
    %1338 = vmatprep.subr.mxu0 0.0
    %1339 = vmatpush1.msra.mxu0 %v249
    %1340 = vmatprep.subr.mxu0 0.0
    %1341 = vmatpush1.msra.mxu0 0.0
    %1342 = vmatprep.subr.mxu0 0.0
    %1343 = vmatpush1.msra.mxu0 0.0
    %1344 = vmatprep.subr.mxu0 0.0
    %1345 = vmatpush1.msra.mxu0 0.0
    %1346 = vmatprep.subr.mxu0 0.0
    %1347 = vmatpush1.msra.mxu0 0.0
    %1348 = vmatprep.subr.mxu0 0.0
    %1349 = vmatpush1.msra.mxu0 0.0
    %1350 = vmatprep.subr.mxu0 0.0
    %1351 = vmatpush1.msra.mxu0 0.0
    %1352 = vmatprep.subr.mxu0 0.0
    %1353 = vmatpush1.msra.mxu0 0.0
    %1354 = vmatprep.subr.mxu0 0.0
    %1355 = vmatpush1.msra.mxu0 0.0
    %1356 = vmatprep.subr.mxu0 0.0
    %1357 = vmatpush1.msra.mxu0 0.0
    %1358 = vmatprep.subr.mxu0 0.0
    %1359 = vmatpush1.msra.mxu0 0.0
    %1360 = vmatprep.subr.mxu0 0.0
    %1361 = vmatpush1.msra.mxu0 0.0
    %1362 = vmatprep.subr.mxu0 0.0
    %1363 = vmatpush1.msra.mxu0 0.0
    %1364 = vmatprep.subr.mxu0 0.0
    %1365 = vmatpush1.msra.mxu0 0.0
    %1366 = vmatprep.subr.mxu0 0.0
    %1367 = vmatpush1.msra.mxu0 0.0
    %1368 = vmatprep.subr.mxu0 0.0
    %1369 = vmatpush1.msra.mxu0 0.0
    %1370 = vmatprep.subr.mxu0 0.0
    %1371 = vmatpush1.msra.mxu0 0.0
    %1372 = vmatprep.subr.mxu0 0.0
    %1373 = vmatpush1.msra.mxu0 0.0
    %1374 = vmatprep.subr.mxu0 0.0
    %1375 = vmatpush1.msra.mxu0 0.0
    %1376 = vmatprep.subr.mxu0 0.0
    %1377 = vmatpush1.msra.mxu0 0.0
    %1378 = vmatprep.subr.mxu0 0.0
    %1379 = vmatpush1.msra.mxu0 0.0
    %1380 = vmatprep.subr.mxu0 0.0
    %1381 = vmatpush1.msra.mxu0 0.0
    %1382 = vmatprep.subr.mxu0 0.0
    %1383 = vmatpush1.msra.mxu0 0.0
    %1384 = vmatprep.subr.mxu0 0.0
    %1385 = vmatpush1.msra.mxu0 0.0
    %1386 = vmatprep.subr.mxu0 0.0
    %1387 = vmatpush1.msra.mxu0 0.0
    %1388 = vmatprep.mubr.f32.mxu0 0.0
    %1389 = vmatmul.mubr.f32.gmra.mrb[0].mxu0 %v1319
    %v1390 = vpop.f32.mrb[0].mxu0
    %v1391 = vadd.f32 %v1315, %v1390
    %v1392 = vpop.f32.mrb[0].mxu0
    %1393 = vmatprep.mubr.f32.mxu0 0.0
    %1394 = vmatmul.mubr.f32.gmra.mrb[0].mxu0 %v1322
    %v1395 = vpop.f32.mrb[0].mxu0
    %v1396 = vadd.f32 %v1315, %v1395
    %v1397 = vpop.f32.mrb[0].mxu0
    %1398 = vdwg.mxu0
    %v1399 = vadd.f32 %v1220, %v1391
    %v1400 = vadd.f32 %v1221, %v1396
    %v1401 = vsel %vm261, %v1399, 0.0
    %1402 = vadd.xlane.f32.xlu0 %v1401
    %v1403 = vpop.xlane.xlu0 %1402
    %v1404 = vsel %vm261, %v1400, 0.0
    %1405 = vadd.xlane.f32.xlu0 %v1404
    %v1406 = vpop.xlane.xlu0 %1405
    %v1407 = vmul.f32 %v1403, %v1185
    %v1408 = vmul.f32 %v1406, %v1185
    %v1409 = vsub.f32 %v1399, %v1407
    %v1410 = vsub.f32 %v1400, %v1408
    %v1411 = vmul.f32 %v1409, %v1409
    %v1412 = vmul.f32 %v1410, %v1410
    %v1413 = vsel %vm261, %v1411, 0.0
    %1414 = vadd.xlane.f32.xlu0 %v1413
    %v1415 = vpop.xlane.xlu0 %1414
    %v1416 = vsel %vm261, %v1412, 0.0
    %1417 = vadd.xlane.f32.xlu0 %v1416
    %v1418 = vpop.xlane.xlu0 %1417
    %v1419 = vmul.f32 %v1415, %v1185
    %v1420 = vmul.f32 %v1418, %v1185
    %v1421 = vadd.f32 %v1419, 1e-05
    %v1422 = vadd.f32 %v1420, 1e-05
    %v1423 = vrsqrt.pop %v1421
    %v1424 = vrsqrt.pop %v1422
    %v1425 = vmul.f32 %v1409, %v1423
    %v1426 = vmul.f32 %v1410, %v1424
    %v1428 = vlaneseq
    %v1429 = vshrl.u32 %v1428, 7
    %v1430 = vsub.s32 0, %v1429
    %v1431 = vrot.slane %v253, %v1430
    %v1433 = vmul.f32 %v1425, %v1431
    %v1434 = vmul.f32 %v1426, %v1431
    %v1436 = vlaneseq
    %v1437 = vshrl.u32 %v1436, 7
    %v1438 = vsub.s32 0, %v1437
    %v1439 = vrot.slane %v254, %v1438
    %v1441 = vadd.f32 %v1433, %v1439
    %v1442 = vadd.f32 %v1434, %v1439
    %v1443 = vld [vmem:[%s31] sm:$0xff]
    %v1444 = vld [vmem:[%s31 + $0x8] sm:$0xff]
    %v1445 = vld [vmem:[%s31 + $0x10] sm:$0xff]
    %v1446 = vld [vmem:[%s31 + $0x18] sm:$0xff]
    %v1447 = vld [vmem:[%s33] sm:$0x1]
    %v1448 = vld [vmem:[%s35] sm:$0xff]
    %v1449 = vld [vmem:[%s35 + $0x8] sm:$0xff]
    %v1450 = vld [vmem:[%s35 + $0x10] sm:$0xff]
    %v1451 = vld [vmem:[%s35 + $0x18] sm:$0xff]
    %v1452 = vld [vmem:[%s37] sm:$0x1]
    %v1453 = vld [vmem:[%s39] sm:$0xff]
    %v1454 = vld [vmem:[%s39 + $0x8] sm:$0xff]
    %v1455 = vld [vmem:[%s39 + $0x10] sm:$0xff]
    %v1456 = vld [vmem:[%s39 + $0x18] sm:$0xff]
    %v1457 = vld [vmem:[%s41] sm:$0x1]
    %v1458 = vld [vmem:[%s43] sm:$0xff]
    %v1459 = vld [vmem:[%s43 + $0x8] sm:$0xff]
    %v1460 = vld [vmem:[%s43 + $0x10] sm:$0xff]
    %v1461 = vld [vmem:[%s43 + $0x18] sm:$0xff]
    %v1462 = vld [vmem:[%s43 + $0x20] sm:$0xff]
    %v1463 = vld [vmem:[%s43 + $0x28] sm:$0xff]
    %v1464 = vld [vmem:[%s43 + $0x30] sm:$0xff]
    %v1465 = vld [vmem:[%s43 + $0x38] sm:$0xff]
    %v1466 = vld [vmem:[%s45] sm:$0x1]
    %v1467 = vld [vmem:[%s47] sm:$0x1]
    %v1468 = vld [vmem:[%s49] sm:$0x1]
    %v1469 = vld [vmem:[%s51] sm:$0x1]
    %v1470 = vld [vmem:[%s53] sm:$0x1]
    %v1472 = vlaneseq
    %v1473 = vshrl.u32 %v1472, 7
    %v1474 = vsub.s32 0, %v1473
    %v1475 = vrot.slane %v1447, %v1474
    %v1478 = vsel %vm261, %v1441, 0
    %v1481 = vsel %vm261, %v1442, 0
    %1483 = vmatprep.subr.mxu0 0.0
    %1484 = vmatpush1.msra.mxu0 %v1443
    %1485 = vmatprep.subr.mxu0 0.0
    %1486 = vmatpush1.msra.mxu0 %v1444
    %1487 = vmatprep.subr.mxu0 0.0
    %1488 = vmatpush1.msra.mxu0 %v1445
    %1489 = vmatprep.subr.mxu0 0.0
    %1490 = vmatpush1.msra.mxu0 %v1446
    %1491 = vmatprep.subr.mxu0 0.0
    %1492 = vmatpush1.msra.mxu0 0.0
    %1493 = vmatprep.subr.mxu0 0.0
    %1494 = vmatpush1.msra.mxu0 0.0
    %1495 = vmatprep.subr.mxu0 0.0
    %1496 = vmatpush1.msra.mxu0 0.0
    %1497 = vmatprep.subr.mxu0 0.0
    %1498 = vmatpush1.msra.mxu0 0.0
    %1499 = vmatprep.subr.mxu0 0.0
    %1500 = vmatpush1.msra.mxu0 0.0
    %1501 = vmatprep.subr.mxu0 0.0
    %1502 = vmatpush1.msra.mxu0 0.0
    %1503 = vmatprep.subr.mxu0 0.0
    %1504 = vmatpush1.msra.mxu0 0.0
    %1505 = vmatprep.subr.mxu0 0.0
    %1506 = vmatpush1.msra.mxu0 0.0
    %1507 = vmatprep.subr.mxu0 0.0
    %1508 = vmatpush1.msra.mxu0 0.0
    %1509 = vmatprep.subr.mxu0 0.0
    %1510 = vmatpush1.msra.mxu0 0.0
    %1511 = vmatprep.subr.mxu0 0.0
    %1512 = vmatpush1.msra.mxu0 0.0
    %1513 = vmatprep.subr.mxu0 0.0
    %1514 = vmatpush1.msra.mxu0 0.0
    %1515 = vmatprep.subr.mxu0 0.0
    %1516 = vmatpush1.msra.mxu0 0.0
    %1517 = vmatprep.subr.mxu0 0.0
    %1518 = vmatpush1.msra.mxu0 0.0
    %1519 = vmatprep.subr.mxu0 0.0
    %1520 = vmatpush1.msra.mxu0 0.0
    %1521 = vmatprep.subr.mxu0 0.0
    %1522 = vmatpush1.msra.mxu0 0.0
    %1523 = vmatprep.subr.mxu0 0.0
    %1524 = vmatpush1.msra.mxu0 0.0
    %1525 = vmatprep.subr.mxu0 0.0
    %1526 = vmatpush1.msra.mxu0 0.0
    %1527 = vmatprep.subr.mxu0 0.0
    %1528 = vmatpush1.msra.mxu0 0.0
    %1529 = vmatprep.subr.mxu0 0.0
    %1530 = vmatpush1.msra.mxu0 0.0
    %1531 = vmatprep.subr.mxu0 0.0
    %1532 = vmatpush1.msra.mxu0 0.0
    %1533 = vmatprep.subr.mxu0 0.0
    %1534 = vmatpush1.msra.mxu0 0.0
    %1535 = vmatprep.subr.mxu0 0.0
    %1536 = vmatpush1.msra.mxu0 0.0
    %1537 = vmatprep.subr.mxu0 0.0
    %1538 = vmatpush1.msra.mxu0 0.0
    %1539 = vmatprep.subr.mxu0 0.0
    %1540 = vmatpush1.msra.mxu0 0.0
    %1541 = vmatprep.subr.mxu0 0.0
    %1542 = vmatpush1.msra.mxu0 0.0
    %1543 = vmatprep.subr.mxu0 0.0
    %1544 = vmatpush1.msra.mxu0 0.0
    %1545 = vmatprep.subr.mxu0 0.0
    %1546 = vmatpush1.msra.mxu0 0.0
    %1547 = vmatprep.mubr.f32.mxu0 0.0
    %1548 = vmatmul.mubr.f32.gmra.mrb[0].mxu0 %v1478
    %v1549 = vpop.f32.mrb[0].mxu0
    %v1550 = vadd.f32 %v1475, %v1549
    %v1551 = vpop.f32.mrb[0].mxu0
    %1552 = vmatprep.mubr.f32.mxu0 0.0
    %1553 = vmatmul.mubr.f32.gmra.mrb[0].mxu0 %v1481
    %v1554 = vpop.f32.mrb[0].mxu0
    %v1555 = vadd.f32 %v1475, %v1554
    %v1556 = vpop.f32.mrb[0].mxu0
    %1557 = vdwg.mxu0
    %1559 = vrot.lane.b32.xlu0 %v1550, 96
    %v1560 = vpop.permute.xlu0 %1559
    %v1561 = vsel %vm346, %v1550, 0
    %v1563 = vsel %vm346, %v1560, 0
    %1565 = vmatprep.subr.mxu0 0.0
    %1566 = vmatpush1.xpose.msra.mxu0 %v1563
    %1567 = vmatprep.subr.mxu0 0.0
    %1568 = vmatpush1.xpose.msra.mxu0 0.0
    %1569 = vmatprep.subr.mxu0 0.0
    %1570 = vmatpush1.xpose.msra.mxu0 0.0
    %1571 = vmatprep.subr.mxu0 0.0
    %1572 = vmatpush1.xpose.msra.mxu0 0.0
    %1573 = vmatprep.subr.mxu0 0.0
    %1574 = vmatpush1.xpose.msra.mxu0 0.0
    %1575 = vmatprep.subr.mxu0 0.0
    %1576 = vmatpush1.xpose.msra.mxu0 0.0
    %1577 = vmatprep.subr.mxu0 0.0
    %1578 = vmatpush1.xpose.msra.mxu0 0.0
    %1579 = vmatprep.subr.mxu0 0.0
    %1580 = vmatpush1.xpose.msra.mxu0 0.0
    %1581 = vmatprep.subr.mxu0 0.0
    %1582 = vmatpush1.xpose.msra.mxu0 0.0
    %1583 = vmatprep.subr.mxu0 0.0
    %1584 = vmatpush1.xpose.msra.mxu0 0.0
    %1585 = vmatprep.subr.mxu0 0.0
    %1586 = vmatpush1.xpose.msra.mxu0 0.0
    %1587 = vmatprep.subr.mxu0 0.0
    %1588 = vmatpush1.xpose.msra.mxu0 0.0
    %1589 = vmatprep.subr.mxu0 0.0
    %1590 = vmatpush1.xpose.msra.mxu0 0.0
    %1591 = vmatprep.subr.mxu0 0.0
    %1592 = vmatpush1.xpose.msra.mxu0 0.0
    %1593 = vmatprep.subr.mxu0 0.0
    %1594 = vmatpush1.xpose.msra.mxu0 0.0
    %1595 = vmatprep.subr.mxu0 0.0
    %1596 = vmatpush1.xpose.msra.mxu0 0.0
    %1597 = vmatprep.subr.mxu0 0.0
    %1598 = vmatpush1.xpose.msra.mxu0 0.0
    %1599 = vmatprep.subr.mxu0 0.0
    %1600 = vmatpush1.xpose.msra.mxu0 0.0
    %1601 = vmatprep.subr.mxu0 0.0
    %1602 = vmatpush1.xpose.msra.mxu0 0.0
    %1603 = vmatprep.subr.mxu0 0.0
    %1604 = vmatpush1.xpose.msra.mxu0 0.0
    %1605 = vmatprep.subr.mxu0 0.0
    %1606 = vmatpush1.xpose.msra.mxu0 0.0
    %1607 = vmatprep.subr.mxu0 0.0
    %1608 = vmatpush1.xpose.msra.mxu0 0.0
    %1609 = vmatprep.subr.mxu0 0.0
    %1610 = vmatpush1.xpose.msra.mxu0 0.0
    %1611 = vmatprep.subr.mxu0 0.0
    %1612 = vmatpush1.xpose.msra.mxu0 0.0
    %1613 = vmatprep.subr.mxu0 0.0
    %1614 = vmatpush1.xpose.msra.mxu0 0.0
    %1615 = vmatprep.subr.mxu0 0.0
    %1616 = vmatpush1.xpose.msra.mxu0 0.0
    %1617 = vmatprep.subr.mxu0 0.0
    %1618 = vmatpush1.xpose.msra.mxu0 0.0
    %1619 = vmatprep.subr.mxu0 0.0
    %1620 = vmatpush1.xpose.msra.mxu0 0.0
    %1621 = vmatprep.subr.mxu0 0.0
    %1622 = vmatpush1.xpose.msra.mxu0 0.0
    %1623 = vmatprep.subr.mxu0 0.0
    %1624 = vmatpush1.xpose.msra.mxu0 0.0
    %1625 = vmatprep.subr.mxu0 0.0
    %1626 = vmatpush1.xpose.msra.mxu0 0.0
    %1627 = vmatprep.subr.mxu0 0.0
    %1628 = vmatpush1.xpose.msra.mxu0 0.0
    %1629 = vmatprep.mubr.f32.mxu0 0.0
    %1630 = vmatmul.mubr.f32.gmra.mrb[0].mxu0 %v1561
    %v1631 = vpop.f32.mrb[0].mxu0
    %v1632 = vadd.f32 0.0, %v1631
    %v1633 = vpop.f32.mrb[0].mxu0
    %1634 = vdwg.mxu0
    %1636 = vrot.lane.b32.xlu0 %v1555, 96
    %v1637 = vpop.permute.xlu0 %1636
    %v1638 = vsel %vm346, %v1555, 0
    %v1640 = vsel %vm346, %v1637, 0
    %1642 = vmatprep.subr.mxu0 0.0
    %1643 = vmatpush1.xpose.msra.mxu0 %v1640
    %1644 = vmatprep.subr.mxu0 0.0
    %1645 = vmatpush1.xpose.msra.mxu0 0.0
    %1646 = vmatprep.subr.mxu0 0.0
    %1647 = vmatpush1.xpose.msra.mxu0 0.0
    %1648 = vmatprep.subr.mxu0 0.0
    %1649 = vmatpush1.xpose.msra.mxu0 0.0
    %1650 = vmatprep.subr.mxu0 0.0
    %1651 = vmatpush1.xpose.msra.mxu0 0.0
    %1652 = vmatprep.subr.mxu0 0.0
    %1653 = vmatpush1.xpose.msra.mxu0 0.0
    %1654 = vmatprep.subr.mxu0 0.0
    %1655 = vmatpush1.xpose.msra.mxu0 0.0
    %1656 = vmatprep.subr.mxu0 0.0
    %1657 = vmatpush1.xpose.msra.mxu0 0.0
    %1658 = vmatprep.subr.mxu0 0.0
    %1659 = vmatpush1.xpose.msra.mxu0 0.0
    %1660 = vmatprep.subr.mxu0 0.0
    %1661 = vmatpush1.xpose.msra.mxu0 0.0
    %1662 = vmatprep.subr.mxu0 0.0
    %1663 = vmatpush1.xpose.msra.mxu0 0.0
    %1664 = vmatprep.subr.mxu0 0.0
    %1665 = vmatpush1.xpose.msra.mxu0 0.0
    %1666 = vmatprep.subr.mxu0 0.0
    %1667 = vmatpush1.xpose.msra.mxu0 0.0
    %1668 = vmatprep.subr.mxu0 0.0
    %1669 = vmatpush1.xpose.msra.mxu0 0.0
    %1670 = vmatprep.subr.mxu0 0.0
    %1671 = vmatpush1.xpose.msra.mxu0 0.0
    %1672 = vmatprep.subr.mxu0 0.0
    %1673 = vmatpush1.xpose.msra.mxu0 0.0
    %1674 = vmatprep.subr.mxu0 0.0
    %1675 = vmatpush1.xpose.msra.mxu0 0.0
    %1676 = vmatprep.subr.mxu0 0.0
    %1677 = vmatpush1.xpose.msra.mxu0 0.0
    %1678 = vmatprep.subr.mxu0 0.0
    %1679 = vmatpush1.xpose.msra.mxu0 0.0
    %1680 = vmatprep.subr.mxu0 0.0
    %1681 = vmatpush1.xpose.msra.mxu0 0.0
    %1682 = vmatprep.subr.mxu0 0.0
    %1683 = vmatpush1.xpose.msra.mxu0 0.0
    %1684 = vmatprep.subr.mxu0 0.0
    %1685 = vmatpush1.xpose.msra.mxu0 0.0
    %1686 = vmatprep.subr.mxu0 0.0
    %1687 = vmatpush1.xpose.msra.mxu0 0.0
    %1688 = vmatprep.subr.mxu0 0.0
    %1689 = vmatpush1.xpose.msra.mxu0 0.0
    %1690 = vmatprep.subr.mxu0 0.0
    %1691 = vmatpush1.xpose.msra.mxu0 0.0
    %1692 = vmatprep.subr.mxu0 0.0
    %1693 = vmatpush1.xpose.msra.mxu0 0.0
    %1694 = vmatprep.subr.mxu0 0.0
    %1695 = vmatpush1.xpose.msra.mxu0 0.0
    %1696 = vmatprep.subr.mxu0 0.0
    %1697 = vmatpush1.xpose.msra.mxu0 0.0
    %1698 = vmatprep.subr.mxu0 0.0
    %1699 = vmatpush1.xpose.msra.mxu0 0.0
    %1700 = vmatprep.subr.mxu0 0.0
    %1701 = vmatpush1.xpose.msra.mxu0 0.0
    %1702 = vmatprep.subr.mxu0 0.0
    %1703 = vmatpush1.xpose.msra.mxu0 0.0
    %1704 = vmatprep.subr.mxu0 0.0
    %1705 = vmatpush1.xpose.msra.mxu0 0.0
    %1706 = vmatprep.mubr.f32.mxu0 0.0
    %1707 = vmatmul.mubr.f32.gmra.mrb[0].mxu0 %v1638
    %v1708 = vpop.f32.mrb[0].mxu0
    %v1709 = vadd.f32 0.0, %v1708
    %v1710 = vpop.f32.mrb[0].mxu0
    %1711 = vdwg.mxu0
    %v1712 = vmul.f32 %v1632, 0.25
    %v1713 = vmul.f32 %v1709, 0.25
    %v1714 = vsel %vm500, %v1712, -inf
    %1715 = vmax.xlane.f32.xlu0 %v1714
    %v1716 = vpop.xlane.xlu0 %1715
    %v1717 = vsel %vm500, %v1713, -inf
    %1718 = vmax.xlane.f32.xlu0 %v1717
    %v1719 = vpop.xlane.xlu0 %1718
    %v1720 = vsub.f32 %v1712, %v1716
    %v1721 = vsub.f32 %v1713, %v1719
    %v1722 = vmul.f32 %v1720, 1.442695
    %v1723 = vpow.pop %v1722
    %v1724 = vmul.f32 %v1721, 1.442695
    %v1725 = vpow.pop %v1724
    %v1726 = vsel %vm500, %v1723, 0.0
    %1727 = vadd.xlane.f32.xlu0 %v1726
    %v1728 = vpop.xlane.xlu0 %1727
    %v1729 = vsel %vm500, %v1725, 0.0
    %1730 = vadd.xlane.f32.xlu0 %v1729
    %v1731 = vpop.xlane.xlu0 %1730
    %v1732 = vrcp.pop %v1728
    %v1733 = vmul.f32 %v1723, %v1732
    %v1734 = vrcp.pop %v1731
    %v1735 = vmul.f32 %v1725, %v1734
    %1736 = vrot.lane.b32.xlu0 %v1550, 64
    %v1737 = vpop.permute.xlu0 %1736
    %v1740 = vsel %vm500, %v1733, 0
    %1742 = vmatprep.subr.mxu0 0.0
    %1743 = vmatpush1.msra.mxu0 %v1737
    %1744 = vmatprep.subr.mxu0 0.0
    %1745 = vmatpush1.msra.mxu0 0.0
    %1746 = vmatprep.subr.mxu0 0.0
    %1747 = vmatpush1.msra.mxu0 0.0
    %1748 = vmatprep.subr.mxu0 0.0
    %1749 = vmatpush1.msra.mxu0 0.0
    %1750 = vmatprep.subr.mxu0 0.0
    %1751 = vmatpush1.msra.mxu0 0.0
    %1752 = vmatprep.subr.mxu0 0.0
    %1753 = vmatpush1.msra.mxu0 0.0
    %1754 = vmatprep.subr.mxu0 0.0
    %1755 = vmatpush1.msra.mxu0 0.0
    %1756 = vmatprep.subr.mxu0 0.0
    %1757 = vmatpush1.msra.mxu0 0.0
    %1758 = vmatprep.subr.mxu0 0.0
    %1759 = vmatpush1.msra.mxu0 0.0
    %1760 = vmatprep.subr.mxu0 0.0
    %1761 = vmatpush1.msra.mxu0 0.0
    %1762 = vmatprep.subr.mxu0 0.0
    %1763 = vmatpush1.msra.mxu0 0.0
    %1764 = vmatprep.subr.mxu0 0.0
    %1765 = vmatpush1.msra.mxu0 0.0
    %1766 = vmatprep.subr.mxu0 0.0
    %1767 = vmatpush1.msra.mxu0 0.0
    %1768 = vmatprep.subr.mxu0 0.0
    %1769 = vmatpush1.msra.mxu0 0.0
    %1770 = vmatprep.subr.mxu0 0.0
    %1771 = vmatpush1.msra.mxu0 0.0
    %1772 = vmatprep.subr.mxu0 0.0
    %1773 = vmatpush1.msra.mxu0 0.0
    %1774 = vmatprep.subr.mxu0 0.0
    %1775 = vmatpush1.msra.mxu0 0.0
    %1776 = vmatprep.subr.mxu0 0.0
    %1777 = vmatpush1.msra.mxu0 0.0
    %1778 = vmatprep.subr.mxu0 0.0
    %1779 = vmatpush1.msra.mxu0 0.0
    %1780 = vmatprep.subr.mxu0 0.0
    %1781 = vmatpush1.msra.mxu0 0.0
    %1782 = vmatprep.subr.mxu0 0.0
    %1783 = vmatpush1.msra.mxu0 0.0
    %1784 = vmatprep.subr.mxu0 0.0
    %1785 = vmatpush1.msra.mxu0 0.0
    %1786 = vmatprep.subr.mxu0 0.0
    %1787 = vmatpush1.msra.mxu0 0.0
    %1788 = vmatprep.subr.mxu0 0.0
    %1789 = vmatpush1.msra.mxu0 0.0
    %1790 = vmatprep.subr.mxu0 0.0
    %1791 = vmatpush1.msra.mxu0 0.0
    %1792 = vmatprep.subr.mxu0 0.0
    %1793 = vmatpush1.msra.mxu0 0.0
    %1794 = vmatprep.subr.mxu0 0.0
    %1795 = vmatpush1.msra.mxu0 0.0
    %1796 = vmatprep.subr.mxu0 0.0
    %1797 = vmatpush1.msra.mxu0 0.0
    %1798 = vmatprep.subr.mxu0 0.0
    %1799 = vmatpush1.msra.mxu0 0.0
    %1800 = vmatprep.subr.mxu0 0.0
    %1801 = vmatpush1.msra.mxu0 0.0
    %1802 = vmatprep.subr.mxu0 0.0
    %1803 = vmatpush1.msra.mxu0 0.0
    %1804 = vmatprep.subr.mxu0 0.0
    %1805 = vmatpush1.msra.mxu0 0.0
    %1806 = vmatprep.mubr.f32.mxu0 0.0
    %1807 = vmatmul.mubr.f32.gmra.mrb[0].mxu0 %v1740
    %v1808 = vpop.f32.mrb[0].mxu0
    %v1809 = vadd.f32 0.0, %v1808
    %v1810 = vpop.f32.mrb[0].mxu0
    %1811 = vdwg.mxu0
    %1812 = vrot.lane.b32.xlu0 %v1555, 64
    %v1813 = vpop.permute.xlu0 %1812
    %v1816 = vsel %vm500, %v1735, 0
    %1818 = vmatprep.subr.mxu0 0.0
    %1819 = vmatpush1.msra.mxu0 %v1813
    %1820 = vmatprep.subr.mxu0 0.0
    %1821 = vmatpush1.msra.mxu0 0.0
    %1822 = vmatprep.subr.mxu0 0.0
    %1823 = vmatpush1.msra.mxu0 0.0
    %1824 = vmatprep.subr.mxu0 0.0
    %1825 = vmatpush1.msra.mxu0 0.0
    %1826 = vmatprep.subr.mxu0 0.0
    %1827 = vmatpush1.msra.mxu0 0.0
    %1828 = vmatprep.subr.mxu0 0.0
    %1829 = vmatpush1.msra.mxu0 0.0
    %1830 = vmatprep.subr.mxu0 0.0
    %1831 = vmatpush1.msra.mxu0 0.0
    %1832 = vmatprep.subr.mxu0 0.0
    %1833 = vmatpush1.msra.mxu0 0.0
    %1834 = vmatprep.subr.mxu0 0.0
    %1835 = vmatpush1.msra.mxu0 0.0
    %1836 = vmatprep.subr.mxu0 0.0
    %1837 = vmatpush1.msra.mxu0 0.0
    %1838 = vmatprep.subr.mxu0 0.0
    %1839 = vmatpush1.msra.mxu0 0.0
    %1840 = vmatprep.subr.mxu0 0.0
    %1841 = vmatpush1.msra.mxu0 0.0
    %1842 = vmatprep.subr.mxu0 0.0
    %1843 = vmatpush1.msra.mxu0 0.0
    %1844 = vmatprep.subr.mxu0 0.0
    %1845 = vmatpush1.msra.mxu0 0.0
    %1846 = vmatprep.subr.mxu0 0.0
    %1847 = vmatpush1.msra.mxu0 0.0
    %1848 = vmatprep.subr.mxu0 0.0
    %1849 = vmatpush1.msra.mxu0 0.0
    %1850 = vmatprep.subr.mxu0 0.0
    %1851 = vmatpush1.msra.mxu0 0.0
    %1852 = vmatprep.subr.mxu0 0.0
    %1853 = vmatpush1.msra.mxu0 0.0
    %1854 = vmatprep.subr.mxu0 0.0
    %1855 = vmatpush1.msra.mxu0 0.0
    %1856 = vmatprep.subr.mxu0 0.0
    %1857 = vmatpush1.msra.mxu0 0.0
    %1858 = vmatprep.subr.mxu0 0.0
    %1859 = vmatpush1.msra.mxu0 0.0
    %1860 = vmatprep.subr.mxu0 0.0
    %1861 = vmatpush1.msra.mxu0 0.0
    %1862 = vmatprep.subr.mxu0 0.0
    %1863 = vmatpush1.msra.mxu0 0.0
    %1864 = vmatprep.subr.mxu0 0.0
    %1865 = vmatpush1.msra.mxu0 0.0
    %1866 = vmatprep.subr.mxu0 0.0
    %1867 = vmatpush1.msra.mxu0 0.0
    %1868 = vmatprep.subr.mxu0 0.0
    %1869 = vmatpush1.msra.mxu0 0.0
    %1870 = vmatprep.subr.mxu0 0.0
    %1871 = vmatpush1.msra.mxu0 0.0
    %1872 = vmatprep.subr.mxu0 0.0
    %1873 = vmatpush1.msra.mxu0 0.0
    %1874 = vmatprep.subr.mxu0 0.0
    %1875 = vmatpush1.msra.mxu0 0.0
    %1876 = vmatprep.subr.mxu0 0.0
    %1877 = vmatpush1.msra.mxu0 0.0
    %1878 = vmatprep.subr.mxu0 0.0
    %1879 = vmatpush1.msra.mxu0 0.0
    %1880 = vmatprep.subr.mxu0 0.0
    %1881 = vmatpush1.msra.mxu0 0.0
    %1882 = vmatprep.mubr.f32.mxu0 0.0
    %1883 = vmatmul.mubr.f32.gmra.mrb[0].mxu0 %v1816
    %v1884 = vpop.f32.mrb[0].mxu0
    %v1885 = vadd.f32 0.0, %v1884
    %v1886 = vpop.f32.mrb[0].mxu0
    %1887 = vdwg.mxu0
    %1888 = vrot.lane.b32.xlu0 %v1550, 112
    %v1889 = vpop.permute.xlu0 %1888
    %1890 = vrot.lane.b32.xlu0 %v1550, 80
    %v1891 = vpop.permute.xlu0 %1890
    %v1892 = vsel %vm346, %v1889, 0
    %v1894 = vsel %vm346, %v1891, 0
    %1896 = vmatprep.subr.mxu0 0.0
    %1897 = vmatpush1.xpose.msra.mxu0 %v1894
    %1898 = vmatprep.subr.mxu0 0.0
    %1899 = vmatpush1.xpose.msra.mxu0 0.0
    %1900 = vmatprep.subr.mxu0 0.0
    %1901 = vmatpush1.xpose.msra.mxu0 0.0
    %1902 = vmatprep.subr.mxu0 0.0
    %1903 = vmatpush1.xpose.msra.mxu0 0.0
    %1904 = vmatprep.subr.mxu0 0.0
    %1905 = vmatpush1.xpose.msra.mxu0 0.0
    %1906 = vmatprep.subr.mxu0 0.0
    %1907 = vmatpush1.xpose.msra.mxu0 0.0
    %1908 = vmatprep.subr.mxu0 0.0
    %1909 = vmatpush1.xpose.msra.mxu0 0.0
    %1910 = vmatprep.subr.mxu0 0.0
    %1911 = vmatpush1.xpose.msra.mxu0 0.0
    %1912 = vmatprep.subr.mxu0 0.0
    %1913 = vmatpush1.xpose.msra.mxu0 0.0
    %1914 = vmatprep.subr.mxu0 0.0
    %1915 = vmatpush1.xpose.msra.mxu0 0.0
    %1916 = vmatprep.subr.mxu0 0.0
    %1917 = vmatpush1.xpose.msra.mxu0 0.0
    %1918 = vmatprep.subr.mxu0 0.0
    %1919 = vmatpush1.xpose.msra.mxu0 0.0
    %1920 = vmatprep.subr.mxu0 0.0
    %1921 = vmatpush1.xpose.msra.mxu0 0.0
    %1922 = vmatprep.subr.mxu0 0.0
    %1923 = vmatpush1.xpose.msra.mxu0 0.0
    %1924 = vmatprep.subr.mxu0 0.0
    %1925 = vmatpush1.xpose.msra.mxu0 0.0
    %1926 = vmatprep.subr.mxu0 0.0
    %1927 = vmatpush1.xpose.msra.mxu0 0.0
    %1928 = vmatprep.subr.mxu0 0.0
    %1929 = vmatpush1.xpose.msra.mxu0 0.0
    %1930 = vmatprep.subr.mxu0 0.0
    %1931 = vmatpush1.xpose.msra.mxu0 0.0
    %1932 = vmatprep.subr.mxu0 0.0
    %1933 = vmatpush1.xpose.msra.mxu0 0.0
    %1934 = vmatprep.subr.mxu0 0.0
    %1935 = vmatpush1.xpose.msra.mxu0 0.0
    %1936 = vmatprep.subr.mxu0 0.0
    %1937 = vmatpush1.xpose.msra.mxu0 0.0
    %1938 = vmatprep.subr.mxu0 0.0
    %1939 = vmatpush1.xpose.msra.mxu0 0.0
    %1940 = vmatprep.subr.mxu0 0.0
    %1941 = vmatpush1.xpose.msra.mxu0 0.0
    %1942 = vmatprep.subr.mxu0 0.0
    %1943 = vmatpush1.xpose.msra.mxu0 0.0
    %1944 = vmatprep.subr.mxu0 0.0
    %1945 = vmatpush1.xpose.msra.mxu0 0.0
    %1946 = vmatprep.subr.mxu0 0.0
    %1947 = vmatpush1.xpose.msra.mxu0 0.0
    %1948 = vmatprep.subr.mxu0 0.0
    %1949 = vmatpush1.xpose.msra.mxu0 0.0
    %1950 = vmatprep.subr.mxu0 0.0
    %1951 = vmatpush1.xpose.msra.mxu0 0.0
    %1952 = vmatprep.subr.mxu0 0.0
    %1953 = vmatpush1.xpose.msra.mxu0 0.0
    %1954 = vmatprep.subr.mxu0 0.0
    %1955 = vmatpush1.xpose.msra.mxu0 0.0
    %1956 = vmatprep.subr.mxu0 0.0
    %1957 = vmatpush1.xpose.msra.mxu0 0.0
    %1958 = vmatprep.subr.mxu0 0.0
    %1959 = vmatpush1.xpose.msra.mxu0 0.0
    %1960 = vmatprep.mubr.f32.mxu0 0.0
    %1961 = vmatmul.mubr.f32.gmra.mrb[0].mxu0 %v1892
    %v1962 = vpop.f32.mrb[0].mxu0
    %v1963 = vadd.f32 0.0, %v1962
    %v1964 = vpop.f32.mrb[0].mxu0
    %1965 = vdwg.mxu0
    %1966 = vrot.lane.b32.xlu0 %v1555, 112
    %v1967 = vpop.permute.xlu0 %1966
    %1968 = vrot.lane.b32.xlu0 %v1555, 80
    %v1969 = vpop.permute.xlu0 %1968
    %v1970 = vsel %vm346, %v1967, 0
    %v1972 = vsel %vm346, %v1969, 0
    %1974 = vmatprep.subr.mxu0 0.0
    %1975 = vmatpush1.xpose.msra.mxu0 %v1972
    %1976 = vmatprep.subr.mxu0 0.0
    %1977 = vmatpush1.xpose.msra.mxu0 0.0
    %1978 = vmatprep.subr.mxu0 0.0
    %1979 = vmatpush1.xpose.msra.mxu0 0.0
    %1980 = vmatprep.subr.mxu0 0.0
    %1981 = vmatpush1.xpose.msra.mxu0 0.0
    %1982 = vmatprep.subr.mxu0 0.0
    %1983 = vmatpush1.xpose.msra.mxu0 0.0
    %1984 = vmatprep.subr.mxu0 0.0
    %1985 = vmatpush1.xpose.msra.mxu0 0.0
    %1986 = vmatprep.subr.mxu0 0.0
    %1987 = vmatpush1.xpose.msra.mxu0 0.0
    %1988 = vmatprep.subr.mxu0 0.0
    %1989 = vmatpush1.xpose.msra.mxu0 0.0
    %1990 = vmatprep.subr.mxu0 0.0
    %1991 = vmatpush1.xpose.msra.mxu0 0.0
    %1992 = vmatprep.subr.mxu0 0.0
    %1993 = vmatpush1.xpose.msra.mxu0 0.0
    %1994 = vmatprep.subr.mxu0 0.0
    %1995 = vmatpush1.xpose.msra.mxu0 0.0
    %1996 = vmatprep.subr.mxu0 0.0
    %1997 = vmatpush1.xpose.msra.mxu0 0.0
    %1998 = vmatprep.subr.mxu0 0.0
    %1999 = vmatpush1.xpose.msra.mxu0 0.0
    %2000 = vmatprep.subr.mxu0 0.0
    %2001 = vmatpush1.xpose.msra.mxu0 0.0
    %2002 = vmatprep.subr.mxu0 0.0
    %2003 = vmatpush1.xpose.msra.mxu0 0.0
    %2004 = vmatprep.subr.mxu0 0.0
    %2005 = vmatpush1.xpose.msra.mxu0 0.0
    %2006 = vmatprep.subr.mxu0 0.0
    %2007 = vmatpush1.xpose.msra.mxu0 0.0
    %2008 = vmatprep.subr.mxu0 0.0
    %2009 = vmatpush1.xpose.msra.mxu0 0.0
    %2010 = vmatprep.subr.mxu0 0.0
    %2011 = vmatpush1.xpose.msra.mxu0 0.0
    %2012 = vmatprep.subr.mxu0 0.0
    %2013 = vmatpush1.xpose.msra.mxu0 0.0
    %2014 = vmatprep.subr.mxu0 0.0
    %2015 = vmatpush1.xpose.msra.mxu0 0.0
    %2016 = vmatprep.subr.mxu0 0.0
    %2017 = vmatpush1.xpose.msra.mxu0 0.0
    %2018 = vmatprep.subr.mxu0 0.0
    %2019 = vmatpush1.xpose.msra.mxu0 0.0
    %2020 = vmatprep.subr.mxu0 0.0
    %2021 = vmatpush1.xpose.msra.mxu0 0.0
    %2022 = vmatprep.subr.mxu0 0.0
    %2023 = vmatpush1.xpose.msra.mxu0 0.0
    %2024 = vmatprep.subr.mxu0 0.0
    %2025 = vmatpush1.xpose.msra.mxu0 0.0
    %2026 = vmatprep.subr.mxu0 0.0
    %2027 = vmatpush1.xpose.msra.mxu0 0.0
    %2028 = vmatprep.subr.mxu0 0.0
    %2029 = vmatpush1.xpose.msra.mxu0 0.0
    %2030 = vmatprep.subr.mxu0 0.0
    %2031 = vmatpush1.xpose.msra.mxu0 0.0
    %2032 = vmatprep.subr.mxu0 0.0
    %2033 = vmatpush1.xpose.msra.mxu0 0.0
    %2034 = vmatprep.subr.mxu0 0.0
    %2035 = vmatpush1.xpose.msra.mxu0 0.0
    %2036 = vmatprep.subr.mxu0 0.0
    %2037 = vmatpush1.xpose.msra.mxu0 0.0
    %2038 = vmatprep.mubr.f32.mxu0 0.0
    %2039 = vmatmul.mubr.f32.gmra.mrb[0].mxu0 %v1970
    %v2040 = vpop.f32.mrb[0].mxu0
    %v2041 = vadd.f32 0.0, %v2040
    %v2042 = vpop.f32.mrb[0].mxu0
    %2043 = vdwg.mxu0
    %v2044 = vmul.f32 %v1963, 0.25
    %v2045 = vmul.f32 %v2041, 0.25
    %v2046 = vsel %vm500, %v2044, -inf
    %2047 = vmax.xlane.f32.xlu0 %v2046
    %v2048 = vpop.xlane.xlu0 %2047
    %v2049 = vsel %vm500, %v2045, -inf
    %2050 = vmax.xlane.f32.xlu0 %v2049
    %v2051 = vpop.xlane.xlu0 %2050
    %v2052 = vsub.f32 %v2044, %v2048
    %v2053 = vsub.f32 %v2045, %v2051
    %v2054 = vmul.f32 %v2052, 1.442695
    %v2055 = vpow.pop %v2054
    %v2056 = vmul.f32 %v2053, 1.442695
    %v2057 = vpow.pop %v2056
    %v2058 = vsel %vm500, %v2055, 0.0
    %2059 = vadd.xlane.f32.xlu0 %v2058
    %v2060 = vpop.xlane.xlu0 %2059
    %v2061 = vsel %vm500, %v2057, 0.0
    %2062 = vadd.xlane.f32.xlu0 %v2061
    %v2063 = vpop.xlane.xlu0 %2062
    %v2064 = vrcp.pop %v2060
    %v2065 = vmul.f32 %v2055, %v2064
    %v2066 = vrcp.pop %v2063
    %v2067 = vmul.f32 %v2057, %v2066
    %2068 = vrot.lane.b32.xlu0 %v1550, 48
    %v2069 = vpop.permute.xlu0 %2068
    %v2072 = vsel %vm500, %v2065, 0
    %2074 = vmatprep.subr.mxu0 0.0
    %2075 = vmatpush1.msra.mxu0 %v2069
    %2076 = vmatprep.subr.mxu0 0.0
    %2077 = vmatpush1.msra.mxu0 0.0
    %2078 = vmatprep.subr.mxu0 0.0
    %2079 = vmatpush1.msra.mxu0 0.0
    %2080 = vmatprep.subr.mxu0 0.0
    %2081 = vmatpush1.msra.mxu0 0.0
    %2082 = vmatprep.subr.mxu0 0.0
    %2083 = vmatpush1.msra.mxu0 0.0
    %2084 = vmatprep.subr.mxu0 0.0
    %2085 = vmatpush1.msra.mxu0 0.0
    %2086 = vmatprep.subr.mxu0 0.0
    %2087 = vmatpush1.msra.mxu0 0.0
    %2088 = vmatprep.subr.mxu0 0.0
    %2089 = vmatpush1.msra.mxu0 0.0
    %2090 = vmatprep.subr.mxu0 0.0
    %2091 = vmatpush1.msra.mxu0 0.0
    %2092 = vmatprep.subr.mxu0 0.0
    %2093 = vmatpush1.msra.mxu0 0.0
    %2094 = vmatprep.subr.mxu0 0.0
    %2095 = vmatpush1.msra.mxu0 0.0
    %2096 = vmatprep.subr.mxu0 0.0
    %2097 = vmatpush1.msra.mxu0 0.0
    %2098 = vmatprep.subr.mxu0 0.0
    %2099 = vmatpush1.msra.mxu0 0.0
    %2100 = vmatprep.subr.mxu0 0.0
    %2101 = vmatpush1.msra.mxu0 0.0
    %2102 = vmatprep.subr.mxu0 0.0
    %2103 = vmatpush1.msra.mxu0 0.0
    %2104 = vmatprep.subr.mxu0 0.0
    %2105 = vmatpush1.msra.mxu0 0.0
    %2106 = vmatprep.subr.mxu0 0.0
    %2107 = vmatpush1.msra.mxu0 0.0
    %2108 = vmatprep.subr.mxu0 0.0
    %2109 = vmatpush1.msra.mxu0 0.0
    %2110 = vmatprep.subr.mxu0 0.0
    %2111 = vmatpush1.msra.mxu0 0.0
    %2112 = vmatprep.subr.mxu0 0.0
    %2113 = vmatpush1.msra.mxu0 0.0
    %2114 = vmatprep.subr.mxu0 0.0
    %2115 = vmatpush1.msra.mxu0 0.0
    %2116 = vmatprep.subr.mxu0 0.0
    %2117 = vmatpush1.msra.mxu0 0.0
    %2118 = vmatprep.subr.mxu0 0.0
    %2119 = vmatpush1.msra.mxu0 0.0
    %2120 = vmatprep.subr.mxu0 0.0
    %2121 = vmatpush1.msra.mxu0 0.0
    %2122 = vmatprep.subr.mxu0 0.0
    %2123 = vmatpush1.msra.mxu0 0.0
    %2124 = vmatprep.subr.mxu0 0.0
    %2125 = vmatpush1.msra.mxu0 0.0
    %2126 = vmatprep.subr.mxu0 0.0
    %2127 = vmatpush1.msra.mxu0 0.0
    %2128 = vmatprep.subr.mxu0 0.0
    %2129 = vmatpush1.msra.mxu0 0.0
    %2130 = vmatprep.subr.mxu0 0.0
    %2131 = vmatpush1.msra.mxu0 0.0
    %2132 = vmatprep.subr.mxu0 0.0
    %2133 = vmatpush1.msra.mxu0 0.0
    %2134 = vmatprep.subr.mxu0 0.0
    %2135 = vmatpush1.msra.mxu0 0.0
    %2136 = vmatprep.subr.mxu0 0.0
    %2137 = vmatpush1.msra.mxu0 0.0
    %2138 = vmatprep.mubr.f32.mxu0 0.0
    %2139 = vmatmul.mubr.f32.gmra.mrb[0].mxu0 %v2072
    %v2140 = vpop.f32.mrb[0].mxu0
    %v2141 = vadd.f32 0.0, %v2140
    %v2142 = vpop.f32.mrb[0].mxu0
    %2143 = vdwg.mxu0
    %2144 = vrot.lane.b32.xlu0 %v1555, 48
    %v2145 = vpop.permute.xlu0 %2144
    %v2148 = vsel %vm500, %v2067, 0
    %2150 = vmatprep.subr.mxu0 0.0
    %2151 = vmatpush1.msra.mxu0 %v2145
    %2152 = vmatprep.subr.mxu0 0.0
    %2153 = vmatpush1.msra.mxu0 0.0
    %2154 = vmatprep.subr.mxu0 0.0
    %2155 = vmatpush1.msra.mxu0 0.0
    %2156 = vmatprep.subr.mxu0 0.0
    %2157 = vmatpush1.msra.mxu0 0.0
    %2158 = vmatprep.subr.mxu0 0.0
    %2159 = vmatpush1.msra.mxu0 0.0
    %2160 = vmatprep.subr.mxu0 0.0
    %2161 = vmatpush1.msra.mxu0 0.0
    %2162 = vmatprep.subr.mxu0 0.0
    %2163 = vmatpush1.msra.mxu0 0.0
    %2164 = vmatprep.subr.mxu0 0.0
    %2165 = vmatpush1.msra.mxu0 0.0
    %2166 = vmatprep.subr.mxu0 0.0
    %2167 = vmatpush1.msra.mxu0 0.0
    %2168 = vmatprep.subr.mxu0 0.0
    %2169 = vmatpush1.msra.mxu0 0.0
    %2170 = vmatprep.subr.mxu0 0.0
    %2171 = vmatpush1.msra.mxu0 0.0
    %2172 = vmatprep.subr.mxu0 0.0
    %2173 = vmatpush1.msra.mxu0 0.0
    %2174 = vmatprep.subr.mxu0 0.0
    %2175 = vmatpush1.msra.mxu0 0.0
    %2176 = vmatprep.subr.mxu0 0.0
    %2177 = vmatpush1.msra.mxu0 0.0
    %2178 = vmatprep.subr.mxu0 0.0
    %2179 = vmatpush1.msra.mxu0 0.0
    %2180 = vmatprep.subr.mxu0 0.0
    %2181 = vmatpush1.msra.mxu0 0.0
    %2182 = vmatprep.subr.mxu0 0.0
    %2183 = vmatpush1.msra.mxu0 0.0
    %2184 = vmatprep.subr.mxu0 0.0
    %2185 = vmatpush1.msra.mxu0 0.0
    %2186 = vmatprep.subr.mxu0 0.0
    %2187 = vmatpush1.msra.mxu0 0.0
    %2188 = vmatprep.subr.mxu0 0.0
    %2189 = vmatpush1.msra.mxu0 0.0
    %2190 = vmatprep.subr.mxu0 0.0
    %2191 = vmatpush1.msra.mxu0 0.0
    %2192 = vmatprep.subr.mxu0 0.0
    %2193 = vmatpush1.msra.mxu0 0.0
    %2194 = vmatprep.subr.mxu0 0.0
    %2195 = vmatpush1.msra.mxu0 0.0
    %2196 = vmatprep.subr.mxu0 0.0
    %2197 = vmatpush1.msra.mxu0 0.0
    %2198 = vmatprep.subr.mxu0 0.0
    %2199 = vmatpush1.msra.mxu0 0.0
    %2200 = vmatprep.subr.mxu0 0.0
    %2201 = vmatpush1.msra.mxu0 0.0
    %2202 = vmatprep.subr.mxu0 0.0
    %2203 = vmatpush1.msra.mxu0 0.0
    %2204 = vmatprep.subr.mxu0 0.0
    %2205 = vmatpush1.msra.mxu0 0.0
    %2206 = vmatprep.subr.mxu0 0.0
    %2207 = vmatpush1.msra.mxu0 0.0
    %2208 = vmatprep.subr.mxu0 0.0
    %2209 = vmatpush1.msra.mxu0 0.0
    %2210 = vmatprep.subr.mxu0 0.0
    %2211 = vmatpush1.msra.mxu0 0.0
    %2212 = vmatprep.subr.mxu0 0.0
    %2213 = vmatpush1.msra.mxu0 0.0
    %2214 = vmatprep.mubr.f32.mxu0 0.0
    %2215 = vmatmul.mubr.f32.gmra.mrb[0].mxu0 %v2148
    %v2216 = vpop.f32.mrb[0].mxu0
    %v2217 = vadd.f32 0.0, %v2216
    %v2218 = vpop.f32.mrb[0].mxu0
    %2219 = vdwg.mxu0
    %v2221 = vsel %vm346, %v2141, 0
    %v2224 = vsel %vm346, %v2217, 0
    %2226 = vmatprep.subr.mxu0 0.0
    %2227 = vmatpush1.msra.mxu0 %v1450
    %2228 = vmatprep.subr.mxu0 0.0
    %2229 = vmatpush1.msra.mxu0 %v1451
    %2230 = vmatprep.subr.mxu0 0.0
    %2231 = vmatpush1.msra.mxu0 0.0
    %2232 = vmatprep.subr.mxu0 0.0
    %2233 = vmatpush1.msra.mxu0 0.0
    %2234 = vmatprep.subr.mxu0 0.0
    %2235 = vmatpush1.msra.mxu0 0.0
    %2236 = vmatprep.subr.mxu0 0.0
    %2237 = vmatpush1.msra.mxu0 0.0
    %2238 = vmatprep.subr.mxu0 0.0
    %2239 = vmatpush1.msra.mxu0 0.0
    %2240 = vmatprep.subr.mxu0 0.0
    %2241 = vmatpush1.msra.mxu0 0.0
    %2242 = vmatprep.subr.mxu0 0.0
    %2243 = vmatpush1.msra.mxu0 0.0
    %2244 = vmatprep.subr.mxu0 0.0
    %2245 = vmatpush1.msra.mxu0 0.0
    %2246 = vmatprep.subr.mxu0 0.0
    %2247 = vmatpush1.msra.mxu0 0.0
    %2248 = vmatprep.subr.mxu0 0.0
    %2249 = vmatpush1.msra.mxu0 0.0
    %2250 = vmatprep.subr.mxu0 0.0
    %2251 = vmatpush1.msra.mxu0 0.0
    %2252 = vmatprep.subr.mxu0 0.0
    %2253 = vmatpush1.msra.mxu0 0.0
    %2254 = vmatprep.subr.mxu0 0.0
    %2255 = vmatpush1.msra.mxu0 0.0
    %2256 = vmatprep.subr.mxu0 0.0
    %2257 = vmatpush1.msra.mxu0 0.0
    %2258 = vmatprep.subr.mxu0 0.0
    %2259 = vmatpush1.msra.mxu0 0.0
    %2260 = vmatprep.subr.mxu0 0.0
    %2261 = vmatpush1.msra.mxu0 0.0
    %2262 = vmatprep.subr.mxu0 0.0
    %2263 = vmatpush1.msra.mxu0 0.0
    %2264 = vmatprep.subr.mxu0 0.0
    %2265 = vmatpush1.msra.mxu0 0.0
    %2266 = vmatprep.subr.mxu0 0.0
    %2267 = vmatpush1.msra.mxu0 0.0
    %2268 = vmatprep.subr.mxu0 0.0
    %2269 = vmatpush1.msra.mxu0 0.0
    %2270 = vmatprep.subr.mxu0 0.0
    %2271 = vmatpush1.msra.mxu0 0.0
    %2272 = vmatprep.subr.mxu0 0.0
    %2273 = vmatpush1.msra.mxu0 0.0
    %2274 = vmatprep.subr.mxu0 0.0
    %2275 = vmatpush1.msra.mxu0 0.0
    %2276 = vmatprep.subr.mxu0 0.0
    %2277 = vmatpush1.msra.mxu0 0.0
    %2278 = vmatprep.subr.mxu0 0.0
    %2279 = vmatpush1.msra.mxu0 0.0
    %2280 = vmatprep.subr.mxu0 0.0
    %2281 = vmatpush1.msra.mxu0 0.0
    %2282 = vmatprep.subr.mxu0 0.0
    %2283 = vmatpush1.msra.mxu0 0.0
    %2284 = vmatprep.subr.mxu0 0.0
    %2285 = vmatpush1.msra.mxu0 0.0
    %2286 = vmatprep.subr.mxu0 0.0
    %2287 = vmatpush1.msra.mxu0 0.0
    %2288 = vmatprep.subr.mxu0 0.0
    %2289 = vmatpush1.msra.mxu0 0.0
    %2290 = vmatprep.mubr.f32.mxu0 0.0
    %2291 = vmatmul.mubr.f32.gmra.mrb[0].mxu0 %v2221
    %v2292 = vpop.f32.mrb[0].mxu0
    %v2293 = vadd.f32 0.0, %v2292
    %v2294 = vpop.f32.mrb[0].mxu0
    %2295 = vmatprep.mubr.f32.mxu0 0.0
    %2296 = vmatmul.mubr.f32.gmra.mrb[0].mxu0 %v2224
    %v2297 = vpop.f32.mrb[0].mxu0
    %v2298 = vadd.f32 0.0, %v2297
    %v2299 = vpop.f32.mrb[0].mxu0
    %2300 = vdwg.mxu0
    %v2302 = vsel %vm346, %v1809, 0
    %v2305 = vsel %vm346, %v1885, 0
    %2307 = vmatprep.subr.mxu0 0.0
    %2308 = vmatpush1.msra.mxu0 %v1448
    %2309 = vmatprep.subr.mxu0 0.0
    %2310 = vmatpush1.msra.mxu0 %v1449
    %2311 = vmatprep.subr.mxu0 0.0
    %2312 = vmatpush1.msra.mxu0 0.0
    %2313 = vmatprep.subr.mxu0 0.0
    %2314 = vmatpush1.msra.mxu0 0.0
    %2315 = vmatprep.subr.mxu0 0.0
    %2316 = vmatpush1.msra.mxu0 0.0
    %2317 = vmatprep.subr.mxu0 0.0
    %2318 = vmatpush1.msra.mxu0 0.0
    %2319 = vmatprep.subr.mxu0 0.0
    %2320 = vmatpush1.msra.mxu0 0.0
    %2321 = vmatprep.subr.mxu0 0.0
    %2322 = vmatpush1.msra.mxu0 0.0
    %2323 = vmatprep.subr.mxu0 0.0
    %2324 = vmatpush1.msra.mxu0 0.0
    %2325 = vmatprep.subr.mxu0 0.0
    %2326 = vmatpush1.msra.mxu0 0.0
    %2327 = vmatprep.subr.mxu0 0.0
    %2328 = vmatpush1.msra.mxu0 0.0
    %2329 = vmatprep.subr.mxu0 0.0
    %2330 = vmatpush1.msra.mxu0 0.0
    %2331 = vmatprep.subr.mxu0 0.0
    %2332 = vmatpush1.msra.mxu0 0.0
    %2333 = vmatprep.subr.mxu0 0.0
    %2334 = vmatpush1.msra.mxu0 0.0
    %2335 = vmatprep.subr.mxu0 0.0
    %2336 = vmatpush1.msra.mxu0 0.0
    %2337 = vmatprep.subr.mxu0 0.0
    %2338 = vmatpush1.msra.mxu0 0.0
    %2339 = vmatprep.subr.mxu0 0.0
    %2340 = vmatpush1.msra.mxu0 0.0
    %2341 = vmatprep.subr.mxu0 0.0
    %2342 = vmatpush1.msra.mxu0 0.0
    %2343 = vmatprep.subr.mxu0 0.0
    %2344 = vmatpush1.msra.mxu0 0.0
    %2345 = vmatprep.subr.mxu0 0.0
    %2346 = vmatpush1.msra.mxu0 0.0
    %2347 = vmatprep.subr.mxu0 0.0
    %2348 = vmatpush1.msra.mxu0 0.0
    %2349 = vmatprep.subr.mxu0 0.0
    %2350 = vmatpush1.msra.mxu0 0.0
    %2351 = vmatprep.subr.mxu0 0.0
    %2352 = vmatpush1.msra.mxu0 0.0
    %2353 = vmatprep.subr.mxu0 0.0
    %2354 = vmatpush1.msra.mxu0 0.0
    %2355 = vmatprep.subr.mxu0 0.0
    %2356 = vmatpush1.msra.mxu0 0.0
    %2357 = vmatprep.subr.mxu0 0.0
    %2358 = vmatpush1.msra.mxu0 0.0
    %2359 = vmatprep.subr.mxu0 0.0
    %2360 = vmatpush1.msra.mxu0 0.0
    %2361 = vmatprep.subr.mxu0 0.0
    %2362 = vmatpush1.msra.mxu0 0.0
    %2363 = vmatprep.subr.mxu0 0.0
    %2364 = vmatpush1.msra.mxu0 0.0
    %2365 = vmatprep.subr.mxu0 0.0
    %2366 = vmatpush1.msra.mxu0 0.0
    %2367 = vmatprep.subr.mxu0 0.0
    %2368 = vmatpush1.msra.mxu0 0.0
    %2369 = vmatprep.subr.mxu0 0.0
    %2370 = vmatpush1.msra.mxu0 0.0
    %2371 = vmatprep.mubr.f32.mxu0 0.0
    %2372 = vmatmul.mubr.f32.gmra.mrb[0].mxu0 %v2302
    %v2373 = vpop.f32.mrb[0].mxu0
    %v2374 = vadd.f32 %v2293, %v2373
    %v2375 = vpop.f32.mrb[0].mxu0
    %2376 = vmatprep.mubr.f32.mxu0 0.0
    %2377 = vmatmul.mubr.f32.gmra.mrb[0].mxu0 %v2305
    %v2378 = vpop.f32.mrb[0].mxu0
    %v2379 = vadd.f32 %v2298, %v2378
    %v2380 = vpop.f32.mrb[0].mxu0
    %2381 = vdwg.mxu0
    %v2383 = vlaneseq
    %v2384 = vshrl.u32 %v2383, 7
    %v2385 = vsub.s32 0, %v2384
    %v2386 = vrot.slane %v1452, %v2385
    %v2388 = vadd.f32 %v2374, %v2386
    %v2389 = vadd.f32 %v2379, %v2386
    %v2390 = vadd.f32 %v1441, %v2388
    %v2391 = vadd.f32 %v1442, %v2389
    %v2392 = vsel %vm261, %v2390, 0.0
    %2393 = vadd.xlane.f32.xlu0 %v2392
    %v2394 = vpop.xlane.xlu0 %2393
    %v2395 = vsel %vm261, %v2391, 0.0
    %2396 = vadd.xlane.f32.xlu0 %v2395
    %v2397 = vpop.xlane.xlu0 %2396
    %v2398 = vmul.f32 %v2394, %v1185
    %v2399 = vmul.f32 %v2397, %v1185
    %v2400 = vsub.f32 %v2390, %v2398
    %v2401 = vsub.f32 %v2391, %v2399
    %v2402 = vmul.f32 %v2400, %v2400
    %v2403 = vmul.f32 %v2401, %v2401
    %v2404 = vsel %vm261, %v2402, 0.0
    %2405 = vadd.xlane.f32.xlu0 %v2404
    %v2406 = vpop.xlane.xlu0 %2405
    %v2407 = vsel %vm261, %v2403, 0.0
    %2408 = vadd.xlane.f32.xlu0 %v2407
    %v2409 = vpop.xlane.xlu0 %2408
    %v2410 = vmul.f32 %v2406, %v1185
    %v2411 = vmul.f32 %v2409, %v1185
    %v2412 = vadd.f32 %v2410, 1e-05
    %v2413 = vadd.f32 %v2411, 1e-05
    %v2414 = vrsqrt.pop %v2412
    %v2415 = vrsqrt.pop %v2413
    %v2416 = vmul.f32 %v2400, %v2414
    %v2417 = vmul.f32 %v2401, %v2415
    %v2419 = vlaneseq
    %v2420 = vshrl.u32 %v2419, 7
    %v2421 = vsub.s32 0, %v2420
    %v2422 = vrot.slane %v1467, %v2421
    %v2424 = vmul.f32 %v2416, %v2422
    %v2425 = vmul.f32 %v2417, %v2422
    %v2427 = vlaneseq
    %v2428 = vshrl.u32 %v2427, 7
    %v2429 = vsub.s32 0, %v2428
    %v2430 = vrot.slane %v1468, %v2429
    %v2432 = vadd.f32 %v2424, %v2430
    %v2433 = vadd.f32 %v2425, %v2430
    %v2435 = vlaneseq
    %v2436 = vshrl.u32 %v2435, 7
    %v2437 = vsub.s32 0, %v2436
    %v2438 = vrot.slane %v1457, %v2437
    %v2441 = vsel %vm261, %v2432, 0
    %v2444 = vsel %vm261, %v2433, 0
    %2446 = vmatprep.subr.mxu0 0.0
    %2447 = vmatpush1.msra.mxu0 %v1453
    %2448 = vmatprep.subr.mxu0 0.0
    %2449 = vmatpush1.msra.mxu0 %v1454
    %2450 = vmatprep.subr.mxu0 0.0
    %2451 = vmatpush1.msra.mxu0 %v1455
    %2452 = vmatprep.subr.mxu0 0.0
    %2453 = vmatpush1.msra.mxu0 %v1456
    %2454 = vmatprep.subr.mxu0 0.0
    %2455 = vmatpush1.msra.mxu0 0.0
    %2456 = vmatprep.subr.mxu0 0.0
    %2457 = vmatpush1.msra.mxu0 0.0
    %2458 = vmatprep.subr.mxu0 0.0
    %2459 = vmatpush1.msra.mxu0 0.0
    %2460 = vmatprep.subr.mxu0 0.0
    %2461 = vmatpush1.msra.mxu0 0.0
    %2462 = vmatprep.subr.mxu0 0.0
    %2463 = vmatpush1.msra.mxu0 0.0
    %2464 = vmatprep.subr.mxu0 0.0
    %2465 = vmatpush1.msra.mxu0 0.0
    %2466 = vmatprep.subr.mxu0 0.0
    %2467 = vmatpush1.msra.mxu0 0.0
    %2468 = vmatprep.subr.mxu0 0.0
    %2469 = vmatpush1.msra.mxu0 0.0
    %2470 = vmatprep.subr.mxu0 0.0
    %2471 = vmatpush1.msra.mxu0 0.0
    %2472 = vmatprep.subr.mxu0 0.0
    %2473 = vmatpush1.msra.mxu0 0.0
    %2474 = vmatprep.subr.mxu0 0.0
    %2475 = vmatpush1.msra.mxu0 0.0
    %2476 = vmatprep.subr.mxu0 0.0
    %2477 = vmatpush1.msra.mxu0 0.0
    %2478 = vmatprep.subr.mxu0 0.0
    %2479 = vmatpush1.msra.mxu0 0.0
    %2480 = vmatprep.subr.mxu0 0.0
    %2481 = vmatpush1.msra.mxu0 0.0
    %2482 = vmatprep.subr.mxu0 0.0
    %2483 = vmatpush1.msra.mxu0 0.0
    %2484 = vmatprep.subr.mxu0 0.0
    %2485 = vmatpush1.msra.mxu0 0.0
    %2486 = vmatprep.subr.mxu0 0.0
    %2487 = vmatpush1.msra.mxu0 0.0
    %2488 = vmatprep.subr.mxu0 0.0
    %2489 = vmatpush1.msra.mxu0 0.0
    %2490 = vmatprep.subr.mxu0 0.0
    %2491 = vmatpush1.msra.mxu0 0.0
    %2492 = vmatprep.subr.mxu0 0.0
    %2493 = vmatpush1.msra.mxu0 0.0
    %2494 = vmatprep.subr.mxu0 0.0
    %2495 = vmatpush1.msra.mxu0 0.0
    %2496 = vmatprep.subr.mxu0 0.0
    %2497 = vmatpush1.msra.mxu0 0.0
    %2498 = vmatprep.subr.mxu0 0.0
    %2499 = vmatpush1.msra.mxu0 0.0
    %2500 = vmatprep.subr.mxu0 0.0
    %2501 = vmatpush1.msra.mxu0 0.0
    %2502 = vmatprep.subr.mxu0 0.0
    %2503 = vmatpush1.msra.mxu0 0.0
    %2504 = vmatprep.subr.mxu0 0.0
    %2505 = vmatpush1.msra.mxu0 0.0
    %2506 = vmatprep.subr.mxu0 0.0
    %2507 = vmatpush1.msra.mxu0 0.0
    %2508 = vmatprep.subr.mxu0 0.0
    %2509 = vmatpush1.msra.mxu0 0.0
    %2510 = vmatprep.mubr.f32.mxu0 0.0
    %2511 = vmatmul.mubr.f32.gmra.mrb[0].mxu0 %v2441
    %v2512 = vpop.f32.mrb[0].mxu0
    %v2513 = vadd.f32 %v2438, %v2512
    %v2514 = vpop.f32.mrb[0].mxu0
    %2515 = vmatprep.mubr.f32.mxu0 0.0
    %2516 = vmatmul.mubr.f32.gmra.mrb[0].mxu0 %v2444
    %v2517 = vpop.f32.mrb[0].mxu0
    %v2518 = vadd.f32 %v2438, %v2517
    %v2519 = vpop.f32.mrb[0].mxu0
    %2520 = vdwg.mxu0
    %v2521 = vmax.f32 %v2513, 0.0
    %v2522 = vmax.f32 %v2518, 0.0
    %v2524 = vlaneseq
    %v2525 = vshrl.u32 %v2524, 7
    %v2526 = vsub.s32 0, %v2525
    %v2527 = vrot.slane %v1466, %v2526
    %v2530 = vsel %vm1317, %v2521, 0
    %v2533 = vsel %vm1317, %v2522, 0
    %2535 = vmatprep.subr.mxu0 0.0
    %2536 = vmatpush1.msra.mxu0 %v1458
    %2537 = vmatprep.subr.mxu0 0.0
    %2538 = vmatpush1.msra.mxu0 %v1459
    %2539 = vmatprep.subr.mxu0 0.0
    %2540 = vmatpush1.msra.mxu0 %v1460
    %2541 = vmatprep.subr.mxu0 0.0
    %2542 = vmatpush1.msra.mxu0 %v1461
    %2543 = vmatprep.subr.mxu0 0.0
    %2544 = vmatpush1.msra.mxu0 %v1462
    %2545 = vmatprep.subr.mxu0 0.0
    %2546 = vmatpush1.msra.mxu0 %v1463
    %2547 = vmatprep.subr.mxu0 0.0
    %2548 = vmatpush1.msra.mxu0 %v1464
    %2549 = vmatprep.subr.mxu0 0.0
    %2550 = vmatpush1.msra.mxu0 %v1465
    %2551 = vmatprep.subr.mxu0 0.0
    %2552 = vmatpush1.msra.mxu0 0.0
    %2553 = vmatprep.subr.mxu0 0.0
    %2554 = vmatpush1.msra.mxu0 0.0
    %2555 = vmatprep.subr.mxu0 0.0
    %2556 = vmatpush1.msra.mxu0 0.0
    %2557 = vmatprep.subr.mxu0 0.0
    %2558 = vmatpush1.msra.mxu0 0.0
    %2559 = vmatprep.subr.mxu0 0.0
    %2560 = vmatpush1.msra.mxu0 0.0
    %2561 = vmatprep.subr.mxu0 0.0
    %2562 = vmatpush1.msra.mxu0 0.0
    %2563 = vmatprep.subr.mxu0 0.0
    %2564 = vmatpush1.msra.mxu0 0.0
    %2565 = vmatprep.subr.mxu0 0.0
    %2566 = vmatpush1.msra.mxu0 0.0
    %2567 = vmatprep.subr.mxu0 0.0
    %2568 = vmatpush1.msra.mxu0 0.0
    %2569 = vmatprep.subr.mxu0 0.0
    %2570 = vmatpush1.msra.mxu0 0.0
    %2571 = vmatprep.subr.mxu0 0.0
    %2572 = vmatpush1.msra.mxu0 0.0
    %2573 = vmatprep.subr.mxu0 0.0
    %2574 = vmatpush1.msra.mxu0 0.0
    %2575 = vmatprep.subr.mxu0 0.0
    %2576 = vmatpush1.msra.mxu0 0.0
    %2577 = vmatprep.subr.mxu0 0.0
    %2578 = vmatpush1.msra.mxu0 0.0
    %2579 = vmatprep.subr.mxu0 0.0
    %2580 = vmatpush1.msra.mxu0 0.0
    %2581 = vmatprep.subr.mxu0 0.0
    %2582 = vmatpush1.msra.mxu0 0.0
    %2583 = vmatprep.subr.mxu0 0.0
    %2584 = vmatpush1.msra.mxu0 0.0
    %2585 = vmatprep.subr.mxu0 0.0
    %2586 = vmatpush1.msra.mxu0 0.0
    %2587 = vmatprep.subr.mxu0 0.0
    %2588 = vmatpush1.msra.mxu0 0.0
    %2589 = vmatprep.subr.mxu0 0.0
    %2590 = vmatpush1.msra.mxu0 0.0
    %2591 = vmatprep.subr.mxu0 0.0
    %2592 = vmatpush1.msra.mxu0 0.0
    %2593 = vmatprep.subr.mxu0 0.0
    %2594 = vmatpush1.msra.mxu0 0.0
    %2595 = vmatprep.subr.mxu0 0.0
    %2596 = vmatpush1.msra.mxu0 0.0
    %2597 = vmatprep.subr.mxu0 0.0
    %2598 = vmatpush1.msra.mxu0 0.0
    %2599 = vmatprep.mubr.f32.mxu0 0.0
    %2600 = vmatmul.mubr.f32.gmra.mrb[0].mxu0 %v2530
    %v2601 = vpop.f32.mrb[0].mxu0
    %v2602 = vadd.f32 %v2527, %v2601
    %v2603 = vpop.f32.mrb[0].mxu0
    %2604 = vmatprep.mubr.f32.mxu0 0.0
    %2605 = vmatmul.mubr.f32.gmra.mrb[0].mxu0 %v2533
    %v2606 = vpop.f32.mrb[0].mxu0
    %v2607 = vadd.f32 %v2527, %v2606
    %v2608 = vpop.f32.mrb[0].mxu0
    %2609 = vdwg.mxu0
    %v2610 = vadd.f32 %v2432, %v2602
    %v2611 = vadd.f32 %v2433, %v2607
    %v2612 = vsel %vm261, %v2610, 0.0
    %2613 = vadd.xlane.f32.xlu0 %v2612
    %v2614 = vpop.xlane.xlu0 %2613
    %v2615 = vsel %vm261, %v2611, 0.0
    %2616 = vadd.xlane.f32.xlu0 %v2615
    %v2617 = vpop.xlane.xlu0 %2616
    %v2618 = vmul.f32 %v2614, %v1185
    %v2619 = vmul.f32 %v2617, %v1185
    %v2620 = vsub.f32 %v2610, %v2618
    %v2621 = vsub.f32 %v2611, %v2619
    %v2622 = vmul.f32 %v2620, %v2620
    %v2623 = vmul.f32 %v2621, %v2621
    %v2624 = vsel %vm261, %v2622, 0.0
    %2625 = vadd.xlane.f32.xlu0 %v2624
    %v2626 = vpop.xlane.xlu0 %2625
    %v2627 = vsel %vm261, %v2623, 0.0
    %2628 = vadd.xlane.f32.xlu0 %v2627
    %v2629 = vpop.xlane.xlu0 %2628
    %v2630 = vmul.f32 %v2626, %v1185
    %v2631 = vmul.f32 %v2629, %v1185
    %v2632 = vadd.f32 %v2630, 1e-05
    %v2633 = vadd.f32 %v2631, 1e-05
    %v2634 = vrsqrt.pop %v2632
    %v2635 = vrsqrt.pop %v2633
    %v2636 = vmul.f32 %v2620, %v2634
    %v2637 = vmul.f32 %v2621, %v2635
    %v2639 = vlaneseq
    %v2640 = vshrl.u32 %v2639, 7
    %v2641 = vsub.s32 0, %v2640
    %v2642 = vrot.slane %v1469, %v2641
    %v2644 = vmul.f32 %v2636, %v2642
    %v2645 = vmul.f32 %v2637, %v2642
    %v2647 = vlaneseq
    %v2648 = vshrl.u32 %v2647, 7
    %v2649 = vsub.s32 0, %v2648
    %v2650 = vrot.slane %v1470, %v2649
    %v2652 = vadd.f32 %v2644, %v2650
    %v2653 = vadd.f32 %v2645, %v2650
    %v2654 = vsel %vm261, %v2652, 0.0
    %v2655 = vrot.slane %v2654, 4
    %v2656 = vadd.f32 %v2654, %v2655
    %v2657 = vrot.slane %v2656, 2
    %v2658 = vadd.f32 %v2656, %v2657
    %v2659 = vrot.slane %v2658, 1
    %v2660 = vadd.f32 %v2658, %v2659
    %v2661 = vsel %vm261, %v2653, 0.0
    %v2662 = vrot.slane %v2661, 4
    %v2663 = vadd.f32 %v2661, %v2662
    %v2664 = vrot.slane %v2663, 2
    %v2665 = vadd.f32 %v2663, %v2664
    %v2666 = vrot.slane %v2665, 1
    %v2667 = vadd.f32 %v2665, %v2666
    %v2668 = vrcp.pop 8.0
    %v2669 = vmul.f32 %v2660, %v2668
    %v2670 = vmul.f32 %v2667, %v2668
    %v2671 = vld [vmem:[%s55] sm:$0xff]
    %v2672 = vld [vmem:[%s55 + $0x8] sm:$0xff]
    %v2673 = vld [vmem:[%s55 + $0x10] sm:$0xff]
    %v2674 = vld [vmem:[%s55 + $0x18] sm:$0xff]
    %v2675 = vld [vmem:[%s57] sm:$0x1]
    %v2676 = vld [vmem:[%s59] sm:$0xff]
    %v2677 = vld [vmem:[%s59 + $0x8] sm:$0xff]
    %v2678 = vld [vmem:[%s59 + $0x10] sm:$0xff]
    %v2679 = vld [vmem:[%s59 + $0x18] sm:$0xff]
    %v2680 = vld [vmem:[%s59 + $0x20] sm:$0xff]
    %v2681 = vld [vmem:[%s59 + $0x28] sm:$0xff]
    %v2682 = vld [vmem:[%s59 + $0x30] sm:$0xff]
    %v2683 = vld [vmem:[%s59 + $0x38] sm:$0xff]
    %v2684 = vld [vmem:[%s59 + $0x40] sm:$0xff]
    %v2685 = vld [vmem:[%s59 + $0x48] sm:$0xff]
    %v2686 = vld [vmem:[%s59 + $0x50] sm:$0xff]
    %v2687 = vld [vmem:[%s59 + $0x58] sm:$0xff]
    %v2688 = vld [vmem:[%s59 + $0x60] sm:$0xff]
    %v2689 = vld [vmem:[%s59 + $0x68] sm:$0xff]
    %v2690 = vld [vmem:[%s59 + $0x70] sm:$0xff]
    %v2691 = vld [vmem:[%s59 + $0x78] sm:$0xff]
    %v2692 = vld [vmem:[%s59 + $0x80] sm:$0xff]
    %v2693 = vld [vmem:[%s59 + $0x88] sm:$0xff]
    %v2694 = vld [vmem:[%s59 + $0x90] sm:$0xff]
    %v2695 = vld [vmem:[%s59 + $0x98] sm:$0xff]
    %v2696 = vld [vmem:[%s61] sm:$0x1f]
    %v2698 = vlaneseq
    %v2699 = vshrl.u32 %v2698, 7
    %v2700 = vsub.s32 0, %v2699
    %v2701 = vrot.slane %v2675, %v2700
    %vm2705 = vcmask 1041409
    %v2706 = vsel %vm2705, %v2670, %v2669
    %v2707 = vsel %vm261, %v2706, 0
    %2709 = vmatprep.subr.mxu0 0.0
    %2710 = vmatpush1.msra.mxu0 %v2671
    %2711 = vmatprep.subr.mxu0 0.0
    %2712 = vmatpush1.msra.mxu0 %v2672
    %2713 = vmatprep.subr.mxu0 0.0
    %2714 = vmatpush1.msra.mxu0 %v2673
    %2715 = vmatprep.subr.mxu0 0.0
    %2716 = vmatpush1.msra.mxu0 %v2674
    %2717 = vmatprep.subr.mxu0 0.0
    %2718 = vmatpush1.msra.mxu0 0.0
    %2719 = vmatprep.subr.mxu0 0.0
    %2720 = vmatpush1.msra.mxu0 0.0
    %2721 = vmatprep.subr.mxu0 0.0
    %2722 = vmatpush1.msra.mxu0 0.0
    %2723 = vmatprep.subr.mxu0 0.0
    %2724 = vmatpush1.msra.mxu0 0.0
    %2725 = vmatprep.subr.mxu0 0.0
    %2726 = vmatpush1.msra.mxu0 0.0
    %2727 = vmatprep.subr.mxu0 0.0
    %2728 = vmatpush1.msra.mxu0 0.0
    %2729 = vmatprep.subr.mxu0 0.0
    %2730 = vmatpush1.msra.mxu0 0.0
    %2731 = vmatprep.subr.mxu0 0.0
    %2732 = vmatpush1.msra.mxu0 0.0
    %2733 = vmatprep.subr.mxu0 0.0
    %2734 = vmatpush1.msra.mxu0 0.0
    %2735 = vmatprep.subr.mxu0 0.0
    %2736 = vmatpush1.msra.mxu0 0.0
    %2737 = vmatprep.subr.mxu0 0.0
    %2738 = vmatpush1.msra.mxu0 0.0
    %2739 = vmatprep.subr.mxu0 0.0
    %2740 = vmatpush1.msra.mxu0 0.0
    %2741 = vmatprep.subr.mxu0 0.0
    %2742 = vmatpush1.msra.mxu0 0.0
    %2743 = vmatprep.subr.mxu0 0.0
    %2744 = vmatpush1.msra.mxu0 0.0
    %2745 = vmatprep.subr.mxu0 0.0
    %2746 = vmatpush1.msra.mxu0 0.0
    %2747 = vmatprep.subr.mxu0 0.0
    %2748 = vmatpush1.msra.mxu0 0.0
    %2749 = vmatprep.subr.mxu0 0.0
    %2750 = vmatpush1.msra.mxu0 0.0
    %2751 = vmatprep.subr.mxu0 0.0
    %2752 = vmatpush1.msra.mxu0 0.0
    %2753 = vmatprep.subr.mxu0 0.0
    %2754 = vmatpush1.msra.mxu0 0.0
    %2755 = vmatprep.subr.mxu0 0.0
    %2756 = vmatpush1.msra.mxu0 0.0
    %2757 = vmatprep.subr.mxu0 0.0
    %2758 = vmatpush1.msra.mxu0 0.0
    %2759 = vmatprep.subr.mxu0 0.0
    %2760 = vmatpush1.msra.mxu0 0.0
    %2761 = vmatprep.subr.mxu0 0.0
    %2762 = vmatpush1.msra.mxu0 0.0
    %2763 = vmatprep.subr.mxu0 0.0
    %2764 = vmatpush1.msra.mxu0 0.0
    %2765 = vmatprep.subr.mxu0 0.0
    %2766 = vmatpush1.msra.mxu0 0.0
    %2767 = vmatprep.subr.mxu0 0.0
    %2768 = vmatpush1.msra.mxu0 0.0
    %2769 = vmatprep.subr.mxu0 0.0
    %2770 = vmatpush1.msra.mxu0 0.0
    %2771 = vmatprep.subr.mxu0 0.0
    %2772 = vmatpush1.msra.mxu0 0.0
    %2773 = vmatprep.mubr.f32.mxu0 0.0
    %2774 = vmatmul.mubr.f32.gmra.mrb[0].mxu0 %v2707
    %v2775 = vpop.f32.mrb[0].mxu0
    %v2776 = vadd.f32 %v2701, %v2775
    %v2777 = vpop.f32.mrb[0].mxu0
    %2778 = vdwg.mxu0
    %v2779 = vmax.f32 %v2776, 0.0
    %v2781 = vlaneseq
    %v2782 = vshrl.u32 %v2781, 7
    %v2783 = vsub.s32 0, %v2782
    %v2784 = vrot.slane %v2696, %v2783
    %v2785 = vlaneseq
    %v2786 = vshrl.u32 %v2785, 7
    %v2787 = vsub.s32 1, %v2786
    %v2788 = vrot.slane %v2696, %v2787
    %v2789 = vlaneseq
    %v2790 = vshrl.u32 %v2789, 7
    %v2791 = vsub.s32 2, %v2790
    %v2792 = vrot.slane %v2696, %v2791
    %v2793 = vlaneseq
    %v2794 = vshrl.u32 %v2793, 7
    %v2795 = vsub.s32 3, %v2794
    %v2796 = vrot.slane %v2696, %v2795
    %v2797 = vlaneseq
    %v2798 = vshrl.u32 %v2797, 7
    %v2799 = vsub.s32 4, %v2798
    %v2800 = vrot.slane %v2696, %v2799
    %v2807 = vsel %vm261, %v2779, 0
    %2809 = vmatprep.subr.mxu0 %v2677
    %2810 = vmatpush1.msra.mxu0 %v2676
    %2811 = vmatprep.subr.mxu0 %v2682
    %2812 = vmatpush1.msra.mxu0 %v2681
    %2813 = vmatprep.subr.mxu0 %v2687
    %2814 = vmatpush1.msra.mxu0 %v2686
    %2815 = vmatprep.subr.mxu0 %v2692
    %2816 = vmatpush1.msra.mxu0 %v2691
    %2817 = vmatprep.subr.mxu0 0.0
    %2818 = vmatpush1.msra.mxu0 0.0
    %2819 = vmatprep.subr.mxu0 0.0
    %2820 = vmatpush1.msra.mxu0 0.0
    %2821 = vmatprep.subr.mxu0 0.0
    %2822 = vmatpush1.msra.mxu0 0.0
    %2823 = vmatprep.subr.mxu0 0.0
    %2824 = vmatpush1.msra.mxu0 0.0
    %2825 = vmatprep.subr.mxu0 0.0
    %2826 = vmatpush1.msra.mxu0 0.0
    %2827 = vmatprep.subr.mxu0 0.0
    %2828 = vmatpush1.msra.mxu0 0.0
    %2829 = vmatprep.subr.mxu0 0.0
    %2830 = vmatpush1.msra.mxu0 0.0
    %2831 = vmatprep.subr.mxu0 0.0
    %2832 = vmatpush1.msra.mxu0 0.0
    %2833 = vmatprep.subr.mxu0 0.0
    %2834 = vmatpush1.msra.mxu0 0.0
    %2835 = vmatprep.subr.mxu0 0.0
    %2836 = vmatpush1.msra.mxu0 0.0
    %2837 = vmatprep.subr.mxu0 0.0
    %2838 = vmatpush1.msra.mxu0 0.0
    %2839 = vmatprep.subr.mxu0 0.0
    %2840 = vmatpush1.msra.mxu0 0.0
    %2841 = vmatprep.subr.mxu0 0.0
    %2842 = vmatpush1.msra.mxu0 0.0
    %2843 = vmatprep.subr.mxu0 0.0
    %2844 = vmatpush1.msra.mxu0 0.0
    %2845 = vmatprep.subr.mxu0 0.0
    %2846 = vmatpush1.msra.mxu0 0.0
    %2847 = vmatprep.subr.mxu0 0.0
    %2848 = vmatpush1.msra.mxu0 0.0
    %2849 = vmatprep.subr.mxu0 0.0
    %2850 = vmatpush1.msra.mxu0 0.0
    %2851 = vmatprep.subr.mxu0 0.0
    %2852 = vmatpush1.msra.mxu0 0.0
    %2853 = vmatprep.subr.mxu0 0.0
    %2854 = vmatpush1.msra.mxu0 0.0
    %2855 = vmatprep.subr.mxu0 0.0
    %2856 = vmatpush1.msra.mxu0 0.0
    %2857 = vmatprep.subr.mxu0 0.0
    %2858 = vmatpush1.msra.mxu0 0.0
    %2859 = vmatprep.subr.mxu0 0.0
    %2860 = vmatpush1.msra.mxu0 0.0
    %2861 = vmatprep.subr.mxu0 0.0
    %2862 = vmatpush1.msra.mxu0 0.0
    %2863 = vmatprep.subr.mxu0 0.0
    %2864 = vmatpush1.msra.mxu0 0.0
    %2865 = vmatprep.subr.mxu0 0.0
    %2866 = vmatpush1.msra.mxu0 0.0
    %2867 = vmatprep.subr.mxu0 0.0
    %2868 = vmatpush1.msra.mxu0 0.0
    %2869 = vmatprep.subr.mxu0 0.0
    %2870 = vmatpush1.msra.mxu0 0.0
    %2871 = vmatprep.subr.mxu0 0.0
    %2872 = vmatpush1.msra.mxu0 0.0
    %2873 = vmatprep.mubr.f32.mxu0 0.0
    %2874 = vmatmul.mubr.f32.gmra.mrb[0].mxu0 %v2807
    %v2875 = vpop.f32.mrb[0].mxu0
    %v2876 = vadd.f32 %v2784, %v2875
    %v2877 = vpop.f32.mrb[0].mxu0
    %v2878 = vadd.f32 %v2788, %v2877
    %2879 = vdwg.mxu0
    %2880 = vmatprep.subr.mxu0 %v2679
    %2881 = vmatpush1.msra.mxu0 %v2678
    %2882 = vmatprep.subr.mxu0 %v2684
    %2883 = vmatpush1.msra.mxu0 %v2683
    %2884 = vmatprep.subr.mxu0 %v2689
    %2885 = vmatpush1.msra.mxu0 %v2688
    %2886 = vmatprep.subr.mxu0 %v2694
    %2887 = vmatpush1.msra.mxu0 %v2693
    %2888 = vmatprep.subr.mxu0 0.0
    %2889 = vmatpush1.msra.mxu0 0.0
    %2890 = vmatprep.subr.mxu0 0.0
    %2891 = vmatpush1.msra.mxu0 0.0
    %2892 = vmatprep.subr.mxu0 0.0
    %2893 = vmatpush1.msra.mxu0 0.0
    %2894 = vmatprep.subr.mxu0 0.0
    %2895 = vmatpush1.msra.mxu0 0.0
    %2896 = vmatprep.subr.mxu0 0.0
    %2897 = vmatpush1.msra.mxu0 0.0
    %2898 = vmatprep.subr.mxu0 0.0
    %2899 = vmatpush1.msra.mxu0 0.0
    %2900 = vmatprep.subr.mxu0 0.0
    %2901 = vmatpush1.msra.mxu0 0.0
    %2902 = vmatprep.subr.mxu0 0.0
    %2903 = vmatpush1.msra.mxu0 0.0
    %2904 = vmatprep.subr.mxu0 0.0
    %2905 = vmatpush1.msra.mxu0 0.0
    %2906 = vmatprep.subr.mxu0 0.0
    %2907 = vmatpush1.msra.mxu0 0.0
    %2908 = vmatprep.subr.mxu0 0.0
    %2909 = vmatpush1.msra.mxu0 0.0
    %2910 = vmatprep.subr.mxu0 0.0
    %2911 = vmatpush1.msra.mxu0 0.0
    %2912 = vmatprep.subr.mxu0 0.0
    %2913 = vmatpush1.msra.mxu0 0.0
    %2914 = vmatprep.subr.mxu0 0.0
    %2915 = vmatpush1.msra.mxu0 0.0
    %2916 = vmatprep.subr.mxu0 0.0
    %2917 = vmatpush1.msra.mxu0 0.0
    %2918 = vmatprep.subr.mxu0 0.0
    %2919 = vmatpush1.msra.mxu0 0.0
    %2920 = vmatprep.subr.mxu0 0.0
    %2921 = vmatpush1.msra.mxu0 0.0
    %2922 = vmatprep.subr.mxu0 0.0
    %2923 = vmatpush1.msra.mxu0 0.0
    %2924 = vmatprep.subr.mxu0 0.0
    %2925 = vmatpush1.msra.mxu0 0.0
    %2926 = vmatprep.subr.mxu0 0.0
    %2927 = vmatpush1.msra.mxu0 0.0
    %2928 = vmatprep.subr.mxu0 0.0
    %2929 = vmatpush1.msra.mxu0 0.0
    %2930 = vmatprep.subr.mxu0 0.0
    %2931 = vmatpush1.msra.mxu0 0.0
    %2932 = vmatprep.subr.mxu0 0.0
    %2933 = vmatpush1.msra.mxu0 0.0
    %2934 = vmatprep.subr.mxu0 0.0
    %2935 = vmatpush1.msra.mxu0 0.0
    %2936 = vmatprep.subr.mxu0 0.0
    %2937 = vmatpush1.msra.mxu0 0.0
    %2938 = vmatprep.subr.mxu0 0.0
    %2939 = vmatpush1.msra.mxu0 0.0
    %2940 = vmatprep.subr.mxu0 0.0
    %2941 = vmatpush1.msra.mxu0 0.0
    %2942 = vmatprep.subr.mxu0 0.0
    %2943 = vmatpush1.msra.mxu0 0.0
    %2944 = vmatprep.mubr.f32.mxu0 0.0
    %2945 = vmatmul.mubr.f32.gmra.mrb[0].mxu0 %v2807
    %v2946 = vpop.f32.mrb[0].mxu0
    %v2947 = vadd.f32 %v2792, %v2946
    %v2948 = vpop.f32.mrb[0].mxu0
    %v2949 = vadd.f32 %v2796, %v2948
    %2950 = vdwg.mxu0
    %2951 = vmatprep.subr.mxu0 0.0
    %2952 = vmatpush1.msra.mxu0 %v2680
    %2953 = vmatprep.subr.mxu0 0.0
    %2954 = vmatpush1.msra.mxu0 %v2685
    %2955 = vmatprep.subr.mxu0 0.0
    %2956 = vmatpush1.msra.mxu0 %v2690
    %2957 = vmatprep.subr.mxu0 0.0
    %2958 = vmatpush1.msra.mxu0 %v2695
    %2959 = vmatprep.subr.mxu0 0.0
    %2960 = vmatpush1.msra.mxu0 0.0
    %2961 = vmatprep.subr.mxu0 0.0
    %2962 = vmatpush1.msra.mxu0 0.0
    %2963 = vmatprep.subr.mxu0 0.0
    %2964 = vmatpush1.msra.mxu0 0.0
    %2965 = vmatprep.subr.mxu0 0.0
    %2966 = vmatpush1.msra.mxu0 0.0
    %2967 = vmatprep.subr.mxu0 0.0
    %2968 = vmatpush1.msra.mxu0 0.0
    %2969 = vmatprep.subr.mxu0 0.0
    %2970 = vmatpush1.msra.mxu0 0.0
    %2971 = vmatprep.subr.mxu0 0.0
    %2972 = vmatpush1.msra.mxu0 0.0
    %2973 = vmatprep.subr.mxu0 0.0
    %2974 = vmatpush1.msra.mxu0 0.0
    %2975 = vmatprep.subr.mxu0 0.0
    %2976 = vmatpush1.msra.mxu0 0.0
    %2977 = vmatprep.subr.mxu0 0.0
    %2978 = vmatpush1.msra.mxu0 0.0
    %2979 = vmatprep.subr.mxu0 0.0
    %2980 = vmatpush1.msra.mxu0 0.0
    %2981 = vmatprep.subr.mxu0 0.0
    %2982 = vmatpush1.msra.mxu0 0.0
    %2983 = vmatprep.subr.mxu0 0.0
    %2984 = vmatpush1.msra.mxu0 0.0
    %2985 = vmatprep.subr.mxu0 0.0
    %2986 = vmatpush1.msra.mxu0 0.0
    %2987 = vmatprep.subr.mxu0 0.0
    %2988 = vmatpush1.msra.mxu0 0.0
    %2989 = vmatprep.subr.mxu0 0.0
    %2990 = vmatpush1.msra.mxu0 0.0
    %2991 = vmatprep.subr.mxu0 0.0
    %2992 = vmatpush1.msra.mxu0 0.0
    %2993 = vmatprep.subr.mxu0 0.0
    %2994 = vmatpush1.msra.mxu0 0.0
    %2995 = vmatprep.subr.mxu0 0.0
    %2996 = vmatpush1.msra.mxu0 0.0
    %2997 = vmatprep.subr.mxu0 0.0
    %2998 = vmatpush1.msra.mxu0 0.0
    %2999 = vmatprep.subr.mxu0 0.0
    %3000 = vmatpush1.msra.mxu0 0.0
    %3001 = vmatprep.subr.mxu0 0.0
    %3002 = vmatpush1.msra.mxu0 0.0
    %3003 = vmatprep.subr.mxu0 0.0
    %3004 = vmatpush1.msra.mxu0 0.0
    %3005 = vmatprep.subr.mxu0 0.0
    %3006 = vmatpush1.msra.mxu0 0.0
    %3007 = vmatprep.subr.mxu0 0.0
    %3008 = vmatpush1.msra.mxu0 0.0
    %3009 = vmatprep.subr.mxu0 0.0
    %3010 = vmatpush1.msra.mxu0 0.0
    %3011 = vmatprep.subr.mxu0 0.0
    %3012 = vmatpush1.msra.mxu0 0.0
    %3013 = vmatprep.subr.mxu0 0.0
    %3014 = vmatpush1.msra.mxu0 0.0
    %3015 = vmatprep.mubr.f32.mxu0 0.0
    %3016 = vmatmul.mubr.f32.gmra.mrb[0].mxu0 %v2807
    %v3017 = vpop.f32.mrb[0].mxu0
    %v3018 = vadd.f32 %v2800, %v3017
    %v3019 = vpop.f32.mrb[0].mxu0
    %3020 = vdwg.mxu0
    %v3026 = vcombine.low %v2876, %v2878
    %v3027 = vcombine.low %v2947, %v2949
    %v3029 = vunpack.c.l.s4 1983009808
    %v3030 = vunpack.c.0.s8 %v3029
    %v3031 = vlaneseq
    %v3032 = vshrl.u32 %v3031, 7
    %v3033 = vsub.s32 %v3030, %v3032
    %v3034 = vrot.slane %v3026, %v3033
    %v3036 = vunpack.c.l.s4 1983009808
    %v3037 = vunpack.c.0.s8 %v3036
    %v3038 = vlaneseq
    %v3039 = vshrl.u32 %v3038, 7
    %v3040 = vsub.s32 %v3037, %v3039
    %v3041 = vrot.slane %v3027, %v3040
    %v3042 = vcombine.low %v3034, %v3041
    %v3044 = vunpack.c.l.s4 1983009808
    %v3045 = vunpack.c.0.s8 %v3044
    %v3046 = vlaneseq
    %v3047 = vshrl.u32 %v3046, 7
    %v3048 = vsub.s32 %v3045, %v3047
    %v3049 = vrot.slane %v3018, %v3048
    %3052 = vst [vmem:[#allocation2] sm:$0xff] %v3042
    %3053 = vst [vmem:[#allocation2 + $0x8] sm:$0x3] %v3049
    // Predicated region
    $region126: #{sample_classifier_forward.1} parent=1 // pred_check
      _
    $region127: #{sample_classifier_forward.1} parent=1 // pred_check_branch
      %3055 = sbr.rel (0) target = $region129
    $region128: #{sample_classifier_forward.1} parent=1 // pred_region
      %s3057 = ssub.s32 160, 160
      %3058 = vsyncadd [#allocation3], %s3057
      %s3060 = sshll.u32 [#allocation2], 4
      %s3061 = int_to_ptr.vmem [resolvable:$true] %s3060
      %3063 = dma.vmem_to_hbm [thread:$0]  %s3061, 160, %s63, [#allocation3]
    $region129: #{sample_classifier_forward.1} parent=1 // pred_fallthru
      _
    // Predicated region
    $region130: #{sample_classifier_forward.1} parent=1 // pred_check
      _
    $region131: #{sample_classifier_forward.1} parent=1 // pred_check_branch
      %3065 = sbr.rel (0) target = $region133
    $region132: #{sample_classifier_forward.1} parent=1 // pred_region
      %3066 = dma.done [#allocation3], 160
    $region133: #{sample_classifier_forward.1} parent=1 // pred_fallthru
      _
    %3067 = vsyncpa [#allocation3], 1

</llo_original>
